<compile_context>
chip_gen: v7x
topology: tpu7x:2x2x1
jax: 0.10.0
libtpu: 0.0.40
codegen_flags: <defaults>
</compile_context>

<pallas_src>
import math

import jax
import jax.numpy as jnp
from jax import lax
from jax.experimental import pallas as pl
from jax.experimental.pallas import tpu as pltpu  # noqa: F401  (TPU backend)

# ---------------- model hyperparameters (small, consistent with the module) --
B = 2          # batch
N = 8          # sequence length (tokens)
DIM = 32       # model dim
DEPTH = 2      # number of transformer blocks
HEADS = 4
DIM_HEAD = 8
INNER = HEADS * DIM_HEAD      # 32
MLP_DIM = 64
LN_EPS = 1e-5                  # torch.nn.LayerNorm default
BN = B * N                     # flattened token count


# ---------------- in-kernel helpers ------------------------------------------
def _layer_norm(x, g, b):
    # PyTorch LayerNorm: biased variance over the last dim.
    mu = jnp.mean(x, axis=-1, keepdims=True)
    var = jnp.mean((x - mu) * (x - mu), axis=-1, keepdims=True)
    return (x - mu) * lax.rsqrt(var + LN_EPS) * g + b


def _gelu_exact(x):
    # torch.nn.GELU() default = exact erf formulation.
    return 0.5 * x * (1.0 + lax.erf(x * (1.0 / math.sqrt(2.0))))


# ---------------- fused Pallas kernel -----------------------------------------
def transformer_kernel(x_ref,
                       ln1_g_ref, ln1_b_ref, wqkv_ref, wo_ref, bo_ref,
                       ln2_g_ref, ln2_b_ref, w1_ref, b1_ref, w2_ref, b2_ref,
                       fg_ref, fb_ref, o_ref):
    x = x_ref[...]                                # (BN, DIM)

    for l in range(DEPTH):                        # static unroll over depth
        # ---- attention sublayer: x = Attn(LN(x)) + x ----
        h = _layer_norm(x, ln1_g_ref[l], ln1_b_ref[l])            # (BN, DIM)

        # one head-batched projection for q, k AND v together:
        # weights are (3*HEADS, DIM, DIM_HEAD); q-scale pre-folded in wrapper.
        h_rep = jnp.broadcast_to(h[None], (3 * HEADS, BN, DIM))   # (3H, BN, DIM)
        qkv = jnp.einsum('znd,zdk->znk', h_rep, wqkv_ref[l],
                         preferred_element_type=jnp.float32)      # (3H, BN, Dh)

        # free leading-axis (vreg-select) splits -- no lane slicing.
        q = qkv[0 * HEADS:1 * HEADS]                              # (H, BN, Dh)
        k = qkv[1 * HEADS:2 * HEADS]
        v = qkv[2 * HEADS:3 * HEADS]

        # (H, B*N, Dh) -> (H*B, N, Dh): pure leading/sublane-boundary reshape.
        qz = q.reshape(HEADS * B, N, DIM_HEAD)
        kz = k.reshape(HEADS * B, N, DIM_HEAD)
        vz = v.reshape(HEADS * B, N, DIM_HEAD)

        # batched scores + one softmax over all (head, batch) pairs.
        # scale already folded into the q weights.
        dots = jnp.einsum('znd,zmd->znm', qz, kz,
                          preferred_element_type=jnp.float32)      # (Z, N, N)
        dots = dots - jnp.max(dots, axis=-1, keepdims=True)
        e = jnp.exp(dots)
        s = jnp.sum(e, axis=-1, keepdims=True)
        inv = pl.reciprocal(s, approx=True)        # EUP, not VALU divide
        inv = inv * (2.0 - s * inv)                # 1 Newton step -> f32 accuracy
        attn = e * inv
        oz = jnp.einsum('znm,zmd->znd', attn, vz,
                        preferred_element_type=jnp.float32)        # (Z, N, Dh)

        # per-head output projection, then sum over heads == concat(heads) @ Wo
        oh = oz.reshape(HEADS, BN, DIM_HEAD)                       # (H, BN, Dh)
        proj = jnp.einsum('hnd,hdk->hnk', oh, wo_ref[l],
                          preferred_element_type=jnp.float32)      # (H, BN, DIM)
        x = x + jnp.sum(proj, axis=0) + bo_ref[l]

        # ---- feed-forward sublayer: x = FF(LN(x)) + x ----
        h2 = _layer_norm(x, ln2_g_ref[l], ln2_b_ref[l])
        hidden = jnp.dot(h2, w1_ref[l],
                         preferred_element_type=jnp.float32) + b1_ref[l]
        hidden = _gelu_exact(hidden)
        x = x + jnp.dot(hidden, w2_ref[l],
                        preferred_element_type=jnp.float32) + b2_ref[l]

    # final LayerNorm fused into the same kernel.
    o_ref[...] = _layer_norm(x, fg_ref[...], fb_ref[...]).astype(o_ref.dtype)


# ---------------- wrappers -----------------------------------------------------
def prepare_params(layer_params):
    """Stack per-layer weights on a leading depth axis, split the QKV weight
    per (qkv, head) on a leading axis, and fold the attention scale into the
    Q weights, so the kernel never slices the lane dimension and never
    multiplies the score tensor by the scale."""
    def stack(key):
        return jnp.stack([p[key] for p in layer_params])            # (DEPTH, ...)

    wqkv = stack("wqkv")                                            # (D, DIM, 3*INNER)
    # columns are [q | k | v], each head-major -> (D, 3*HEADS, DIM, DIM_HEAD)
    wqkv_h = (wqkv.reshape(DEPTH, DIM, 3, HEADS, DIM_HEAD)
                  .transpose(0, 2, 3, 1, 4)
                  .reshape(DEPTH, 3 * HEADS, DIM, DIM_HEAD))
    scale = DIM_HEAD ** -0.5
    wqkv_h = wqkv_h.at[:, :HEADS].multiply(scale)                   # fold scale into Wq

    wo = stack("wo").reshape(DEPTH, HEADS, DIM_HEAD, DIM)           # head-major rows

    return dict(
        ln1_g=stack("ln1_g"), ln1_b=stack("ln1_b"),
        wqkv=wqkv_h, wo=wo, bo=stack("bo"),
        ln2_g=stack("ln2_g"), ln2_b=stack("ln2_b"),
        w1=stack("w1"), b1=stack("b1"), w2=stack("w2"), b2=stack("b2"))


@jax.jit
def transformer_forward(x, packed, final_g, final_b):
    x2 = x.reshape(BN, DIM)
    out = pl.pallas_call(
        transformer_kernel,
        out_shape=jax.ShapeDtypeStruct((BN, DIM), jnp.float32),
        # no grid: a single invocation processes the whole (B*N, DIM) slab,
        # every input is resident in VMEM as one full block.
    )(x2,
      packed["ln1_g"], packed["ln1_b"],
      packed["wqkv"], packed["wo"], packed["bo"],
      packed["ln2_g"], packed["ln2_b"],
      packed["w1"], packed["b1"], packed["w2"], packed["b2"],
      final_g, final_b)
    return out.reshape(B, N, DIM)


# ---------------- pure-JAX reference (for correctness check) -------------------
def reference_forward(x, layer_params, final_g, final_b):
    def ln(x, g, b):
        mu = jnp.mean(x, axis=-1, keepdims=True)
        var = jnp.mean((x - mu) ** 2, axis=-1, keepdims=True)
        return (x - mu) / jnp.sqrt(var + LN_EPS) * g + b

    for p in layer_params:
        h = ln(x, p["ln1_g"][0], p["ln1_b"][0])
        qkv = h @ p["wqkv"]
        q, k, v = jnp.split(qkv, 3, axis=-1)

        def heads(t):
            return t.reshape(B, N, HEADS, DIM_HEAD).transpose(0, 2, 1, 3)

        q, k, v = heads(q), heads(k), heads(v)
        dots = jnp.einsum("bhnd,bhmd->bhnm", q, k) * (DIM_HEAD ** -0.5)
        attn = jax.nn.softmax(dots, axis=-1)
        out = jnp.einsum("bhnm,bhmd->bhnd", attn, v)
        out = out.transpose(0, 2, 1, 3).reshape(B, N, INNER)
        x = x + (out @ p["wo"] + p["bo"][0])

        h2 = ln(x, p["ln2_g"][0], p["ln2_b"][0])
        hidden = jax.nn.gelu(h2 @ p["w1"] + p["b1"][0], approximate=False)
        x = x + (hidden @ p["w2"] + p["b2"][0])
    return ln(x, final_g[0], final_b[0])


# ---------------- parameter init ----------------------------------------------
def init_params(key):
    layer_params = []
    for _ in range(DEPTH):
        keys = jax.random.split(key, 8)
        key = keys[-1]
        p = {
            "ln1_g": 1.0 + 0.05 * jax.random.normal(keys[0], (1, DIM), jnp.float32),
            "ln1_b": 0.02 * jax.random.normal(keys[1], (1, DIM), jnp.float32),
            "wqkv": 0.05 * jax.random.normal(keys[2], (DIM, 3 * INNER), jnp.float32),
            "wo":   0.05 * jax.random.normal(keys[3], (INNER, DIM), jnp.float32),
            "bo":   0.01 * jax.random.normal(keys[4], (1, DIM), jnp.float32),
            "ln2_g": 1.0 + 0.05 * jax.random.normal(keys[5], (1, DIM), jnp.float32),
            "ln2_b": 0.02 * jax.random.normal(keys[6], (1, DIM), jnp.float32),
        }
        keys2 = jax.random.split(key, 6)
        key = keys2[-1]
        p["w1"] = 0.05 * jax.random.normal(keys2[0], (DIM, MLP_DIM), jnp.float32)
        p["b1"] = 0.01 * jax.random.normal(keys2[1], (1, MLP_DIM), jnp.float32)
        p["w2"] = 0.05 * jax.random.normal(keys2[2], (MLP_DIM, DIM), jnp.float32)
        p["b2"] = 0.01 * jax.random.normal(keys2[3], (1, DIM), jnp.float32)
        layer_params.append(p)
    kf = jax.random.split(key, 2)
    final_g = 1.0 + 0.05 * jax.random.normal(kf[0], (1, DIM), jnp.float32)
    final_b = 0.02 * jax.random.normal(kf[1], (1, DIM), jnp.float32)
    return layer_params, final_g, final_b


# ---------------- main ----------------------------------------------------------
if __name__ == "__main__":
    key = jax.random.PRNGKey(0)
    k_x, k_p = jax.random.split(key)
    x = jax.random.normal(k_x, (B, N, DIM), jnp.float32)
    layer_params, final_g, final_b = init_params(k_p)

    packed = prepare_params(layer_params)
    out = transformer_forward(x, packed, final_g, final_b)
    out = jax.block_until_ready(out)

    ref = reference_forward(x, layer_params, final_g, final_b)
    assert out.shape == (B, N, DIM)
    assert jnp.allclose(out, ref, atol=5e-4, rtol=5e-4), (
        f"max abs err {jnp.max(jnp.abs(out - ref))}")

    print("KERNEL_OK")
</pallas_src>

<mosaic_0001>
module attributes {stable_mosaic.version = 11 : i64} {
  func.func @transformer_kernel(%arg0: memref<16x32xf32, #tpu.memory_space<vmem>>, %arg1: memref<2x1x32xf32, #tpu.memory_space<vmem>>, %arg2: memref<2x1x32xf32, #tpu.memory_space<vmem>>, %arg3: memref<2x12x32x8xf32, #tpu.memory_space<vmem>>, %arg4: memref<2x4x8x32xf32, #tpu.memory_space<vmem>>, %arg5: memref<2x1x32xf32, #tpu.memory_space<vmem>>, %arg6: memref<2x1x32xf32, #tpu.memory_space<vmem>>, %arg7: memref<2x1x32xf32, #tpu.memory_space<vmem>>, %arg8: memref<2x32x64xf32, #tpu.memory_space<vmem>>, %arg9: memref<2x1x64xf32, #tpu.memory_space<vmem>>, %arg10: memref<2x64x32xf32, #tpu.memory_space<vmem>>, %arg11: memref<2x1x32xf32, #tpu.memory_space<vmem>>, %arg12: memref<1x32xf32, #tpu.memory_space<vmem>>, %arg13: memref<1x32xf32, #tpu.memory_space<vmem>>, %arg14: memref<16x32xf32, #tpu.memory_space<vmem>>) attributes {dimension_semantics = [], scalar_prefetch = 0 : i64, scratch_operands = 0 : i64, tpu.core_type = #tpu.core_type<tc>} {
    %c0 = arith.constant 0 : index
    %c0_0 = arith.constant 0 : index
    %0 = vector.load %arg0[%c0, %c0_0] : memref<16x32xf32, #tpu.memory_space<vmem>>, vector<16x32xf32>
    %c0_1 = arith.constant 0 : index
    %c0_2 = arith.constant 0 : index
    %c0_3 = arith.constant 0 : index
    %1 = vector.load %arg1[%c0_1, %c0_2, %c0_3] : memref<2x1x32xf32, #tpu.memory_space<vmem>>, vector<1x1x32xf32>
    %2 = vector.shape_cast %1 : vector<1x1x32xf32> to vector<1x32xf32>
    %c0_4 = arith.constant 0 : index
    %c0_5 = arith.constant 0 : index
    %c0_6 = arith.constant 0 : index
    %3 = vector.load %arg2[%c0_4, %c0_5, %c0_6] : memref<2x1x32xf32, #tpu.memory_space<vmem>>, vector<1x1x32xf32>
    %4 = vector.shape_cast %3 : vector<1x1x32xf32> to vector<1x32xf32>
    %cst = arith.constant dense<0.000000e+00> : vector<16xf32>
    %5 = vector.multi_reduction <add>, %0, %cst [1] : vector<16x32xf32> to vector<16xf32>
    %6 = vector.shape_cast %5 : vector<16xf32> to vector<16x1xf32>
    %cst_7 = arith.constant 3.200000e+01 : f32
    %7 = vector.broadcast %cst_7 : f32 to vector<16x1xf32>
    %8 = arith.divf %6, %7 : vector<16x1xf32>
    %9 = vector.broadcast %8 : vector<16x1xf32> to vector<16x32xf32>
    %10 = arith.subf %0, %9 : vector<16x32xf32>
    %11 = vector.broadcast %8 : vector<16x1xf32> to vector<16x32xf32>
    %12 = arith.subf %0, %11 : vector<16x32xf32>
    %13 = arith.mulf %10, %12 : vector<16x32xf32>
    %cst_8 = arith.constant dense<0.000000e+00> : vector<16xf32>
    %14 = vector.multi_reduction <add>, %13, %cst_8 [1] : vector<16x32xf32> to vector<16xf32>
    %15 = vector.shape_cast %14 : vector<16xf32> to vector<16x1xf32>
    %cst_9 = arith.constant 3.200000e+01 : f32
    %16 = vector.broadcast %cst_9 : f32 to vector<16x1xf32>
    %17 = arith.divf %15, %16 : vector<16x1xf32>
    %18 = vector.broadcast %8 : vector<16x1xf32> to vector<16x32xf32>
    %19 = arith.subf %0, %18 : vector<16x32xf32>
    %cst_10 = arith.constant 9.99999974E-6 : f32
    %20 = vector.broadcast %cst_10 : f32 to vector<16x1xf32>
    %21 = arith.addf %17, %20 : vector<16x1xf32>
    %22 = math.rsqrt %21 : vector<16x1xf32>
    %23 = vector.broadcast %22 : vector<16x1xf32> to vector<16x32xf32>
    %24 = arith.mulf %19, %23 : vector<16x32xf32>
    %25 = vector.broadcast %2 : vector<1x32xf32> to vector<16x32xf32>
    %26 = arith.mulf %24, %25 : vector<16x32xf32>
    %27 = vector.broadcast %4 : vector<1x32xf32> to vector<16x32xf32>
    %28 = arith.addf %26, %27 : vector<16x32xf32>
    %29 = vector.shape_cast %28 : vector<16x32xf32> to vector<1x16x32xf32>
    %30 = vector.shape_cast %29 : vector<1x16x32xf32> to vector<1x16x32xf32>
    %31 = vector.broadcast %30 : vector<1x16x32xf32> to vector<12x16x32xf32>
    %c0_11 = arith.constant 0 : index
    %c0_12 = arith.constant 0 : index
    %c0_13 = arith.constant 0 : index
    %c0_14 = arith.constant 0 : index
    %32 = vector.load %arg3[%c0_11, %c0_12, %c0_13, %c0_14] : memref<2x12x32x8xf32, #tpu.memory_space<vmem>>, vector<1x12x32x8xf32>
    %33 = vector.shape_cast %32 : vector<1x12x32x8xf32> to vector<12x32x8xf32>
    "tpu.trace_start"() <{level = 10 : i32, message = "znd,zdk->znk"}> : () -> ()
    %cst_15 = arith.constant dense<0.000000e+00> : vector<12x16x8xf32>
    %34 = tpu.matmul %31, %33, %cst_15 {dimension_numbers = #tpu.dot_dimension_numbers<[2], [1], [1], [2], [0, 0, 0, 1, 1, 2], [0], [0]>} : vector<12x16x32xf32>, vector<12x32x8xf32>, vector<12x16x8xf32> -> vector<12x16x8xf32>
    "tpu.trace_stop"() : () -> ()
    %35 = vector.extract_strided_slice %34 {offsets = [0, 0, 0], sizes = [4, 16, 8], strides = [1, 1, 1]} : vector<12x16x8xf32> to vector<4x16x8xf32>
    %36 = vector.extract_strided_slice %34 {offsets = [4, 0, 0], sizes = [4, 16, 8], strides = [1, 1, 1]} : vector<12x16x8xf32> to vector<4x16x8xf32>
    %37 = vector.extract_strided_slice %34 {offsets = [8, 0, 0], sizes = [4, 16, 8], strides = [1, 1, 1]} : vector<12x16x8xf32> to vector<4x16x8xf32>
    %38 = vector.shape_cast %35 : vector<4x16x8xf32> to vector<8x8x8xf32>
    %39 = vector.shape_cast %36 : vector<4x16x8xf32> to vector<8x8x8xf32>
    %40 = vector.shape_cast %37 : vector<4x16x8xf32> to vector<8x8x8xf32>
    "tpu.trace_start"() <{level = 10 : i32, message = "znd,zmd->znm"}> : () -> ()
    %cst_16 = arith.constant dense<0.000000e+00> : vector<8x8x8xf32>
    %41 = tpu.matmul %38, %39, %cst_16 {dimension_numbers = #tpu.dot_dimension_numbers<[2], [2], [1], [1], [0, 0, 0, 1, 1, 1], [0], [0]>} : vector<8x8x8xf32>, vector<8x8x8xf32>, vector<8x8x8xf32> -> vector<8x8x8xf32>
    "tpu.trace_stop"() : () -> ()
    %cst_17 = arith.constant dense<0xFF800000> : vector<8x8xf32>
    %42 = vector.multi_reduction <maximumf>, %41, %cst_17 [2] : vector<8x8x8xf32> to vector<8x8xf32>
    %43 = vector.shape_cast %42 : vector<8x8xf32> to vector<8x8x1xf32>
    %44 = vector.broadcast %43 : vector<8x8x1xf32> to vector<8x8x8xf32>
    %45 = arith.subf %41, %44 : vector<8x8x8xf32>
    %46 = math.exp %45 : vector<8x8x8xf32>
    %cst_18 = arith.constant dense<0.000000e+00> : vector<8x8xf32>
    %47 = vector.multi_reduction <add>, %46, %cst_18 [2] : vector<8x8x8xf32> to vector<8x8xf32>
    %48 = vector.shape_cast %47 : vector<8x8xf32> to vector<8x8x1xf32>
    %49 = tpu.reciprocal %48 {approx = true} : vector<8x8x1xf32> -> vector<8x8x1xf32>
    %50 = arith.mulf %48, %49 : vector<8x8x1xf32>
    %cst_19 = arith.constant 2.000000e+00 : f32
    %51 = vector.broadcast %cst_19 : f32 to vector<8x8x1xf32>
    %52 = arith.subf %51, %50 : vector<8x8x1xf32>
    %53 = arith.mulf %49, %52 : vector<8x8x1xf32>
    %54 = vector.broadcast %53 : vector<8x8x1xf32> to vector<8x8x8xf32>
    %55 = arith.mulf %46, %54 : vector<8x8x8xf32>
    "tpu.trace_start"() <{level = 10 : i32, message = "znm,zmd->znd"}> : () -> ()
    %cst_20 = arith.constant dense<0.000000e+00> : vector<8x8x8xf32>
    %56 = tpu.matmul %55, %40, %cst_20 {dimension_numbers = #tpu.dot_dimension_numbers<[2], [1], [1], [2], [0, 0, 0, 1, 1, 2], [0], [0]>} : vector<8x8x8xf32>, vector<8x8x8xf32>, vector<8x8x8xf32> -> vector<8x8x8xf32>
    "tpu.trace_stop"() : () -> ()
    %57 = vector.shape_cast %56 : vector<8x8x8xf32> to vector<4x16x8xf32>
    %c0_21 = arith.constant 0 : index
    %c0_22 = arith.constant 0 : index
    %c0_23 = arith.constant 0 : index
    %c0_24 = arith.constant 0 : index
    %58 = vector.load %arg4[%c0_21, %c0_22, %c0_23, %c0_24] : memref<2x4x8x32xf32, #tpu.memory_space<vmem>>, vector<1x4x8x32xf32>
    %59 = vector.shape_cast %58 : vector<1x4x8x32xf32> to vector<4x8x32xf32>
    "tpu.trace_start"() <{level = 10 : i32, message = "hnd,hdk->hnk"}> : () -> ()
    %cst_25 = arith.constant dense<0.000000e+00> : vector<4x16x32xf32>
    %60 = tpu.matmul %57, %59, %cst_25 {dimension_numbers = #tpu.dot_dimension_numbers<[2], [1], [1], [2], [0, 0, 0, 1, 1, 2], [0], [0]>} : vector<4x16x8xf32>, vector<4x8x32xf32>, vector<4x16x32xf32> -> vector<4x16x32xf32>
    "tpu.trace_stop"() : () -> ()
    %cst_26 = arith.constant dense<0.000000e+00> : vector<16x32xf32>
    %61 = vector.multi_reduction <add>, %60, %cst_26 [0] : vector<4x16x32xf32> to vector<16x32xf32>
    %62 = arith.addf %0, %61 : vector<16x32xf32>
    %c0_27 = arith.constant 0 : index
    %c0_28 = arith.constant 0 : index
    %c0_29 = arith.constant 0 : index
    %63 = vector.load %arg5[%c0_27, %c0_28, %c0_29] : memref<2x1x32xf32, #tpu.memory_space<vmem>>, vector<1x1x32xf32>
    %64 = vector.shape_cast %63 : vector<1x1x32xf32> to vector<1x32xf32>
    %65 = vector.broadcast %64 : vector<1x32xf32> to vector<16x32xf32>
    %66 = arith.addf %62, %65 : vector<16x32xf32>
    %c0_30 = arith.constant 0 : index
    %c0_31 = arith.constant 0 : index
    %c0_32 = arith.constant 0 : index
    %67 = vector.load %arg6[%c0_30, %c0_31, %c0_32] : memref<2x1x32xf32, #tpu.memory_space<vmem>>, vector<1x1x32xf32>
    %68 = vector.shape_cast %67 : vector<1x1x32xf32> to vector<1x32xf32>
    %c0_33 = arith.constant 0 : index
    %c0_34 = arith.constant 0 : index
    %c0_35 = arith.constant 0 : index
    %69 = vector.load %arg7[%c0_33, %c0_34, %c0_35] : memref<2x1x32xf32, #tpu.memory_space<vmem>>, vector<1x1x32xf32>
    %70 = vector.shape_cast %69 : vector<1x1x32xf32> to vector<1x32xf32>
    %cst_36 = arith.constant dense<0.000000e+00> : vector<16xf32>
    %71 = vector.multi_reduction <add>, %66, %cst_36 [1] : vector<16x32xf32> to vector<16xf32>
    %72 = vector.shape_cast %71 : vector<16xf32> to vector<16x1xf32>
    %cst_37 = arith.constant 3.200000e+01 : f32
    %73 = vector.broadcast %cst_37 : f32 to vector<16x1xf32>
    %74 = arith.divf %72, %73 : vector<16x1xf32>
    %75 = vector.broadcast %74 : vector<16x1xf32> to vector<16x32xf32>
    %76 = arith.subf %66, %75 : vector<16x32xf32>
    %77 = vector.broadcast %74 : vector<16x1xf32> to vector<16x32xf32>
    %78 = arith.subf %66, %77 : vector<16x32xf32>
    %79 = arith.mulf %76, %78 : vector<16x32xf32>
    %cst_38 = arith.constant dense<0.000000e+00> : vector<16xf32>
    %80 = vector.multi_reduction <add>, %79, %cst_38 [1] : vector<16x32xf32> to vector<16xf32>
    %81 = vector.shape_cast %80 : vector<16xf32> to vector<16x1xf32>
    %cst_39 = arith.constant 3.200000e+01 : f32
    %82 = vector.broadcast %cst_39 : f32 to vector<16x1xf32>
    %83 = arith.divf %81, %82 : vector<16x1xf32>
    %84 = vector.broadcast %74 : vector<16x1xf32> to vector<16x32xf32>
    %85 = arith.subf %66, %84 : vector<16x32xf32>
    %cst_40 = arith.constant 9.99999974E-6 : f32
    %86 = vector.broadcast %cst_40 : f32 to vector<16x1xf32>
    %87 = arith.addf %83, %86 : vector<16x1xf32>
    %88 = math.rsqrt %87 : vector<16x1xf32>
    %89 = vector.broadcast %88 : vector<16x1xf32> to vector<16x32xf32>
    %90 = arith.mulf %85, %89 : vector<16x32xf32>
    %91 = vector.broadcast %68 : vector<1x32xf32> to vector<16x32xf32>
    %92 = arith.mulf %90, %91 : vector<16x32xf32>
    %93 = vector.broadcast %70 : vector<1x32xf32> to vector<16x32xf32>
    %94 = arith.addf %92, %93 : vector<16x32xf32>
    %c0_41 = arith.constant 0 : index
    %c0_42 = arith.constant 0 : index
    %c0_43 = arith.constant 0 : index
    %95 = vector.load %arg8[%c0_41, %c0_42, %c0_43] : memref<2x32x64xf32, #tpu.memory_space<vmem>>, vector<1x32x64xf32>
    %96 = vector.shape_cast %95 : vector<1x32x64xf32> to vector<32x64xf32>
    %cst_44 = arith.constant dense<0.000000e+00> : vector<16x64xf32>
    %97 = tpu.matmul %94, %96, %cst_44 {dimension_numbers = #tpu.dot_dimension_numbers<[1], [0], [0], [1], [0, 0, 1, 1], [], []>} : vector<16x32xf32>, vector<32x64xf32>, vector<16x64xf32> -> vector<16x64xf32>
    %c0_45 = arith.constant 0 : index
    %c0_46 = arith.constant 0 : index
    %c0_47 = arith.constant 0 : index
    %98 = vector.load %arg9[%c0_45, %c0_46, %c0_47] : memref<2x1x64xf32, #tpu.memory_space<vmem>>, vector<1x1x64xf32>
    %99 = vector.shape_cast %98 : vector<1x1x64xf32> to vector<1x64xf32>
    %100 = vector.broadcast %99 : vector<1x64xf32> to vector<16x64xf32>
    %101 = arith.addf %97, %100 : vector<16x64xf32>
    %cst_48 = arith.constant 5.000000e-01 : f32
    %102 = vector.broadcast %cst_48 : f32 to vector<16x64xf32>
    %103 = arith.mulf %102, %101 : vector<16x64xf32>
    %cst_49 = arith.constant 0.707106769 : f32
    %104 = vector.broadcast %cst_49 : f32 to vector<16x64xf32>
    %105 = arith.mulf %101, %104 : vector<16x64xf32>
    %106 = math.erf %105 : vector<16x64xf32>
    %cst_50 = arith.constant 1.000000e+00 : f32
    %107 = vector.broadcast %cst_50 : f32 to vector<16x64xf32>
    %108 = arith.addf %107, %106 : vector<16x64xf32>
    %109 = arith.mulf %103, %108 : vector<16x64xf32>
    %c0_51 = arith.constant 0 : index
    %c0_52 = arith.constant 0 : index
    %c0_53 = arith.constant 0 : index
    %110 = vector.load %arg10[%c0_51, %c0_52, %c0_53] : memref<2x64x32xf32, #tpu.memory_space<vmem>>, vector<1x64x32xf32>
    %111 = vector.shape_cast %110 : vector<1x64x32xf32> to vector<64x32xf32>
    %cst_54 = arith.constant dense<0.000000e+00> : vector<16x32xf32>
    %112 = tpu.matmul %109, %111, %cst_54 {dimension_numbers = #tpu.dot_dimension_numbers<[1], [0], [0], [1], [0, 0, 1, 1], [], []>} : vector<16x64xf32>, vector<64x32xf32>, vector<16x32xf32> -> vector<16x32xf32>
    %113 = arith.addf %66, %112 : vector<16x32xf32>
    %c0_55 = arith.constant 0 : index
    %c0_56 = arith.constant 0 : index
    %c0_57 = arith.constant 0 : index
    %114 = vector.load %arg11[%c0_55, %c0_56, %c0_57] : memref<2x1x32xf32, #tpu.memory_space<vmem>>, vector<1x1x32xf32>
    %115 = vector.shape_cast %114 : vector<1x1x32xf32> to vector<1x32xf32>
    %116 = vector.broadcast %115 : vector<1x32xf32> to vector<16x32xf32>
    %117 = arith.addf %113, %116 : vector<16x32xf32>
    %c1 = arith.constant 1 : index
    %c0_58 = arith.constant 0 : index
    %c0_59 = arith.constant 0 : index
    %118 = vector.load %arg1[%c1, %c0_58, %c0_59] : memref<2x1x32xf32, #tpu.memory_space<vmem>>, vector<1x1x32xf32>
    %119 = vector.shape_cast %118 : vector<1x1x32xf32> to vector<1x32xf32>
    %c1_60 = arith.constant 1 : index
    %c0_61 = arith.constant 0 : index
    %c0_62 = arith.constant 0 : index
    %120 = vector.load %arg2[%c1_60, %c0_61, %c0_62] : memref<2x1x32xf32, #tpu.memory_space<vmem>>, vector<1x1x32xf32>
    %121 = vector.shape_cast %120 : vector<1x1x32xf32> to vector<1x32xf32>
    %cst_63 = arith.constant dense<0.000000e+00> : vector<16xf32>
    %122 = vector.multi_reduction <add>, %117, %cst_63 [1] : vector<16x32xf32> to vector<16xf32>
    %123 = vector.shape_cast %122 : vector<16xf32> to vector<16x1xf32>
    %cst_64 = arith.constant 3.200000e+01 : f32
    %124 = vector.broadcast %cst_64 : f32 to vector<16x1xf32>
    %125 = arith.divf %123, %124 : vector<16x1xf32>
    %126 = vector.broadcast %125 : vector<16x1xf32> to vector<16x32xf32>
    %127 = arith.subf %117, %126 : vector<16x32xf32>
    %128 = vector.broadcast %125 : vector<16x1xf32> to vector<16x32xf32>
    %129 = arith.subf %117, %128 : vector<16x32xf32>
    %130 = arith.mulf %127, %129 : vector<16x32xf32>
    %cst_65 = arith.constant dense<0.000000e+00> : vector<16xf32>
    %131 = vector.multi_reduction <add>, %130, %cst_65 [1] : vector<16x32xf32> to vector<16xf32>
    %132 = vector.shape_cast %131 : vector<16xf32> to vector<16x1xf32>
    %cst_66 = arith.constant 3.200000e+01 : f32
    %133 = vector.broadcast %cst_66 : f32 to vector<16x1xf32>
    %134 = arith.divf %132, %133 : vector<16x1xf32>
    %135 = vector.broadcast %125 : vector<16x1xf32> to vector<16x32xf32>
    %136 = arith.subf %117, %135 : vector<16x32xf32>
    %cst_67 = arith.constant 9.99999974E-6 : f32
    %137 = vector.broadcast %cst_67 : f32 to vector<16x1xf32>
    %138 = arith.addf %134, %137 : vector<16x1xf32>
    %139 = math.rsqrt %138 : vector<16x1xf32>
    %140 = vector.broadcast %139 : vector<16x1xf32> to vector<16x32xf32>
    %141 = arith.mulf %136, %140 : vector<16x32xf32>
    %142 = vector.broadcast %119 : vector<1x32xf32> to vector<16x32xf32>
    %143 = arith.mulf %141, %142 : vector<16x32xf32>
    %144 = vector.broadcast %121 : vector<1x32xf32> to vector<16x32xf32>
    %145 = arith.addf %143, %144 : vector<16x32xf32>
    %146 = vector.shape_cast %145 : vector<16x32xf32> to vector<1x16x32xf32>
    %147 = vector.shape_cast %146 : vector<1x16x32xf32> to vector<1x16x32xf32>
    %148 = vector.broadcast %147 : vector<1x16x32xf32> to vector<12x16x32xf32>
    %c1_68 = arith.constant 1 : index
    %c0_69 = arith.constant 0 : index
    %c0_70 = arith.constant 0 : index
    %c0_71 = arith.constant 0 : index
    %149 = vector.load %arg3[%c1_68, %c0_69, %c0_70, %c0_71] : memref<2x12x32x8xf32, #tpu.memory_space<vmem>>, vector<1x12x32x8xf32>
    %150 = vector.shape_cast %149 : vector<1x12x32x8xf32> to vector<12x32x8xf32>
    "tpu.trace_start"() <{level = 10 : i32, message = "znd,zdk->znk"}> : () -> ()
    %cst_72 = arith.constant dense<0.000000e+00> : vector<12x16x8xf32>
    %151 = tpu.matmul %148, %150, %cst_72 {dimension_numbers = #tpu.dot_dimension_numbers<[2], [1], [1], [2], [0, 0, 0, 1, 1, 2], [0], [0]>} : vector<12x16x32xf32>, vector<12x32x8xf32>, vector<12x16x8xf32> -> vector<12x16x8xf32>
    "tpu.trace_stop"() : () -> ()
    %152 = vector.extract_strided_slice %151 {offsets = [0, 0, 0], sizes = [4, 16, 8], strides = [1, 1, 1]} : vector<12x16x8xf32> to vector<4x16x8xf32>
    %153 = vector.extract_strided_slice %151 {offsets = [4, 0, 0], sizes = [4, 16, 8], strides = [1, 1, 1]} : vector<12x16x8xf32> to vector<4x16x8xf32>
    %154 = vector.extract_strided_slice %151 {offsets = [8, 0, 0], sizes = [4, 16, 8], strides = [1, 1, 1]} : vector<12x16x8xf32> to vector<4x16x8xf32>
    %155 = vector.shape_cast %152 : vector<4x16x8xf32> to vector<8x8x8xf32>
    %156 = vector.shape_cast %153 : vector<4x16x8xf32> to vector<8x8x8xf32>
    %157 = vector.shape_cast %154 : vector<4x16x8xf32> to vector<8x8x8xf32>
    "tpu.trace_start"() <{level = 10 : i32, message = "znd,zmd->znm"}> : () -> ()
    %cst_73 = arith.constant dense<0.000000e+00> : vector<8x8x8xf32>
    %158 = tpu.matmul %155, %156, %cst_73 {dimension_numbers = #tpu.dot_dimension_numbers<[2], [2], [1], [1], [0, 0, 0, 1, 1, 1], [0], [0]>} : vector<8x8x8xf32>, vector<8x8x8xf32>, vector<8x8x8xf32> -> vector<8x8x8xf32>
    "tpu.trace_stop"() : () -> ()
    %cst_74 = arith.constant dense<0xFF800000> : vector<8x8xf32>
    %159 = vector.multi_reduction <maximumf>, %158, %cst_74 [2] : vector<8x8x8xf32> to vector<8x8xf32>
    %160 = vector.shape_cast %159 : vector<8x8xf32> to vector<8x8x1xf32>
    %161 = vector.broadcast %160 : vector<8x8x1xf32> to vector<8x8x8xf32>
    %162 = arith.subf %158, %161 : vector<8x8x8xf32>
    %163 = math.exp %162 : vector<8x8x8xf32>
    %cst_75 = arith.constant dense<0.000000e+00> : vector<8x8xf32>
    %164 = vector.multi_reduction <add>, %163, %cst_75 [2] : vector<8x8x8xf32> to vector<8x8xf32>
    %165 = vector.shape_cast %164 : vector<8x8xf32> to vector<8x8x1xf32>
    %166 = tpu.reciprocal %165 {approx = true} : vector<8x8x1xf32> -> vector<8x8x1xf32>
    %167 = arith.mulf %165, %166 : vector<8x8x1xf32>
    %cst_76 = arith.constant 2.000000e+00 : f32
    %168 = vector.broadcast %cst_76 : f32 to vector<8x8x1xf32>
    %169 = arith.subf %168, %167 : vector<8x8x1xf32>
    %170 = arith.mulf %166, %169 : vector<8x8x1xf32>
    %171 = vector.broadcast %170 : vector<8x8x1xf32> to vector<8x8x8xf32>
    %172 = arith.mulf %163, %171 : vector<8x8x8xf32>
    "tpu.trace_start"() <{level = 10 : i32, message = "znm,zmd->znd"}> : () -> ()
    %cst_77 = arith.constant dense<0.000000e+00> : vector<8x8x8xf32>
    %173 = tpu.matmul %172, %157, %cst_77 {dimension_numbers = #tpu.dot_dimension_numbers<[2], [1], [1], [2], [0, 0, 0, 1, 1, 2], [0], [0]>} : vector<8x8x8xf32>, vector<8x8x8xf32>, vector<8x8x8xf32> -> vector<8x8x8xf32>
    "tpu.trace_stop"() : () -> ()
    %174 = vector.shape_cast %173 : vector<8x8x8xf32> to vector<4x16x8xf32>
    %c1_78 = arith.constant 1 : index
    %c0_79 = arith.constant 0 : index
    %c0_80 = arith.constant 0 : index
    %c0_81 = arith.constant 0 : index
    %175 = vector.load %arg4[%c1_78, %c0_79, %c0_80, %c0_81] : memref<2x4x8x32xf32, #tpu.memory_space<vmem>>, vector<1x4x8x32xf32>
    %176 = vector.shape_cast %175 : vector<1x4x8x32xf32> to vector<4x8x32xf32>
    "tpu.trace_start"() <{level = 10 : i32, message = "hnd,hdk->hnk"}> : () -> ()
    %cst_82 = arith.constant dense<0.000000e+00> : vector<4x16x32xf32>
    %177 = tpu.matmul %174, %176, %cst_82 {dimension_numbers = #tpu.dot_dimension_numbers<[2], [1], [1], [2], [0, 0, 0, 1, 1, 2], [0], [0]>} : vector<4x16x8xf32>, vector<4x8x32xf32>, vector<4x16x32xf32> -> vector<4x16x32xf32>
    "tpu.trace_stop"() : () -> ()
    %cst_83 = arith.constant dense<0.000000e+00> : vector<16x32xf32>
    %178 = vector.multi_reduction <add>, %177, %cst_83 [0] : vector<4x16x32xf32> to vector<16x32xf32>
    %179 = arith.addf %117, %178 : vector<16x32xf32>
    %c1_84 = arith.constant 1 : index
    %c0_85 = arith.constant 0 : index
    %c0_86 = arith.constant 0 : index
    %180 = vector.load %arg5[%c1_84, %c0_85, %c0_86] : memref<2x1x32xf32, #tpu.memory_space<vmem>>, vector<1x1x32xf32>
    %181 = vector.shape_cast %180 : vector<1x1x32xf32> to vector<1x32xf32>
    %182 = vector.broadcast %181 : vector<1x32xf32> to vector<16x32xf32>
    %183 = arith.addf %179, %182 : vector<16x32xf32>
    %c1_87 = arith.constant 1 : index
    %c0_88 = arith.constant 0 : index
    %c0_89 = arith.constant 0 : index
    %184 = vector.load %arg6[%c1_87, %c0_88, %c0_89] : memref<2x1x32xf32, #tpu.memory_space<vmem>>, vector<1x1x32xf32>
    %185 = vector.shape_cast %184 : vector<1x1x32xf32> to vector<1x32xf32>
    %c1_90 = arith.constant 1 : index
    %c0_91 = arith.constant 0 : index
    %c0_92 = arith.constant 0 : index
    %186 = vector.load %arg7[%c1_90, %c0_91, %c0_92] : memref<2x1x32xf32, #tpu.memory_space<vmem>>, vector<1x1x32xf32>
    %187 = vector.shape_cast %186 : vector<1x1x32xf32> to vector<1x32xf32>
    %cst_93 = arith.constant dense<0.000000e+00> : vector<16xf32>
    %188 = vector.multi_reduction <add>, %183, %cst_93 [1] : vector<16x32xf32> to vector<16xf32>
    %189 = vector.shape_cast %188 : vector<16xf32> to vector<16x1xf32>
    %cst_94 = arith.constant 3.200000e+01 : f32
    %190 = vector.broadcast %cst_94 : f32 to vector<16x1xf32>
    %191 = arith.divf %189, %190 : vector<16x1xf32>
    %192 = vector.broadcast %191 : vector<16x1xf32> to vector<16x32xf32>
    %193 = arith.subf %183, %192 : vector<16x32xf32>
    %194 = vector.broadcast %191 : vector<16x1xf32> to vector<16x32xf32>
    %195 = arith.subf %183, %194 : vector<16x32xf32>
    %196 = arith.mulf %193, %195 : vector<16x32xf32>
    %cst_95 = arith.constant dense<0.000000e+00> : vector<16xf32>
    %197 = vector.multi_reduction <add>, %196, %cst_95 [1] : vector<16x32xf32> to vector<16xf32>
    %198 = vector.shape_cast %197 : vector<16xf32> to vector<16x1xf32>
    %cst_96 = arith.constant 3.200000e+01 : f32
    %199 = vector.broadcast %cst_96 : f32 to vector<16x1xf32>
    %200 = arith.divf %198, %199 : vector<16x1xf32>
    %201 = vector.broadcast %191 : vector<16x1xf32> to vector<16x32xf32>
    %202 = arith.subf %183, %201 : vector<16x32xf32>
    %cst_97 = arith.constant 9.99999974E-6 : f32
    %203 = vector.broadcast %cst_97 : f32 to vector<16x1xf32>
    %204 = arith.addf %200, %203 : vector<16x1xf32>
    %205 = math.rsqrt %204 : vector<16x1xf32>
    %206 = vector.broadcast %205 : vector<16x1xf32> to vector<16x32xf32>
    %207 = arith.mulf %202, %206 : vector<16x32xf32>
    %208 = vector.broadcast %185 : vector<1x32xf32> to vector<16x32xf32>
    %209 = arith.mulf %207, %208 : vector<16x32xf32>
    %210 = vector.broadcast %187 : vector<1x32xf32> to vector<16x32xf32>
    %211 = arith.addf %209, %210 : vector<16x32xf32>
    %c1_98 = arith.constant 1 : index
    %c0_99 = arith.constant 0 : index
    %c0_100 = arith.constant 0 : index
    %212 = vector.load %arg8[%c1_98, %c0_99, %c0_100] : memref<2x32x64xf32, #tpu.memory_space<vmem>>, vector<1x32x64xf32>
    %213 = vector.shape_cast %212 : vector<1x32x64xf32> to vector<32x64xf32>
    %cst_101 = arith.constant dense<0.000000e+00> : vector<16x64xf32>
    %214 = tpu.matmul %211, %213, %cst_101 {dimension_numbers = #tpu.dot_dimension_numbers<[1], [0], [0], [1], [0, 0, 1, 1], [], []>} : vector<16x32xf32>, vector<32x64xf32>, vector<16x64xf32> -> vector<16x64xf32>
    %c1_102 = arith.constant 1 : index
    %c0_103 = arith.constant 0 : index
    %c0_104 = arith.constant 0 : index
    %215 = vector.load %arg9[%c1_102, %c0_103, %c0_104] : memref<2x1x64xf32, #tpu.memory_space<vmem>>, vector<1x1x64xf32>
    %216 = vector.shape_cast %215 : vector<1x1x64xf32> to vector<1x64xf32>
    %217 = vector.broadcast %216 : vector<1x64xf32> to vector<16x64xf32>
    %218 = arith.addf %214, %217 : vector<16x64xf32>
    %cst_105 = arith.constant 5.000000e-01 : f32
    %219 = vector.broadcast %cst_105 : f32 to vector<16x64xf32>
    %220 = arith.mulf %219, %218 : vector<16x64xf32>
    %cst_106 = arith.constant 0.707106769 : f32
    %221 = vector.broadcast %cst_106 : f32 to vector<16x64xf32>
    %222 = arith.mulf %218, %221 : vector<16x64xf32>
    %223 = math.erf %222 : vector<16x64xf32>
    %cst_107 = arith.constant 1.000000e+00 : f32
    %224 = vector.broadcast %cst_107 : f32 to vector<16x64xf32>
    %225 = arith.addf %224, %223 : vector<16x64xf32>
    %226 = arith.mulf %220, %225 : vector<16x64xf32>
    %c1_108 = arith.constant 1 : index
    %c0_109 = arith.constant 0 : index
    %c0_110 = arith.constant 0 : index
    %227 = vector.load %arg10[%c1_108, %c0_109, %c0_110] : memref<2x64x32xf32, #tpu.memory_space<vmem>>, vector<1x64x32xf32>
    %228 = vector.shape_cast %227 : vector<1x64x32xf32> to vector<64x32xf32>
    %cst_111 = arith.constant dense<0.000000e+00> : vector<16x32xf32>
    %229 = tpu.matmul %226, %228, %cst_111 {dimension_numbers = #tpu.dot_dimension_numbers<[1], [0], [0], [1], [0, 0, 1, 1], [], []>} : vector<16x64xf32>, vector<64x32xf32>, vector<16x32xf32> -> vector<16x32xf32>
    %230 = arith.addf %183, %229 : vector<16x32xf32>
    %c1_112 = arith.constant 1 : index
    %c0_113 = arith.constant 0 : index
    %c0_114 = arith.constant 0 : index
    %231 = vector.load %arg11[%c1_112, %c0_113, %c0_114] : memref<2x1x32xf32, #tpu.memory_space<vmem>>, vector<1x1x32xf32>
    %232 = vector.shape_cast %231 : vector<1x1x32xf32> to vector<1x32xf32>
    %233 = vector.broadcast %232 : vector<1x32xf32> to vector<16x32xf32>
    %234 = arith.addf %230, %233 : vector<16x32xf32>
    %c0_115 = arith.constant 0 : index
    %c0_116 = arith.constant 0 : index
    %235 = vector.load %arg12[%c0_115, %c0_116] : memref<1x32xf32, #tpu.memory_space<vmem>>, vector<1x32xf32>
    %c0_117 = arith.constant 0 : index
    %c0_118 = arith.constant 0 : index
    %236 = vector.load %arg13[%c0_117, %c0_118] : memref<1x32xf32, #tpu.memory_space<vmem>>, vector<1x32xf32>
    %cst_119 = arith.constant dense<0.000000e+00> : vector<16xf32>
    %237 = vector.multi_reduction <add>, %234, %cst_119 [1] : vector<16x32xf32> to vector<16xf32>
    %238 = vector.shape_cast %237 : vector<16xf32> to vector<16x1xf32>
    %cst_120 = arith.constant 3.200000e+01 : f32
    %239 = vector.broadcast %cst_120 : f32 to vector<16x1xf32>
    %240 = arith.divf %238, %239 : vector<16x1xf32>
    %241 = vector.broadcast %240 : vector<16x1xf32> to vector<16x32xf32>
    %242 = arith.subf %234, %241 : vector<16x32xf32>
    %243 = vector.broadcast %240 : vector<16x1xf32> to vector<16x32xf32>
    %244 = arith.subf %234, %243 : vector<16x32xf32>
    %245 = arith.mulf %242, %244 : vector<16x32xf32>
    %cst_121 = arith.constant dense<0.000000e+00> : vector<16xf32>
    %246 = vector.multi_reduction <add>, %245, %cst_121 [1] : vector<16x32xf32> to vector<16xf32>
    %247 = vector.shape_cast %246 : vector<16xf32> to vector<16x1xf32>
    %cst_122 = arith.constant 3.200000e+01 : f32
    %248 = vector.broadcast %cst_122 : f32 to vector<16x1xf32>
    %249 = arith.divf %247, %248 : vector<16x1xf32>
    %250 = vector.broadcast %240 : vector<16x1xf32> to vector<16x32xf32>
    %251 = arith.subf %234, %250 : vector<16x32xf32>
    %cst_123 = arith.constant 9.99999974E-6 : f32
    %252 = vector.broadcast %cst_123 : f32 to vector<16x1xf32>
    %253 = arith.addf %249, %252 : vector<16x1xf32>
    %254 = math.rsqrt %253 : vector<16x1xf32>
    %255 = vector.broadcast %254 : vector<16x1xf32> to vector<16x32xf32>
    %256 = arith.mulf %251, %255 : vector<16x32xf32>
    %257 = vector.broadcast %235 : vector<1x32xf32> to vector<16x32xf32>
    %258 = arith.mulf %256, %257 : vector<16x32xf32>
    %259 = vector.broadcast %236 : vector<1x32xf32> to vector<16x32xf32>
    %260 = arith.addf %258, %259 : vector<16x32xf32>
    %c0_124 = arith.constant 0 : index
    %c0_125 = arith.constant 0 : index
    %261 = vector.load %arg14[%c0_124, %c0_125] : memref<16x32xf32, #tpu.memory_space<vmem>>, vector<16x32xf32>
    tpu.vector_store %arg14[%c0_124, %c0_125], %260 {strides = array<i32>} : memref<16x32xf32, #tpu.memory_space<vmem>>, vector<16x32xf32>,
    return
  }
}

</mosaic_0001>

<llo_original>
// kernel: transformer_forward.1
$region0: #{transformer_forward.1}
  #allocation0 [shape = 'u32[]', space=smem, size = 0x4, offset = 0x4, fixed_abs, tag = 'smem constant byte address 0x4 - core index']
  #allocation1 [shape = 'u32[144,128]{1,0:T(1,128)}', space=vmem, size = 0x12000, scoped, tag = 'internal scratch']
  %s0 = inlined_call_operand.vmem [shape: f32[16,32], index: 0, kind: input, shape index: {}]
  %s1 = inlined_call_operand.vmem [shape: f32[2,1,32], index: 1, kind: input, shape index: {}]
  %s2 = inlined_call_operand.vmem [shape: f32[2,1,32], index: 2, kind: input, shape index: {}]
  %s3 = inlined_call_operand.vmem [shape: f32[2,12,32,8], index: 3, kind: input, shape index: {}]
  %s4 = inlined_call_operand.vmem [shape: f32[2,4,8,32], index: 4, kind: input, shape index: {}]
  %s5 = inlined_call_operand.vmem [shape: f32[2,1,32], index: 5, kind: input, shape index: {}]
  %s6 = inlined_call_operand.vmem [shape: f32[2,1,32], index: 6, kind: input, shape index: {}]
  %s7 = inlined_call_operand.vmem [shape: f32[2,1,32], index: 7, kind: input, shape index: {}]
  %s8 = inlined_call_operand.vmem [shape: f32[2,32,64], index: 8, kind: input, shape index: {}]
  %s9 = inlined_call_operand.vmem [shape: f32[2,1,64], index: 9, kind: input, shape index: {}]
  %s10 = inlined_call_operand.vmem [shape: f32[2,64,32], index: 10, kind: input, shape index: {}]
  %s11 = inlined_call_operand.vmem [shape: f32[2,1,32], index: 11, kind: input, shape index: {}]
  %s12 = inlined_call_operand.vmem [shape: f32[1,32], index: 12, kind: input, shape index: {}]
  %s13 = inlined_call_operand.vmem [shape: f32[1,32], index: 13, kind: input, shape index: {}]
  %s14 = inlined_call_operand.hbm [shape: f32[16,32], index: 14, kind: output, shape index: {}]
  %s15 = sld [smem:[#allocation0]]
  $region66: #{transformer_forward.1} parent=0
    _
  %s17 = ssub.s32 1, %s15
  %s18 = scalar_select 0, %s17, %s15
  $region1: #{transformer_forward.1} parent=0
    #allocation2 [shape = 'u8[8192]{0}', space=vmem, size = 0x2000, scoped, tag = 'output window, operand 0, single buffered']
    #allocation3 [shape = 's32[1]{0}', space=sflag, size = 0x4, scoped, tag = 'scoped memory for transformer_forward.1']
    %19 = vsyncpa [#allocation3], 0
    // Predicated region
    $region2: #{transformer_forward.1} parent=1 // pred_check
      _
    $region3: #{transformer_forward.1} parent=1 // pred_check_branch
      %21 = sbr.rel (0) target = $region5
    $region4: #{transformer_forward.1} parent=1 // pred_region
      _
    $region5: #{transformer_forward.1} parent=1 // pred_fallthru
      _
    // Predicated region
    $region6: #{transformer_forward.1} parent=1 // pred_check
      _
    $region7: #{transformer_forward.1} parent=1 // pred_check_branch
      %23 = sbr.rel (0) target = $region9
    $region8: #{transformer_forward.1} parent=1 // pred_region
      _
    $region9: #{transformer_forward.1} parent=1 // pred_fallthru
      _
    // Predicated region
    $region10: #{transformer_forward.1} parent=1 // pred_check
      _
    $region11: #{transformer_forward.1} parent=1 // pred_check_branch
      %25 = sbr.rel (0) target = $region13
    $region12: #{transformer_forward.1} parent=1 // pred_region
      _
    $region13: #{transformer_forward.1} parent=1 // pred_fallthru
      _
    // Predicated region
    $region14: #{transformer_forward.1} parent=1 // pred_check
      _
    $region15: #{transformer_forward.1} parent=1 // pred_check_branch
      %27 = sbr.rel (0) target = $region17
    $region16: #{transformer_forward.1} parent=1 // pred_region
      _
    $region17: #{transformer_forward.1} parent=1 // pred_fallthru
      _
    // Predicated region
    $region18: #{transformer_forward.1} parent=1 // pred_check
      _
    $region19: #{transformer_forward.1} parent=1 // pred_check_branch
      %29 = sbr.rel (0) target = $region21
    $region20: #{transformer_forward.1} parent=1 // pred_region
      _
    $region21: #{transformer_forward.1} parent=1 // pred_fallthru
      _
    // Predicated region
    $region22: #{transformer_forward.1} parent=1 // pred_check
      _
    $region23: #{transformer_forward.1} parent=1 // pred_check_branch
      %31 = sbr.rel (0) target = $region25
    $region24: #{transformer_forward.1} parent=1 // pred_region
      _
    $region25: #{transformer_forward.1} parent=1 // pred_fallthru
      _
    // Predicated region
    $region26: #{transformer_forward.1} parent=1 // pred_check
      _
    $region27: #{transformer_forward.1} parent=1 // pred_check_branch
      %33 = sbr.rel (0) target = $region29
    $region28: #{transformer_forward.1} parent=1 // pred_region
      _
    $region29: #{transformer_forward.1} parent=1 // pred_fallthru
      _
    // Predicated region
    $region30: #{transformer_forward.1} parent=1 // pred_check
      _
    $region31: #{transformer_forward.1} parent=1 // pred_check_branch
      %35 = sbr.rel (0) target = $region33
    $region32: #{transformer_forward.1} parent=1 // pred_region
      _
    $region33: #{transformer_forward.1} parent=1 // pred_fallthru
      _
    // Predicated region
    $region34: #{transformer_forward.1} parent=1 // pred_check
      _
    $region35: #{transformer_forward.1} parent=1 // pred_check_branch
      %37 = sbr.rel (0) target = $region37
    $region36: #{transformer_forward.1} parent=1 // pred_region
      _
    $region37: #{transformer_forward.1} parent=1 // pred_fallthru
      _
    // Predicated region
    $region38: #{transformer_forward.1} parent=1 // pred_check
      _
    $region39: #{transformer_forward.1} parent=1 // pred_check_branch
      %39 = sbr.rel (0) target = $region41
    $region40: #{transformer_forward.1} parent=1 // pred_region
      _
    $region41: #{transformer_forward.1} parent=1 // pred_fallthru
      _
    // Predicated region
    $region42: #{transformer_forward.1} parent=1 // pred_check
      _
    $region43: #{transformer_forward.1} parent=1 // pred_check_branch
      %41 = sbr.rel (0) target = $region45
    $region44: #{transformer_forward.1} parent=1 // pred_region
      _
    $region45: #{transformer_forward.1} parent=1 // pred_fallthru
      _
    // Predicated region
    $region46: #{transformer_forward.1} parent=1 // pred_check
      _
    $region47: #{transformer_forward.1} parent=1 // pred_check_branch
      %43 = sbr.rel (0) target = $region49
    $region48: #{transformer_forward.1} parent=1 // pred_region
      _
    $region49: #{transformer_forward.1} parent=1 // pred_fallthru
      _
    // Predicated region
    $region50: #{transformer_forward.1} parent=1 // pred_check
      _
    $region51: #{transformer_forward.1} parent=1 // pred_check_branch
      %45 = sbr.rel (0) target = $region53
    $region52: #{transformer_forward.1} parent=1 // pred_region
      _
    $region53: #{transformer_forward.1} parent=1 // pred_fallthru
      _
    // Predicated region
    $region54: #{transformer_forward.1} parent=1 // pred_check
      _
    $region55: #{transformer_forward.1} parent=1 // pred_check_branch
      %47 = sbr.rel (0) target = $region57
    $region56: #{transformer_forward.1} parent=1 // pred_region
      _
    $region57: #{transformer_forward.1} parent=1 // pred_fallthru
      _
    %v48 = vld [vmem:[%s0] sm:$0xff]
    %v49 = vld [vmem:[%s0 + $0x8] sm:$0xff]
    %v50 = vld [vmem:[%s1] sm:$0x1]
    %v51 = vld [vmem:[%s2] sm:$0x1]
    %vm52 = vcmask 261120
    %v53 = vsel %vm52, %v48, 0.0
    %54 = vadd.xlane.f32.xlu0 %v53
    %v55 = vpop.xlane.xlu0 %54
    %v56 = vsel %vm52, %v49, 0.0
    %57 = vadd.xlane.f32.xlu0 %v56
    %v58 = vpop.xlane.xlu0 %57
    %v59 = vrcp.pop 32.0
    %v60 = vmul.f32 %v55, %v59
    %v61 = vmul.f32 %v58, %v59
    %v62 = vsub.f32 %v48, %v60
    %v63 = vsub.f32 %v49, %v61
    %v64 = vmul.f32 %v62, %v62
    %v65 = vmul.f32 %v63, %v63
    %v66 = vsel %vm52, %v64, 0.0
    %67 = vadd.xlane.f32.xlu0 %v66
    %v68 = vpop.xlane.xlu0 %67
    %v69 = vsel %vm52, %v65, 0.0
    %70 = vadd.xlane.f32.xlu0 %v69
    %v71 = vpop.xlane.xlu0 %70
    %v72 = vmul.f32 %v68, %v59
    %v73 = vmul.f32 %v71, %v59
    %v74 = vadd.f32 %v72, 1e-05
    %v75 = vadd.f32 %v73, 1e-05
    %v76 = vrsqrt.pop %v74
    %v77 = vrsqrt.pop %v75
    %v78 = vmul.f32 %v62, %v76
    %v79 = vmul.f32 %v63, %v77
    %v81 = vlaneseq
    %v82 = vshrl.u32 %v81, 7
    %v83 = vsub.s32 0, %v82
    %v84 = vrot.slane %v50, %v83
    %v86 = vmul.f32 %v78, %v84
    %v87 = vmul.f32 %v79, %v84
    %v89 = vlaneseq
    %v90 = vshrl.u32 %v89, 7
    %v91 = vsub.s32 0, %v90
    %v92 = vrot.slane %v51, %v91
    %v94 = vadd.f32 %v86, %v92
    %v95 = vadd.f32 %v87, %v92
    %v96 = vld [vmem:[%s3] sm:$0xff]
    %v97 = vld [vmem:[%s3 + $0x8] sm:$0xff]
    %v98 = vld [vmem:[%s3 + $0x10] sm:$0xff]
    %v99 = vld [vmem:[%s3 + $0x18] sm:$0xff]
    %v100 = vld [vmem:[%s3 + $0x20] sm:$0xff]
    %v101 = vld [vmem:[%s3 + $0x28] sm:$0xff]
    %v102 = vld [vmem:[%s3 + $0x30] sm:$0xff]
    %v103 = vld [vmem:[%s3 + $0x38] sm:$0xff]
    %v104 = vld [vmem:[%s3 + $0x40] sm:$0xff]
    %v105 = vld [vmem:[%s3 + $0x48] sm:$0xff]
    %v106 = vld [vmem:[%s3 + $0x50] sm:$0xff]
    %v107 = vld [vmem:[%s3 + $0x58] sm:$0xff]
    %v108 = vld [vmem:[%s3 + $0x60] sm:$0xff]
    %v109 = vld [vmem:[%s3 + $0x68] sm:$0xff]
    %v110 = vld [vmem:[%s3 + $0x70] sm:$0xff]
    %v111 = vld [vmem:[%s3 + $0x78] sm:$0xff]
    %v112 = vld [vmem:[%s3 + $0x80] sm:$0xff]
    %v113 = vld [vmem:[%s3 + $0x88] sm:$0xff]
    %v114 = vld [vmem:[%s3 + $0x90] sm:$0xff]
    %v115 = vld [vmem:[%s3 + $0x98] sm:$0xff]
    %v116 = vld [vmem:[%s3 + $0xa0] sm:$0xff]
    %v117 = vld [vmem:[%s3 + $0xa8] sm:$0xff]
    %v118 = vld [vmem:[%s3 + $0xb0] sm:$0xff]
    %v119 = vld [vmem:[%s3 + $0xb8] sm:$0xff]
    %v120 = vld [vmem:[%s3 + $0xc0] sm:$0xff]
    %v121 = vld [vmem:[%s3 + $0xc8] sm:$0xff]
    %v122 = vld [vmem:[%s3 + $0xd0] sm:$0xff]
    %v123 = vld [vmem:[%s3 + $0xd8] sm:$0xff]
    %v124 = vld [vmem:[%s3 + $0xe0] sm:$0xff]
    %v125 = vld [vmem:[%s3 + $0xe8] sm:$0xff]
    %v126 = vld [vmem:[%s3 + $0xf0] sm:$0xff]
    %v127 = vld [vmem:[%s3 + $0xf8] sm:$0xff]
    %v128 = vld [vmem:[%s3 + $0x100] sm:$0xff]
    %v129 = vld [vmem:[%s3 + $0x108] sm:$0xff]
    %v130 = vld [vmem:[%s3 + $0x110] sm:$0xff]
    %v131 = vld [vmem:[%s3 + $0x118] sm:$0xff]
    %v132 = vld [vmem:[%s3 + $0x120] sm:$0xff]
    %v133 = vld [vmem:[%s3 + $0x128] sm:$0xff]
    %v134 = vld [vmem:[%s3 + $0x130] sm:$0xff]
    %v135 = vld [vmem:[%s3 + $0x138] sm:$0xff]
    %v136 = vld [vmem:[%s3 + $0x140] sm:$0xff]
    %v137 = vld [vmem:[%s3 + $0x148] sm:$0xff]
    %v138 = vld [vmem:[%s3 + $0x150] sm:$0xff]
    %v139 = vld [vmem:[%s3 + $0x158] sm:$0xff]
    %v140 = vld [vmem:[%s3 + $0x160] sm:$0xff]
    %v141 = vld [vmem:[%s3 + $0x168] sm:$0xff]
    %v142 = vld [vmem:[%s3 + $0x170] sm:$0xff]
    %v143 = vld [vmem:[%s3 + $0x178] sm:$0xff]
    %v145 = vsel %vm52, %v94, 0
    %v148 = vsel %vm52, %v95, 0
    %150 = vmatprep.subr.mxu0 0.0
    %151 = vmatpush1.msra.mxu0 %v96
    %152 = vmatprep.subr.mxu0 0.0
    %153 = vmatpush1.msra.mxu0 %v97
    %154 = vmatprep.subr.mxu0 0.0
    %155 = vmatpush1.msra.mxu0 %v98
    %156 = vmatprep.subr.mxu0 0.0
    %157 = vmatpush1.msra.mxu0 %v99
    %158 = vmatprep.subr.mxu0 0.0
    %159 = vmatpush1.msra.mxu0 0.0
    %160 = vmatprep.subr.mxu0 0.0
    %161 = vmatpush1.msra.mxu0 0.0
    %162 = vmatprep.subr.mxu0 0.0
    %163 = vmatpush1.msra.mxu0 0.0
    %164 = vmatprep.subr.mxu0 0.0
    %165 = vmatpush1.msra.mxu0 0.0
    %166 = vmatprep.subr.mxu0 0.0
    %167 = vmatpush1.msra.mxu0 0.0
    %168 = vmatprep.subr.mxu0 0.0
    %169 = vmatpush1.msra.mxu0 0.0
    %170 = vmatprep.subr.mxu0 0.0
    %171 = vmatpush1.msra.mxu0 0.0
    %172 = vmatprep.subr.mxu0 0.0
    %173 = vmatpush1.msra.mxu0 0.0
    %174 = vmatprep.subr.mxu0 0.0
    %175 = vmatpush1.msra.mxu0 0.0
    %176 = vmatprep.subr.mxu0 0.0
    %177 = vmatpush1.msra.mxu0 0.0
    %178 = vmatprep.subr.mxu0 0.0
    %179 = vmatpush1.msra.mxu0 0.0
    %180 = vmatprep.subr.mxu0 0.0
    %181 = vmatpush1.msra.mxu0 0.0
    %182 = vmatprep.subr.mxu0 0.0
    %183 = vmatpush1.msra.mxu0 0.0
    %184 = vmatprep.subr.mxu0 0.0
    %185 = vmatpush1.msra.mxu0 0.0
    %186 = vmatprep.subr.mxu0 0.0
    %187 = vmatpush1.msra.mxu0 0.0
    %188 = vmatprep.subr.mxu0 0.0
    %189 = vmatpush1.msra.mxu0 0.0
    %190 = vmatprep.subr.mxu0 0.0
    %191 = vmatpush1.msra.mxu0 0.0
    %192 = vmatprep.subr.mxu0 0.0
    %193 = vmatpush1.msra.mxu0 0.0
    %194 = vmatprep.subr.mxu0 0.0
    %195 = vmatpush1.msra.mxu0 0.0
    %196 = vmatprep.subr.mxu0 0.0
    %197 = vmatpush1.msra.mxu0 0.0
    %198 = vmatprep.subr.mxu0 0.0
    %199 = vmatpush1.msra.mxu0 0.0
    %200 = vmatprep.subr.mxu0 0.0
    %201 = vmatpush1.msra.mxu0 0.0
    %202 = vmatprep.subr.mxu0 0.0
    %203 = vmatpush1.msra.mxu0 0.0
    %204 = vmatprep.subr.mxu0 0.0
    %205 = vmatpush1.msra.mxu0 0.0
    %206 = vmatprep.subr.mxu0 0.0
    %207 = vmatpush1.msra.mxu0 0.0
    %208 = vmatprep.subr.mxu0 0.0
    %209 = vmatpush1.msra.mxu0 0.0
    %210 = vmatprep.subr.mxu0 0.0
    %211 = vmatpush1.msra.mxu0 0.0
    %212 = vmatprep.subr.mxu0 0.0
    %213 = vmatpush1.msra.mxu0 0.0
    %214 = vmatprep.mubr.f32.mxu0 0.0
    %215 = vmatmul.mubr.f32.gmra.mrb[0].mxu0 %v145
    %v216 = vpop.f32.mrb[0].mxu0
    %v217 = vadd.f32 0.0, %v216
    %v218 = vpop.f32.mrb[0].mxu0
    %219 = vmatprep.mubr.f32.mxu0 0.0
    %220 = vmatmul.mubr.f32.gmra.mrb[0].mxu0 %v148
    %v221 = vpop.f32.mrb[0].mxu0
    %v222 = vadd.f32 0.0, %v221
    %v223 = vpop.f32.mrb[0].mxu0
    %224 = vdwg.mxu0
    %225 = vmatprep.subr.mxu0 0.0
    %226 = vmatpush1.msra.mxu0 %v100
    %227 = vmatprep.subr.mxu0 0.0
    %228 = vmatpush1.msra.mxu0 %v101
    %229 = vmatprep.subr.mxu0 0.0
    %230 = vmatpush1.msra.mxu0 %v102
    %231 = vmatprep.subr.mxu0 0.0
    %232 = vmatpush1.msra.mxu0 %v103
    %233 = vmatprep.subr.mxu0 0.0
    %234 = vmatpush1.msra.mxu0 0.0
    %235 = vmatprep.subr.mxu0 0.0
    %236 = vmatpush1.msra.mxu0 0.0
    %237 = vmatprep.subr.mxu0 0.0
    %238 = vmatpush1.msra.mxu0 0.0
    %239 = vmatprep.subr.mxu0 0.0
    %240 = vmatpush1.msra.mxu0 0.0
    %241 = vmatprep.subr.mxu0 0.0
    %242 = vmatpush1.msra.mxu0 0.0
    %243 = vmatprep.subr.mxu0 0.0
    %244 = vmatpush1.msra.mxu0 0.0
    %245 = vmatprep.subr.mxu0 0.0
    %246 = vmatpush1.msra.mxu0 0.0
    %247 = vmatprep.subr.mxu0 0.0
    %248 = vmatpush1.msra.mxu0 0.0
    %249 = vmatprep.subr.mxu0 0.0
    %250 = vmatpush1.msra.mxu0 0.0
    %251 = vmatprep.subr.mxu0 0.0
    %252 = vmatpush1.msra.mxu0 0.0
    %253 = vmatprep.subr.mxu0 0.0
    %254 = vmatpush1.msra.mxu0 0.0
    %255 = vmatprep.subr.mxu0 0.0
    %256 = vmatpush1.msra.mxu0 0.0
    %257 = vmatprep.subr.mxu0 0.0
    %258 = vmatpush1.msra.mxu0 0.0
    %259 = vmatprep.subr.mxu0 0.0
    %260 = vmatpush1.msra.mxu0 0.0
    %261 = vmatprep.subr.mxu0 0.0
    %262 = vmatpush1.msra.mxu0 0.0
    %263 = vmatprep.subr.mxu0 0.0
    %264 = vmatpush1.msra.mxu0 0.0
    %265 = vmatprep.subr.mxu0 0.0
    %266 = vmatpush1.msra.mxu0 0.0
    %267 = vmatprep.subr.mxu0 0.0
    %268 = vmatpush1.msra.mxu0 0.0
    %269 = vmatprep.subr.mxu0 0.0
    %270 = vmatpush1.msra.mxu0 0.0
    %271 = vmatprep.subr.mxu0 0.0
    %272 = vmatpush1.msra.mxu0 0.0
    %273 = vmatprep.subr.mxu0 0.0
    %274 = vmatpush1.msra.mxu0 0.0
    %275 = vmatprep.subr.mxu0 0.0
    %276 = vmatpush1.msra.mxu0 0.0
    %277 = vmatprep.subr.mxu0 0.0
    %278 = vmatpush1.msra.mxu0 0.0
    %279 = vmatprep.subr.mxu0 0.0
    %280 = vmatpush1.msra.mxu0 0.0
    %281 = vmatprep.subr.mxu0 0.0
    %282 = vmatpush1.msra.mxu0 0.0
    %283 = vmatprep.subr.mxu0 0.0
    %284 = vmatpush1.msra.mxu0 0.0
    %285 = vmatprep.subr.mxu0 0.0
    %286 = vmatpush1.msra.mxu0 0.0
    %287 = vmatprep.subr.mxu0 0.0
    %288 = vmatpush1.msra.mxu0 0.0
    %289 = vmatprep.mubr.f32.mxu0 0.0
    %290 = vmatmul.mubr.f32.gmra.mrb[0].mxu0 %v145
    %v291 = vpop.f32.mrb[0].mxu0
    %v292 = vadd.f32 0.0, %v291
    %v293 = vpop.f32.mrb[0].mxu0
    %294 = vmatprep.mubr.f32.mxu0 0.0
    %295 = vmatmul.mubr.f32.gmra.mrb[0].mxu0 %v148
    %v296 = vpop.f32.mrb[0].mxu0
    %v297 = vadd.f32 0.0, %v296
    %v298 = vpop.f32.mrb[0].mxu0
    %299 = vdwg.mxu0
    %300 = vmatprep.subr.mxu0 0.0
    %301 = vmatpush1.msra.mxu0 %v104
    %302 = vmatprep.subr.mxu0 0.0
    %303 = vmatpush1.msra.mxu0 %v105
    %304 = vmatprep.subr.mxu0 0.0
    %305 = vmatpush1.msra.mxu0 %v106
    %306 = vmatprep.subr.mxu0 0.0
    %307 = vmatpush1.msra.mxu0 %v107
    %308 = vmatprep.subr.mxu0 0.0
    %309 = vmatpush1.msra.mxu0 0.0
    %310 = vmatprep.subr.mxu0 0.0
    %311 = vmatpush1.msra.mxu0 0.0
    %312 = vmatprep.subr.mxu0 0.0
    %313 = vmatpush1.msra.mxu0 0.0
    %314 = vmatprep.subr.mxu0 0.0
    %315 = vmatpush1.msra.mxu0 0.0
    %316 = vmatprep.subr.mxu0 0.0
    %317 = vmatpush1.msra.mxu0 0.0
    %318 = vmatprep.subr.mxu0 0.0
    %319 = vmatpush1.msra.mxu0 0.0
    %320 = vmatprep.subr.mxu0 0.0
    %321 = vmatpush1.msra.mxu0 0.0
    %322 = vmatprep.subr.mxu0 0.0
    %323 = vmatpush1.msra.mxu0 0.0
    %324 = vmatprep.subr.mxu0 0.0
    %325 = vmatpush1.msra.mxu0 0.0
    %326 = vmatprep.subr.mxu0 0.0
    %327 = vmatpush1.msra.mxu0 0.0
    %328 = vmatprep.subr.mxu0 0.0
    %329 = vmatpush1.msra.mxu0 0.0
    %330 = vmatprep.subr.mxu0 0.0
    %331 = vmatpush1.msra.mxu0 0.0
    %332 = vmatprep.subr.mxu0 0.0
    %333 = vmatpush1.msra.mxu0 0.0
    %334 = vmatprep.subr.mxu0 0.0
    %335 = vmatpush1.msra.mxu0 0.0
    %336 = vmatprep.subr.mxu0 0.0
    %337 = vmatpush1.msra.mxu0 0.0
    %338 = vmatprep.subr.mxu0 0.0
    %339 = vmatpush1.msra.mxu0 0.0
    %340 = vmatprep.subr.mxu0 0.0
    %341 = vmatpush1.msra.mxu0 0.0
    %342 = vmatprep.subr.mxu0 0.0
    %343 = vmatpush1.msra.mxu0 0.0
    %344 = vmatprep.subr.mxu0 0.0
    %345 = vmatpush1.msra.mxu0 0.0
    %346 = vmatprep.subr.mxu0 0.0
    %347 = vmatpush1.msra.mxu0 0.0
    %348 = vmatprep.subr.mxu0 0.0
    %349 = vmatpush1.msra.mxu0 0.0
    %350 = vmatprep.subr.mxu0 0.0
    %351 = vmatpush1.msra.mxu0 0.0
    %352 = vmatprep.subr.mxu0 0.0
    %353 = vmatpush1.msra.mxu0 0.0
    %354 = vmatprep.subr.mxu0 0.0
    %355 = vmatpush1.msra.mxu0 0.0
    %356 = vmatprep.subr.mxu0 0.0
    %357 = vmatpush1.msra.mxu0 0.0
    %358 = vmatprep.subr.mxu0 0.0
    %359 = vmatpush1.msra.mxu0 0.0
    %360 = vmatprep.subr.mxu0 0.0
    %361 = vmatpush1.msra.mxu0 0.0
    %362 = vmatprep.subr.mxu0 0.0
    %363 = vmatpush1.msra.mxu0 0.0
    %364 = vmatprep.mubr.f32.mxu0 0.0
    %365 = vmatmul.mubr.f32.gmra.mrb[0].mxu0 %v145
    %v366 = vpop.f32.mrb[0].mxu0
    %v367 = vadd.f32 0.0, %v366
    %v368 = vpop.f32.mrb[0].mxu0
    %369 = vmatprep.mubr.f32.mxu0 0.0
    %370 = vmatmul.mubr.f32.gmra.mrb[0].mxu0 %v148
    %v371 = vpop.f32.mrb[0].mxu0
    %v372 = vadd.f32 0.0, %v371
    %v373 = vpop.f32.mrb[0].mxu0
    %374 = vdwg.mxu0
    %375 = vmatprep.subr.mxu0 0.0
    %376 = vmatpush1.msra.mxu0 %v108
    %377 = vmatprep.subr.mxu0 0.0
    %378 = vmatpush1.msra.mxu0 %v109
    %379 = vmatprep.subr.mxu0 0.0
    %380 = vmatpush1.msra.mxu0 %v110
    %381 = vmatprep.subr.mxu0 0.0
    %382 = vmatpush1.msra.mxu0 %v111
    %383 = vmatprep.subr.mxu0 0.0
    %384 = vmatpush1.msra.mxu0 0.0
    %385 = vmatprep.subr.mxu0 0.0
    %386 = vmatpush1.msra.mxu0 0.0
    %387 = vmatprep.subr.mxu0 0.0
    %388 = vmatpush1.msra.mxu0 0.0
    %389 = vmatprep.subr.mxu0 0.0
    %390 = vmatpush1.msra.mxu0 0.0
    %391 = vmatprep.subr.mxu0 0.0
    %392 = vmatpush1.msra.mxu0 0.0
    %393 = vmatprep.subr.mxu0 0.0
    %394 = vmatpush1.msra.mxu0 0.0
    %395 = vmatprep.subr.mxu0 0.0
    %396 = vmatpush1.msra.mxu0 0.0
    %397 = vmatprep.subr.mxu0 0.0
    %398 = vmatpush1.msra.mxu0 0.0
    %399 = vmatprep.subr.mxu0 0.0
    %400 = vmatpush1.msra.mxu0 0.0
    %401 = vmatprep.subr.mxu0 0.0
    %402 = vmatpush1.msra.mxu0 0.0
    %403 = vmatprep.subr.mxu0 0.0
    %404 = vmatpush1.msra.mxu0 0.0
    %405 = vmatprep.subr.mxu0 0.0
    %406 = vmatpush1.msra.mxu0 0.0
    %407 = vmatprep.subr.mxu0 0.0
    %408 = vmatpush1.msra.mxu0 0.0
    %409 = vmatprep.subr.mxu0 0.0
    %410 = vmatpush1.msra.mxu0 0.0
    %411 = vmatprep.subr.mxu0 0.0
    %412 = vmatpush1.msra.mxu0 0.0
    %413 = vmatprep.subr.mxu0 0.0
    %414 = vmatpush1.msra.mxu0 0.0
    %415 = vmatprep.subr.mxu0 0.0
    %416 = vmatpush1.msra.mxu0 0.0
    %417 = vmatprep.subr.mxu0 0.0
    %418 = vmatpush1.msra.mxu0 0.0
    %419 = vmatprep.subr.mxu0 0.0
    %420 = vmatpush1.msra.mxu0 0.0
    %421 = vmatprep.subr.mxu0 0.0
    %422 = vmatpush1.msra.mxu0 0.0
    %423 = vmatprep.subr.mxu0 0.0
    %424 = vmatpush1.msra.mxu0 0.0
    %425 = vmatprep.subr.mxu0 0.0
    %426 = vmatpush1.msra.mxu0 0.0
    %427 = vmatprep.subr.mxu0 0.0
    %428 = vmatpush1.msra.mxu0 0.0
    %429 = vmatprep.subr.mxu0 0.0
    %430 = vmatpush1.msra.mxu0 0.0
    %431 = vmatprep.subr.mxu0 0.0
    %432 = vmatpush1.msra.mxu0 0.0
    %433 = vmatprep.subr.mxu0 0.0
    %434 = vmatpush1.msra.mxu0 0.0
    %435 = vmatprep.subr.mxu0 0.0
    %436 = vmatpush1.msra.mxu0 0.0
    %437 = vmatprep.subr.mxu0 0.0
    %438 = vmatpush1.msra.mxu0 0.0
    %439 = vmatprep.mubr.f32.mxu0 0.0
    %440 = vmatmul.mubr.f32.gmra.mrb[0].mxu0 %v145
    %v441 = vpop.f32.mrb[0].mxu0
    %v442 = vadd.f32 0.0, %v441
    %v443 = vpop.f32.mrb[0].mxu0
    %444 = vmatprep.mubr.f32.mxu0 0.0
    %445 = vmatmul.mubr.f32.gmra.mrb[0].mxu0 %v148
    %v446 = vpop.f32.mrb[0].mxu0
    %v447 = vadd.f32 0.0, %v446
    %v448 = vpop.f32.mrb[0].mxu0
    %449 = vdwg.mxu0
    %450 = vmatprep.subr.mxu0 0.0
    %451 = vmatpush1.msra.mxu0 %v112
    %452 = vmatprep.subr.mxu0 0.0
    %453 = vmatpush1.msra.mxu0 %v113
    %454 = vmatprep.subr.mxu0 0.0
    %455 = vmatpush1.msra.mxu0 %v114
    %456 = vmatprep.subr.mxu0 0.0
    %457 = vmatpush1.msra.mxu0 %v115
    %458 = vmatprep.subr.mxu0 0.0
    %459 = vmatpush1.msra.mxu0 0.0
    %460 = vmatprep.subr.mxu0 0.0
    %461 = vmatpush1.msra.mxu0 0.0
    %462 = vmatprep.subr.mxu0 0.0
    %463 = vmatpush1.msra.mxu0 0.0
    %464 = vmatprep.subr.mxu0 0.0
    %465 = vmatpush1.msra.mxu0 0.0
    %466 = vmatprep.subr.mxu0 0.0
    %467 = vmatpush1.msra.mxu0 0.0
    %468 = vmatprep.subr.mxu0 0.0
    %469 = vmatpush1.msra.mxu0 0.0
    %470 = vmatprep.subr.mxu0 0.0
    %471 = vmatpush1.msra.mxu0 0.0
    %472 = vmatprep.subr.mxu0 0.0
    %473 = vmatpush1.msra.mxu0 0.0
    %474 = vmatprep.subr.mxu0 0.0
    %475 = vmatpush1.msra.mxu0 0.0
    %476 = vmatprep.subr.mxu0 0.0
    %477 = vmatpush1.msra.mxu0 0.0
    %478 = vmatprep.subr.mxu0 0.0
    %479 = vmatpush1.msra.mxu0 0.0
    %480 = vmatprep.subr.mxu0 0.0
    %481 = vmatpush1.msra.mxu0 0.0
    %482 = vmatprep.subr.mxu0 0.0
    %483 = vmatpush1.msra.mxu0 0.0
    %484 = vmatprep.subr.mxu0 0.0
    %485 = vmatpush1.msra.mxu0 0.0
    %486 = vmatprep.subr.mxu0 0.0
    %487 = vmatpush1.msra.mxu0 0.0
    %488 = vmatprep.subr.mxu0 0.0
    %489 = vmatpush1.msra.mxu0 0.0
    %490 = vmatprep.subr.mxu0 0.0
    %491 = vmatpush1.msra.mxu0 0.0
    %492 = vmatprep.subr.mxu0 0.0
    %493 = vmatpush1.msra.mxu0 0.0
    %494 = vmatprep.subr.mxu0 0.0
    %495 = vmatpush1.msra.mxu0 0.0
    %496 = vmatprep.subr.mxu0 0.0
    %497 = vmatpush1.msra.mxu0 0.0
    %498 = vmatprep.subr.mxu0 0.0
    %499 = vmatpush1.msra.mxu0 0.0
    %500 = vmatprep.subr.mxu0 0.0
    %501 = vmatpush1.msra.mxu0 0.0
    %502 = vmatprep.subr.mxu0 0.0
    %503 = vmatpush1.msra.mxu0 0.0
    %504 = vmatprep.subr.mxu0 0.0
    %505 = vmatpush1.msra.mxu0 0.0
    %506 = vmatprep.subr.mxu0 0.0
    %507 = vmatpush1.msra.mxu0 0.0
    %508 = vmatprep.subr.mxu0 0.0
    %509 = vmatpush1.msra.mxu0 0.0
    %510 = vmatprep.subr.mxu0 0.0
    %511 = vmatpush1.msra.mxu0 0.0
    %512 = vmatprep.subr.mxu0 0.0
    %513 = vmatpush1.msra.mxu0 0.0
    %514 = vmatprep.mubr.f32.mxu0 0.0
    %515 = vmatmul.mubr.f32.gmra.mrb[0].mxu0 %v145
    %v516 = vpop.f32.mrb[0].mxu0
    %v517 = vadd.f32 0.0, %v516
    %v518 = vpop.f32.mrb[0].mxu0
    %519 = vmatprep.mubr.f32.mxu0 0.0
    %520 = vmatmul.mubr.f32.gmra.mrb[0].mxu0 %v148
    %v521 = vpop.f32.mrb[0].mxu0
    %v522 = vadd.f32 0.0, %v521
    %v523 = vpop.f32.mrb[0].mxu0
    %524 = vdwg.mxu0
    %525 = vmatprep.subr.mxu0 0.0
    %526 = vmatpush1.msra.mxu0 %v116
    %527 = vmatprep.subr.mxu0 0.0
    %528 = vmatpush1.msra.mxu0 %v117
    %529 = vmatprep.subr.mxu0 0.0
    %530 = vmatpush1.msra.mxu0 %v118
    %531 = vmatprep.subr.mxu0 0.0
    %532 = vmatpush1.msra.mxu0 %v119
    %533 = vmatprep.subr.mxu0 0.0
    %534 = vmatpush1.msra.mxu0 0.0
    %535 = vmatprep.subr.mxu0 0.0
    %536 = vmatpush1.msra.mxu0 0.0
    %537 = vmatprep.subr.mxu0 0.0
    %538 = vmatpush1.msra.mxu0 0.0
    %539 = vmatprep.subr.mxu0 0.0
    %540 = vmatpush1.msra.mxu0 0.0
    %541 = vmatprep.subr.mxu0 0.0
    %542 = vmatpush1.msra.mxu0 0.0
    %543 = vmatprep.subr.mxu0 0.0
    %544 = vmatpush1.msra.mxu0 0.0
    %545 = vmatprep.subr.mxu0 0.0
    %546 = vmatpush1.msra.mxu0 0.0
    %547 = vmatprep.subr.mxu0 0.0
    %548 = vmatpush1.msra.mxu0 0.0
    %549 = vmatprep.subr.mxu0 0.0
    %550 = vmatpush1.msra.mxu0 0.0
    %551 = vmatprep.subr.mxu0 0.0
    %552 = vmatpush1.msra.mxu0 0.0
    %553 = vmatprep.subr.mxu0 0.0
    %554 = vmatpush1.msra.mxu0 0.0
    %555 = vmatprep.subr.mxu0 0.0
    %556 = vmatpush1.msra.mxu0 0.0
    %557 = vmatprep.subr.mxu0 0.0
    %558 = vmatpush1.msra.mxu0 0.0
    %559 = vmatprep.subr.mxu0 0.0
    %560 = vmatpush1.msra.mxu0 0.0
    %561 = vmatprep.subr.mxu0 0.0
    %562 = vmatpush1.msra.mxu0 0.0
    %563 = vmatprep.subr.mxu0 0.0
    %564 = vmatpush1.msra.mxu0 0.0
    %565 = vmatprep.subr.mxu0 0.0
    %566 = vmatpush1.msra.mxu0 0.0
    %567 = vmatprep.subr.mxu0 0.0
    %568 = vmatpush1.msra.mxu0 0.0
    %569 = vmatprep.subr.mxu0 0.0
    %570 = vmatpush1.msra.mxu0 0.0
    %571 = vmatprep.subr.mxu0 0.0
    %572 = vmatpush1.msra.mxu0 0.0
    %573 = vmatprep.subr.mxu0 0.0
    %574 = vmatpush1.msra.mxu0 0.0
    %575 = vmatprep.subr.mxu0 0.0
    %576 = vmatpush1.msra.mxu0 0.0
    %577 = vmatprep.subr.mxu0 0.0
    %578 = vmatpush1.msra.mxu0 0.0
    %579 = vmatprep.subr.mxu0 0.0
    %580 = vmatpush1.msra.mxu0 0.0
    %581 = vmatprep.subr.mxu0 0.0
    %582 = vmatpush1.msra.mxu0 0.0
    %583 = vmatprep.subr.mxu0 0.0
    %584 = vmatpush1.msra.mxu0 0.0
    %585 = vmatprep.subr.mxu0 0.0
    %586 = vmatpush1.msra.mxu0 0.0
    %587 = vmatprep.subr.mxu0 0.0
    %588 = vmatpush1.msra.mxu0 0.0
    %589 = vmatprep.mubr.f32.mxu0 0.0
    %590 = vmatmul.mubr.f32.gmra.mrb[0].mxu0 %v145
    %v591 = vpop.f32.mrb[0].mxu0
    %v592 = vadd.f32 0.0, %v591
    %v593 = vpop.f32.mrb[0].mxu0
    %594 = vmatprep.mubr.f32.mxu0 0.0
    %595 = vmatmul.mubr.f32.gmra.mrb[0].mxu0 %v148
    %v596 = vpop.f32.mrb[0].mxu0
    %v597 = vadd.f32 0.0, %v596
    %v598 = vpop.f32.mrb[0].mxu0
    %599 = vdwg.mxu0
    %600 = vmatprep.subr.mxu0 0.0
    %601 = vmatpush1.msra.mxu0 %v120
    %602 = vmatprep.subr.mxu0 0.0
    %603 = vmatpush1.msra.mxu0 %v121
    %604 = vmatprep.subr.mxu0 0.0
    %605 = vmatpush1.msra.mxu0 %v122
    %606 = vmatprep.subr.mxu0 0.0
    %607 = vmatpush1.msra.mxu0 %v123
    %608 = vmatprep.subr.mxu0 0.0
    %609 = vmatpush1.msra.mxu0 0.0
    %610 = vmatprep.subr.mxu0 0.0
    %611 = vmatpush1.msra.mxu0 0.0
    %612 = vmatprep.subr.mxu0 0.0
    %613 = vmatpush1.msra.mxu0 0.0
    %614 = vmatprep.subr.mxu0 0.0
    %615 = vmatpush1.msra.mxu0 0.0
    %616 = vmatprep.subr.mxu0 0.0
    %617 = vmatpush1.msra.mxu0 0.0
    %618 = vmatprep.subr.mxu0 0.0
    %619 = vmatpush1.msra.mxu0 0.0
    %620 = vmatprep.subr.mxu0 0.0
    %621 = vmatpush1.msra.mxu0 0.0
    %622 = vmatprep.subr.mxu0 0.0
    %623 = vmatpush1.msra.mxu0 0.0
    %624 = vmatprep.subr.mxu0 0.0
    %625 = vmatpush1.msra.mxu0 0.0
    %626 = vmatprep.subr.mxu0 0.0
    %627 = vmatpush1.msra.mxu0 0.0
    %628 = vmatprep.subr.mxu0 0.0
    %629 = vmatpush1.msra.mxu0 0.0
    %630 = vmatprep.subr.mxu0 0.0
    %631 = vmatpush1.msra.mxu0 0.0
    %632 = vmatprep.subr.mxu0 0.0
    %633 = vmatpush1.msra.mxu0 0.0
    %634 = vmatprep.subr.mxu0 0.0
    %635 = vmatpush1.msra.mxu0 0.0
    %636 = vmatprep.subr.mxu0 0.0
    %637 = vmatpush1.msra.mxu0 0.0
    %638 = vmatprep.subr.mxu0 0.0
    %639 = vmatpush1.msra.mxu0 0.0
    %640 = vmatprep.subr.mxu0 0.0
    %641 = vmatpush1.msra.mxu0 0.0
    %642 = vmatprep.subr.mxu0 0.0
    %643 = vmatpush1.msra.mxu0 0.0
    %644 = vmatprep.subr.mxu0 0.0
    %645 = vmatpush1.msra.mxu0 0.0
    %646 = vmatprep.subr.mxu0 0.0
    %647 = vmatpush1.msra.mxu0 0.0
    %648 = vmatprep.subr.mxu0 0.0
    %649 = vmatpush1.msra.mxu0 0.0
    %650 = vmatprep.subr.mxu0 0.0
    %651 = vmatpush1.msra.mxu0 0.0
    %652 = vmatprep.subr.mxu0 0.0
    %653 = vmatpush1.msra.mxu0 0.0
    %654 = vmatprep.subr.mxu0 0.0
    %655 = vmatpush1.msra.mxu0 0.0
    %656 = vmatprep.subr.mxu0 0.0
    %657 = vmatpush1.msra.mxu0 0.0
    %658 = vmatprep.subr.mxu0 0.0
    %659 = vmatpush1.msra.mxu0 0.0
    %660 = vmatprep.subr.mxu0 0.0
    %661 = vmatpush1.msra.mxu0 0.0
    %662 = vmatprep.subr.mxu0 0.0
    %663 = vmatpush1.msra.mxu0 0.0
    %664 = vmatprep.mubr.f32.mxu0 0.0
    %665 = vmatmul.mubr.f32.gmra.mrb[0].mxu0 %v145
    %v666 = vpop.f32.mrb[0].mxu0
    %v667 = vadd.f32 0.0, %v666
    %v668 = vpop.f32.mrb[0].mxu0
    %669 = vmatprep.mubr.f32.mxu0 0.0
    %670 = vmatmul.mubr.f32.gmra.mrb[0].mxu0 %v148
    %v671 = vpop.f32.mrb[0].mxu0
    %v672 = vadd.f32 0.0, %v671
    %v673 = vpop.f32.mrb[0].mxu0
    %674 = vdwg.mxu0
    %675 = vmatprep.subr.mxu0 0.0
    %676 = vmatpush1.msra.mxu0 %v124
    %677 = vmatprep.subr.mxu0 0.0
    %678 = vmatpush1.msra.mxu0 %v125
    %679 = vmatprep.subr.mxu0 0.0
    %680 = vmatpush1.msra.mxu0 %v126
    %681 = vmatprep.subr.mxu0 0.0
    %682 = vmatpush1.msra.mxu0 %v127
    %683 = vmatprep.subr.mxu0 0.0
    %684 = vmatpush1.msra.mxu0 0.0
    %685 = vmatprep.subr.mxu0 0.0
    %686 = vmatpush1.msra.mxu0 0.0
    %687 = vmatprep.subr.mxu0 0.0
    %688 = vmatpush1.msra.mxu0 0.0
    %689 = vmatprep.subr.mxu0 0.0
    %690 = vmatpush1.msra.mxu0 0.0
    %691 = vmatprep.subr.mxu0 0.0
    %692 = vmatpush1.msra.mxu0 0.0
    %693 = vmatprep.subr.mxu0 0.0
    %694 = vmatpush1.msra.mxu0 0.0
    %695 = vmatprep.subr.mxu0 0.0
    %696 = vmatpush1.msra.mxu0 0.0
    %697 = vmatprep.subr.mxu0 0.0
    %698 = vmatpush1.msra.mxu0 0.0
    %699 = vmatprep.subr.mxu0 0.0
    %700 = vmatpush1.msra.mxu0 0.0
    %701 = vmatprep.subr.mxu0 0.0
    %702 = vmatpush1.msra.mxu0 0.0
    %703 = vmatprep.subr.mxu0 0.0
    %704 = vmatpush1.msra.mxu0 0.0
    %705 = vmatprep.subr.mxu0 0.0
    %706 = vmatpush1.msra.mxu0 0.0
    %707 = vmatprep.subr.mxu0 0.0
    %708 = vmatpush1.msra.mxu0 0.0
    %709 = vmatprep.subr.mxu0 0.0
    %710 = vmatpush1.msra.mxu0 0.0
    %711 = vmatprep.subr.mxu0 0.0
    %712 = vmatpush1.msra.mxu0 0.0
    %713 = vmatprep.subr.mxu0 0.0
    %714 = vmatpush1.msra.mxu0 0.0
    %715 = vmatprep.subr.mxu0 0.0
    %716 = vmatpush1.msra.mxu0 0.0
    %717 = vmatprep.subr.mxu0 0.0
    %718 = vmatpush1.msra.mxu0 0.0
    %719 = vmatprep.subr.mxu0 0.0
    %720 = vmatpush1.msra.mxu0 0.0
    %721 = vmatprep.subr.mxu0 0.0
    %722 = vmatpush1.msra.mxu0 0.0
    %723 = vmatprep.subr.mxu0 0.0
    %724 = vmatpush1.msra.mxu0 0.0
    %725 = vmatprep.subr.mxu0 0.0
    %726 = vmatpush1.msra.mxu0 0.0
    %727 = vmatprep.subr.mxu0 0.0
    %728 = vmatpush1.msra.mxu0 0.0
    %729 = vmatprep.subr.mxu0 0.0
    %730 = vmatpush1.msra.mxu0 0.0
    %731 = vmatprep.subr.mxu0 0.0
    %732 = vmatpush1.msra.mxu0 0.0
    %733 = vmatprep.subr.mxu0 0.0
    %734 = vmatpush1.msra.mxu0 0.0
    %735 = vmatprep.subr.mxu0 0.0
    %736 = vmatpush1.msra.mxu0 0.0
    %737 = vmatprep.subr.mxu0 0.0
    %738 = vmatpush1.msra.mxu0 0.0
    %739 = vmatprep.mubr.f32.mxu0 0.0
    %740 = vmatmul.mubr.f32.gmra.mrb[0].mxu0 %v145
    %v741 = vpop.f32.mrb[0].mxu0
    %v742 = vadd.f32 0.0, %v741
    %v743 = vpop.f32.mrb[0].mxu0
    %744 = vmatprep.mubr.f32.mxu0 0.0
    %745 = vmatmul.mubr.f32.gmra.mrb[0].mxu0 %v148
    %v746 = vpop.f32.mrb[0].mxu0
    %v747 = vadd.f32 0.0, %v746
    %v748 = vpop.f32.mrb[0].mxu0
    %749 = vdwg.mxu0
    %750 = vmatprep.subr.mxu0 0.0
    %751 = vmatpush1.msra.mxu0 %v128
    %752 = vmatprep.subr.mxu0 0.0
    %753 = vmatpush1.msra.mxu0 %v129
    %754 = vmatprep.subr.mxu0 0.0
    %755 = vmatpush1.msra.mxu0 %v130
    %756 = vmatprep.subr.mxu0 0.0
    %757 = vmatpush1.msra.mxu0 %v131
    %758 = vmatprep.subr.mxu0 0.0
    %759 = vmatpush1.msra.mxu0 0.0
    %760 = vmatprep.subr.mxu0 0.0
    %761 = vmatpush1.msra.mxu0 0.0
    %762 = vmatprep.subr.mxu0 0.0
    %763 = vmatpush1.msra.mxu0 0.0
    %764 = vmatprep.subr.mxu0 0.0
    %765 = vmatpush1.msra.mxu0 0.0
    %766 = vmatprep.subr.mxu0 0.0
    %767 = vmatpush1.msra.mxu0 0.0
    %768 = vmatprep.subr.mxu0 0.0
    %769 = vmatpush1.msra.mxu0 0.0
    %770 = vmatprep.subr.mxu0 0.0
    %771 = vmatpush1.msra.mxu0 0.0
    %772 = vmatprep.subr.mxu0 0.0
    %773 = vmatpush1.msra.mxu0 0.0
    %774 = vmatprep.subr.mxu0 0.0
    %775 = vmatpush1.msra.mxu0 0.0
    %776 = vmatprep.subr.mxu0 0.0
    %777 = vmatpush1.msra.mxu0 0.0
    %778 = vmatprep.subr.mxu0 0.0
    %779 = vmatpush1.msra.mxu0 0.0
    %780 = vmatprep.subr.mxu0 0.0
    %781 = vmatpush1.msra.mxu0 0.0
    %782 = vmatprep.subr.mxu0 0.0
    %783 = vmatpush1.msra.mxu0 0.0
    %784 = vmatprep.subr.mxu0 0.0
    %785 = vmatpush1.msra.mxu0 0.0
    %786 = vmatprep.subr.mxu0 0.0
    %787 = vmatpush1.msra.mxu0 0.0
    %788 = vmatprep.subr.mxu0 0.0
    %789 = vmatpush1.msra.mxu0 0.0
    %790 = vmatprep.subr.mxu0 0.0
    %791 = vmatpush1.msra.mxu0 0.0
    %792 = vmatprep.subr.mxu0 0.0
    %793 = vmatpush1.msra.mxu0 0.0
    %794 = vmatprep.subr.mxu0 0.0
    %795 = vmatpush1.msra.mxu0 0.0
    %796 = vmatprep.subr.mxu0 0.0
    %797 = vmatpush1.msra.mxu0 0.0
    %798 = vmatprep.subr.mxu0 0.0
    %799 = vmatpush1.msra.mxu0 0.0
    %800 = vmatprep.subr.mxu0 0.0
    %801 = vmatpush1.msra.mxu0 0.0
    %802 = vmatprep.subr.mxu0 0.0
    %803 = vmatpush1.msra.mxu0 0.0
    %804 = vmatprep.subr.mxu0 0.0
    %805 = vmatpush1.msra.mxu0 0.0
    %806 = vmatprep.subr.mxu0 0.0
    %807 = vmatpush1.msra.mxu0 0.0
    %808 = vmatprep.subr.mxu0 0.0
    %809 = vmatpush1.msra.mxu0 0.0
    %810 = vmatprep.subr.mxu0 0.0
    %811 = vmatpush1.msra.mxu0 0.0
    %812 = vmatprep.subr.mxu0 0.0
    %813 = vmatpush1.msra.mxu0 0.0
    %814 = vmatprep.mubr.f32.mxu0 0.0
    %815 = vmatmul.mubr.f32.gmra.mrb[0].mxu0 %v145
    %v816 = vpop.f32.mrb[0].mxu0
    %v817 = vadd.f32 0.0, %v816
    %v818 = vpop.f32.mrb[0].mxu0
    %819 = vmatprep.mubr.f32.mxu0 0.0
    %820 = vmatmul.mubr.f32.gmra.mrb[0].mxu0 %v148
    %v821 = vpop.f32.mrb[0].mxu0
    %v822 = vadd.f32 0.0, %v821
    %v823 = vpop.f32.mrb[0].mxu0
    %824 = vdwg.mxu0
    %825 = vmatprep.subr.mxu0 0.0
    %826 = vmatpush1.msra.mxu0 %v132
    %827 = vmatprep.subr.mxu0 0.0
    %828 = vmatpush1.msra.mxu0 %v133
    %829 = vmatprep.subr.mxu0 0.0
    %830 = vmatpush1.msra.mxu0 %v134
    %831 = vmatprep.subr.mxu0 0.0
    %832 = vmatpush1.msra.mxu0 %v135
    %833 = vmatprep.subr.mxu0 0.0
    %834 = vmatpush1.msra.mxu0 0.0
    %835 = vmatprep.subr.mxu0 0.0
    %836 = vmatpush1.msra.mxu0 0.0
    %837 = vmatprep.subr.mxu0 0.0
    %838 = vmatpush1.msra.mxu0 0.0
    %839 = vmatprep.subr.mxu0 0.0
    %840 = vmatpush1.msra.mxu0 0.0
    %841 = vmatprep.subr.mxu0 0.0
    %842 = vmatpush1.msra.mxu0 0.0
    %843 = vmatprep.subr.mxu0 0.0
    %844 = vmatpush1.msra.mxu0 0.0
    %845 = vmatprep.subr.mxu0 0.0
    %846 = vmatpush1.msra.mxu0 0.0
    %847 = vmatprep.subr.mxu0 0.0
    %848 = vmatpush1.msra.mxu0 0.0
    %849 = vmatprep.subr.mxu0 0.0
    %850 = vmatpush1.msra.mxu0 0.0
    %851 = vmatprep.subr.mxu0 0.0
    %852 = vmatpush1.msra.mxu0 0.0
    %853 = vmatprep.subr.mxu0 0.0
    %854 = vmatpush1.msra.mxu0 0.0
    %855 = vmatprep.subr.mxu0 0.0
    %856 = vmatpush1.msra.mxu0 0.0
    %857 = vmatprep.subr.mxu0 0.0
    %858 = vmatpush1.msra.mxu0 0.0
    %859 = vmatprep.subr.mxu0 0.0
    %860 = vmatpush1.msra.mxu0 0.0
    %861 = vmatprep.subr.mxu0 0.0
    %862 = vmatpush1.msra.mxu0 0.0
    %863 = vmatprep.subr.mxu0 0.0
    %864 = vmatpush1.msra.mxu0 0.0
    %865 = vmatprep.subr.mxu0 0.0
    %866 = vmatpush1.msra.mxu0 0.0
    %867 = vmatprep.subr.mxu0 0.0
    %868 = vmatpush1.msra.mxu0 0.0
    %869 = vmatprep.subr.mxu0 0.0
    %870 = vmatpush1.msra.mxu0 0.0
    %871 = vmatprep.subr.mxu0 0.0
    %872 = vmatpush1.msra.mxu0 0.0
    %873 = vmatprep.subr.mxu0 0.0
    %874 = vmatpush1.msra.mxu0 0.0
    %875 = vmatprep.subr.mxu0 0.0
    %876 = vmatpush1.msra.mxu0 0.0
    %877 = vmatprep.subr.mxu0 0.0
    %878 = vmatpush1.msra.mxu0 0.0
    %879 = vmatprep.subr.mxu0 0.0
    %880 = vmatpush1.msra.mxu0 0.0
    %881 = vmatprep.subr.mxu0 0.0
    %882 = vmatpush1.msra.mxu0 0.0
    %883 = vmatprep.subr.mxu0 0.0
    %884 = vmatpush1.msra.mxu0 0.0
    %885 = vmatprep.subr.mxu0 0.0
    %886 = vmatpush1.msra.mxu0 0.0
    %887 = vmatprep.subr.mxu0 0.0
    %888 = vmatpush1.msra.mxu0 0.0
    %889 = vmatprep.mubr.f32.mxu0 0.0
    %890 = vmatmul.mubr.f32.gmra.mrb[0].mxu0 %v145
    %v891 = vpop.f32.mrb[0].mxu0
    %v892 = vadd.f32 0.0, %v891
    %v893 = vpop.f32.mrb[0].mxu0
    %894 = vmatprep.mubr.f32.mxu0 0.0
    %895 = vmatmul.mubr.f32.gmra.mrb[0].mxu0 %v148
    %v896 = vpop.f32.mrb[0].mxu0
    %v897 = vadd.f32 0.0, %v896
    %v898 = vpop.f32.mrb[0].mxu0
    %899 = vdwg.mxu0
    %900 = vmatprep.subr.mxu0 0.0
    %901 = vmatpush1.msra.mxu0 %v136
    %902 = vmatprep.subr.mxu0 0.0
    %903 = vmatpush1.msra.mxu0 %v137
    %904 = vmatprep.subr.mxu0 0.0
    %905 = vmatpush1.msra.mxu0 %v138
    %906 = vmatprep.subr.mxu0 0.0
    %907 = vmatpush1.msra.mxu0 %v139
    %908 = vmatprep.subr.mxu0 0.0
    %909 = vmatpush1.msra.mxu0 0.0
    %910 = vmatprep.subr.mxu0 0.0
    %911 = vmatpush1.msra.mxu0 0.0
    %912 = vmatprep.subr.mxu0 0.0
    %913 = vmatpush1.msra.mxu0 0.0
    %914 = vmatprep.subr.mxu0 0.0
    %915 = vmatpush1.msra.mxu0 0.0
    %916 = vmatprep.subr.mxu0 0.0
    %917 = vmatpush1.msra.mxu0 0.0
    %918 = vmatprep.subr.mxu0 0.0
    %919 = vmatpush1.msra.mxu0 0.0
    %920 = vmatprep.subr.mxu0 0.0
    %921 = vmatpush1.msra.mxu0 0.0
    %922 = vmatprep.subr.mxu0 0.0
    %923 = vmatpush1.msra.mxu0 0.0
    %924 = vmatprep.subr.mxu0 0.0
    %925 = vmatpush1.msra.mxu0 0.0
    %926 = vmatprep.subr.mxu0 0.0
    %927 = vmatpush1.msra.mxu0 0.0
    %928 = vmatprep.subr.mxu0 0.0
    %929 = vmatpush1.msra.mxu0 0.0
    %930 = vmatprep.subr.mxu0 0.0
    %931 = vmatpush1.msra.mxu0 0.0
    %932 = vmatprep.subr.mxu0 0.0
    %933 = vmatpush1.msra.mxu0 0.0
    %934 = vmatprep.subr.mxu0 0.0
    %935 = vmatpush1.msra.mxu0 0.0
    %936 = vmatprep.subr.mxu0 0.0
    %937 = vmatpush1.msra.mxu0 0.0
    %938 = vmatprep.subr.mxu0 0.0
    %939 = vmatpush1.msra.mxu0 0.0
    %940 = vmatprep.subr.mxu0 0.0
    %941 = vmatpush1.msra.mxu0 0.0
    %942 = vmatprep.subr.mxu0 0.0
    %943 = vmatpush1.msra.mxu0 0.0
    %944 = vmatprep.subr.mxu0 0.0
    %945 = vmatpush1.msra.mxu0 0.0
    %946 = vmatprep.subr.mxu0 0.0
    %947 = vmatpush1.msra.mxu0 0.0
    %948 = vmatprep.subr.mxu0 0.0
    %949 = vmatpush1.msra.mxu0 0.0
    %950 = vmatprep.subr.mxu0 0.0
    %951 = vmatpush1.msra.mxu0 0.0
    %952 = vmatprep.subr.mxu0 0.0
    %953 = vmatpush1.msra.mxu0 0.0
    %954 = vmatprep.subr.mxu0 0.0
    %955 = vmatpush1.msra.mxu0 0.0
    %956 = vmatprep.subr.mxu0 0.0
    %957 = vmatpush1.msra.mxu0 0.0
    %958 = vmatprep.subr.mxu0 0.0
    %959 = vmatpush1.msra.mxu0 0.0
    %960 = vmatprep.subr.mxu0 0.0
    %961 = vmatpush1.msra.mxu0 0.0
    %962 = vmatprep.subr.mxu0 0.0
    %963 = vmatpush1.msra.mxu0 0.0
    %964 = vmatprep.mubr.f32.mxu0 0.0
    %965 = vmatmul.mubr.f32.gmra.mrb[0].mxu0 %v145
    %v966 = vpop.f32.mrb[0].mxu0
    %v967 = vadd.f32 0.0, %v966
    %v968 = vpop.f32.mrb[0].mxu0
    %969 = vmatprep.mubr.f32.mxu0 0.0
    %970 = vmatmul.mubr.f32.gmra.mrb[0].mxu0 %v148
    %v971 = vpop.f32.mrb[0].mxu0
    %v972 = vadd.f32 0.0, %v971
    %v973 = vpop.f32.mrb[0].mxu0
    %974 = vdwg.mxu0
    %975 = vmatprep.subr.mxu0 0.0
    %976 = vmatpush1.msra.mxu0 %v140
    %977 = vmatprep.subr.mxu0 0.0
    %978 = vmatpush1.msra.mxu0 %v141
    %979 = vmatprep.subr.mxu0 0.0
    %980 = vmatpush1.msra.mxu0 %v142
    %981 = vmatprep.subr.mxu0 0.0
    %982 = vmatpush1.msra.mxu0 %v143
    %983 = vmatprep.subr.mxu0 0.0
    %984 = vmatpush1.msra.mxu0 0.0
    %985 = vmatprep.subr.mxu0 0.0
    %986 = vmatpush1.msra.mxu0 0.0
    %987 = vmatprep.subr.mxu0 0.0
    %988 = vmatpush1.msra.mxu0 0.0
    %989 = vmatprep.subr.mxu0 0.0
    %990 = vmatpush1.msra.mxu0 0.0
    %991 = vmatprep.subr.mxu0 0.0
    %992 = vmatpush1.msra.mxu0 0.0
    %993 = vmatprep.subr.mxu0 0.0
    %994 = vmatpush1.msra.mxu0 0.0
    %995 = vmatprep.subr.mxu0 0.0
    %996 = vmatpush1.msra.mxu0 0.0
    %997 = vmatprep.subr.mxu0 0.0
    %998 = vmatpush1.msra.mxu0 0.0
    %999 = vmatprep.subr.mxu0 0.0
    %1000 = vmatpush1.msra.mxu0 0.0
    %1001 = vmatprep.subr.mxu0 0.0
    %1002 = vmatpush1.msra.mxu0 0.0
    %1003 = vmatprep.subr.mxu0 0.0
    %1004 = vmatpush1.msra.mxu0 0.0
    %1005 = vmatprep.subr.mxu0 0.0
    %1006 = vmatpush1.msra.mxu0 0.0
    %1007 = vmatprep.subr.mxu0 0.0
    %1008 = vmatpush1.msra.mxu0 0.0
    %1009 = vmatprep.subr.mxu0 0.0
    %1010 = vmatpush1.msra.mxu0 0.0
    %1011 = vmatprep.subr.mxu0 0.0
    %1012 = vmatpush1.msra.mxu0 0.0
    %1013 = vmatprep.subr.mxu0 0.0
    %1014 = vmatpush1.msra.mxu0 0.0
    %1015 = vmatprep.subr.mxu0 0.0
    %1016 = vmatpush1.msra.mxu0 0.0
    %1017 = vmatprep.subr.mxu0 0.0
    %1018 = vmatpush1.msra.mxu0 0.0
    %1019 = vmatprep.subr.mxu0 0.0
    %1020 = vmatpush1.msra.mxu0 0.0
    %1021 = vmatprep.subr.mxu0 0.0
    %1022 = vmatpush1.msra.mxu0 0.0
    %1023 = vmatprep.subr.mxu0 0.0
    %1024 = vmatpush1.msra.mxu0 0.0
    %1025 = vmatprep.subr.mxu0 0.0
    %1026 = vmatpush1.msra.mxu0 0.0
    %1027 = vmatprep.subr.mxu0 0.0
    %1028 = vmatpush1.msra.mxu0 0.0
    %1029 = vmatprep.subr.mxu0 0.0
    %1030 = vmatpush1.msra.mxu0 0.0
    %1031 = vmatprep.subr.mxu0 0.0
    %1032 = vmatpush1.msra.mxu0 0.0
    %1033 = vmatprep.subr.mxu0 0.0
    %1034 = vmatpush1.msra.mxu0 0.0
    %1035 = vmatprep.subr.mxu0 0.0
    %1036 = vmatpush1.msra.mxu0 0.0
    %1037 = vmatprep.subr.mxu0 0.0
    %1038 = vmatpush1.msra.mxu0 0.0
    %1039 = vmatprep.mubr.f32.mxu0 0.0
    %1040 = vmatmul.mubr.f32.gmra.mrb[0].mxu0 %v145
    %v1041 = vpop.f32.mrb[0].mxu0
    %v1042 = vadd.f32 0.0, %v1041
    %v1043 = vpop.f32.mrb[0].mxu0
    %1044 = vmatprep.mubr.f32.mxu0 0.0
    %1045 = vmatmul.mubr.f32.gmra.mrb[0].mxu0 %v148
    %v1046 = vpop.f32.mrb[0].mxu0
    %v1047 = vadd.f32 0.0, %v1046
    %v1048 = vpop.f32.mrb[0].mxu0
    %1049 = vdwg.mxu0
    %vm1050 = vcmask 64512
    %v1052 = vsel %vm1050, %v217, 0
    %v1055 = vsel %vm1050, %v517, 0
    %1057 = vmatprep.subr.mxu0 0.0
    %1058 = vmatpush1.xpose.msra.mxu0 %v1055
    %1059 = vmatprep.subr.mxu0 0.0
    %1060 = vmatpush1.xpose.msra.mxu0 0.0
    %1061 = vmatprep.subr.mxu0 0.0
    %1062 = vmatpush1.xpose.msra.mxu0 0.0
    %1063 = vmatprep.subr.mxu0 0.0
    %1064 = vmatpush1.xpose.msra.mxu0 0.0
    %1065 = vmatprep.subr.mxu0 0.0
    %1066 = vmatpush1.xpose.msra.mxu0 0.0
    %1067 = vmatprep.subr.mxu0 0.0
    %1068 = vmatpush1.xpose.msra.mxu0 0.0
    %1069 = vmatprep.subr.mxu0 0.0
    %1070 = vmatpush1.xpose.msra.mxu0 0.0
    %1071 = vmatprep.subr.mxu0 0.0
    %1072 = vmatpush1.xpose.msra.mxu0 0.0
    %1073 = vmatprep.subr.mxu0 0.0
    %1074 = vmatpush1.xpose.msra.mxu0 0.0
    %1075 = vmatprep.subr.mxu0 0.0
    %1076 = vmatpush1.xpose.msra.mxu0 0.0
    %1077 = vmatprep.subr.mxu0 0.0
    %1078 = vmatpush1.xpose.msra.mxu0 0.0
    %1079 = vmatprep.subr.mxu0 0.0
    %1080 = vmatpush1.xpose.msra.mxu0 0.0
    %1081 = vmatprep.subr.mxu0 0.0
    %1082 = vmatpush1.xpose.msra.mxu0 0.0
    %1083 = vmatprep.subr.mxu0 0.0
    %1084 = vmatpush1.xpose.msra.mxu0 0.0
    %1085 = vmatprep.subr.mxu0 0.0
    %1086 = vmatpush1.xpose.msra.mxu0 0.0
    %1087 = vmatprep.subr.mxu0 0.0
    %1088 = vmatpush1.xpose.msra.mxu0 0.0
    %1089 = vmatprep.subr.mxu0 0.0
    %1090 = vmatpush1.xpose.msra.mxu0 0.0
    %1091 = vmatprep.subr.mxu0 0.0
    %1092 = vmatpush1.xpose.msra.mxu0 0.0
    %1093 = vmatprep.subr.mxu0 0.0
    %1094 = vmatpush1.xpose.msra.mxu0 0.0
    %1095 = vmatprep.subr.mxu0 0.0
    %1096 = vmatpush1.xpose.msra.mxu0 0.0
    %1097 = vmatprep.subr.mxu0 0.0
    %1098 = vmatpush1.xpose.msra.mxu0 0.0
    %1099 = vmatprep.subr.mxu0 0.0
    %1100 = vmatpush1.xpose.msra.mxu0 0.0
    %1101 = vmatprep.subr.mxu0 0.0
    %1102 = vmatpush1.xpose.msra.mxu0 0.0
    %1103 = vmatprep.subr.mxu0 0.0
    %1104 = vmatpush1.xpose.msra.mxu0 0.0
    %1105 = vmatprep.subr.mxu0 0.0
    %1106 = vmatpush1.xpose.msra.mxu0 0.0
    %1107 = vmatprep.subr.mxu0 0.0
    %1108 = vmatpush1.xpose.msra.mxu0 0.0
    %1109 = vmatprep.subr.mxu0 0.0
    %1110 = vmatpush1.xpose.msra.mxu0 0.0
    %1111 = vmatprep.subr.mxu0 0.0
    %1112 = vmatpush1.xpose.msra.mxu0 0.0
    %1113 = vmatprep.subr.mxu0 0.0
    %1114 = vmatpush1.xpose.msra.mxu0 0.0
    %1115 = vmatprep.subr.mxu0 0.0
    %1116 = vmatpush1.xpose.msra.mxu0 0.0
    %1117 = vmatprep.subr.mxu0 0.0
    %1118 = vmatpush1.xpose.msra.mxu0 0.0
    %1119 = vmatprep.subr.mxu0 0.0
    %1120 = vmatpush1.xpose.msra.mxu0 0.0
    %1121 = vmatprep.mubr.f32.mxu0 0.0
    %1122 = vmatmul.mubr.f32.gmra.mrb[0].mxu0 %v1052
    %v1123 = vpop.f32.mrb[0].mxu0
    %v1124 = vadd.f32 0.0, %v1123
    %v1125 = vpop.f32.mrb[0].mxu0
    %1126 = vdwg.mxu0
    %v1128 = vsel %vm1050, %v222, 0
    %v1131 = vsel %vm1050, %v522, 0
    %1133 = vmatprep.subr.mxu0 0.0
    %1134 = vmatpush1.xpose.msra.mxu0 %v1131
    %1135 = vmatprep.subr.mxu0 0.0
    %1136 = vmatpush1.xpose.msra.mxu0 0.0
    %1137 = vmatprep.subr.mxu0 0.0
    %1138 = vmatpush1.xpose.msra.mxu0 0.0
    %1139 = vmatprep.subr.mxu0 0.0
    %1140 = vmatpush1.xpose.msra.mxu0 0.0
    %1141 = vmatprep.subr.mxu0 0.0
    %1142 = vmatpush1.xpose.msra.mxu0 0.0
    %1143 = vmatprep.subr.mxu0 0.0
    %1144 = vmatpush1.xpose.msra.mxu0 0.0
    %1145 = vmatprep.subr.mxu0 0.0
    %1146 = vmatpush1.xpose.msra.mxu0 0.0
    %1147 = vmatprep.subr.mxu0 0.0
    %1148 = vmatpush1.xpose.msra.mxu0 0.0
    %1149 = vmatprep.subr.mxu0 0.0
    %1150 = vmatpush1.xpose.msra.mxu0 0.0
    %1151 = vmatprep.subr.mxu0 0.0
    %1152 = vmatpush1.xpose.msra.mxu0 0.0
    %1153 = vmatprep.subr.mxu0 0.0
    %1154 = vmatpush1.xpose.msra.mxu0 0.0
    %1155 = vmatprep.subr.mxu0 0.0
    %1156 = vmatpush1.xpose.msra.mxu0 0.0
    %1157 = vmatprep.subr.mxu0 0.0
    %1158 = vmatpush1.xpose.msra.mxu0 0.0
    %1159 = vmatprep.subr.mxu0 0.0
    %1160 = vmatpush1.xpose.msra.mxu0 0.0
    %1161 = vmatprep.subr.mxu0 0.0
    %1162 = vmatpush1.xpose.msra.mxu0 0.0
    %1163 = vmatprep.subr.mxu0 0.0
    %1164 = vmatpush1.xpose.msra.mxu0 0.0
    %1165 = vmatprep.subr.mxu0 0.0
    %1166 = vmatpush1.xpose.msra.mxu0 0.0
    %1167 = vmatprep.subr.mxu0 0.0
    %1168 = vmatpush1.xpose.msra.mxu0 0.0
    %1169 = vmatprep.subr.mxu0 0.0
    %1170 = vmatpush1.xpose.msra.mxu0 0.0
    %1171 = vmatprep.subr.mxu0 0.0
    %1172 = vmatpush1.xpose.msra.mxu0 0.0
    %1173 = vmatprep.subr.mxu0 0.0
    %1174 = vmatpush1.xpose.msra.mxu0 0.0
    %1175 = vmatprep.subr.mxu0 0.0
    %1176 = vmatpush1.xpose.msra.mxu0 0.0
    %1177 = vmatprep.subr.mxu0 0.0
    %1178 = vmatpush1.xpose.msra.mxu0 0.0
    %1179 = vmatprep.subr.mxu0 0.0
    %1180 = vmatpush1.xpose.msra.mxu0 0.0
    %1181 = vmatprep.subr.mxu0 0.0
    %1182 = vmatpush1.xpose.msra.mxu0 0.0
    %1183 = vmatprep.subr.mxu0 0.0
    %1184 = vmatpush1.xpose.msra.mxu0 0.0
    %1185 = vmatprep.subr.mxu0 0.0
    %1186 = vmatpush1.xpose.msra.mxu0 0.0
    %1187 = vmatprep.subr.mxu0 0.0
    %1188 = vmatpush1.xpose.msra.mxu0 0.0
    %1189 = vmatprep.subr.mxu0 0.0
    %1190 = vmatpush1.xpose.msra.mxu0 0.0
    %1191 = vmatprep.subr.mxu0 0.0
    %1192 = vmatpush1.xpose.msra.mxu0 0.0
    %1193 = vmatprep.subr.mxu0 0.0
    %1194 = vmatpush1.xpose.msra.mxu0 0.0
    %1195 = vmatprep.subr.mxu0 0.0
    %1196 = vmatpush1.xpose.msra.mxu0 0.0
    %1197 = vmatprep.mubr.f32.mxu0 0.0
    %1198 = vmatmul.mubr.f32.gmra.mrb[0].mxu0 %v1128
    %v1199 = vpop.f32.mrb[0].mxu0
    %v1200 = vadd.f32 0.0, %v1199
    %v1201 = vpop.f32.mrb[0].mxu0
    %1202 = vdwg.mxu0
    %v1204 = vsel %vm1050, %v292, 0
    %v1207 = vsel %vm1050, %v592, 0
    %1209 = vmatprep.subr.mxu0 0.0
    %1210 = vmatpush1.xpose.msra.mxu0 %v1207
    %1211 = vmatprep.subr.mxu0 0.0
    %1212 = vmatpush1.xpose.msra.mxu0 0.0
    %1213 = vmatprep.subr.mxu0 0.0
    %1214 = vmatpush1.xpose.msra.mxu0 0.0
    %1215 = vmatprep.subr.mxu0 0.0
    %1216 = vmatpush1.xpose.msra.mxu0 0.0
    %1217 = vmatprep.subr.mxu0 0.0
    %1218 = vmatpush1.xpose.msra.mxu0 0.0
    %1219 = vmatprep.subr.mxu0 0.0
    %1220 = vmatpush1.xpose.msra.mxu0 0.0
    %1221 = vmatprep.subr.mxu0 0.0
    %1222 = vmatpush1.xpose.msra.mxu0 0.0
    %1223 = vmatprep.subr.mxu0 0.0
    %1224 = vmatpush1.xpose.msra.mxu0 0.0
    %1225 = vmatprep.subr.mxu0 0.0
    %1226 = vmatpush1.xpose.msra.mxu0 0.0
    %1227 = vmatprep.subr.mxu0 0.0
    %1228 = vmatpush1.xpose.msra.mxu0 0.0
    %1229 = vmatprep.subr.mxu0 0.0
    %1230 = vmatpush1.xpose.msra.mxu0 0.0
    %1231 = vmatprep.subr.mxu0 0.0
    %1232 = vmatpush1.xpose.msra.mxu0 0.0
    %1233 = vmatprep.subr.mxu0 0.0
    %1234 = vmatpush1.xpose.msra.mxu0 0.0
    %1235 = vmatprep.subr.mxu0 0.0
    %1236 = vmatpush1.xpose.msra.mxu0 0.0
    %1237 = vmatprep.subr.mxu0 0.0
    %1238 = vmatpush1.xpose.msra.mxu0 0.0
    %1239 = vmatprep.subr.mxu0 0.0
    %1240 = vmatpush1.xpose.msra.mxu0 0.0
    %1241 = vmatprep.subr.mxu0 0.0
    %1242 = vmatpush1.xpose.msra.mxu0 0.0
    %1243 = vmatprep.subr.mxu0 0.0
    %1244 = vmatpush1.xpose.msra.mxu0 0.0
    %1245 = vmatprep.subr.mxu0 0.0
    %1246 = vmatpush1.xpose.msra.mxu0 0.0
    %1247 = vmatprep.subr.mxu0 0.0
    %1248 = vmatpush1.xpose.msra.mxu0 0.0
    %1249 = vmatprep.subr.mxu0 0.0
    %1250 = vmatpush1.xpose.msra.mxu0 0.0
    %1251 = vmatprep.subr.mxu0 0.0
    %1252 = vmatpush1.xpose.msra.mxu0 0.0
    %1253 = vmatprep.subr.mxu0 0.0
    %1254 = vmatpush1.xpose.msra.mxu0 0.0
    %1255 = vmatprep.subr.mxu0 0.0
    %1256 = vmatpush1.xpose.msra.mxu0 0.0
    %1257 = vmatprep.subr.mxu0 0.0
    %1258 = vmatpush1.xpose.msra.mxu0 0.0
    %1259 = vmatprep.subr.mxu0 0.0
    %1260 = vmatpush1.xpose.msra.mxu0 0.0
    %1261 = vmatprep.subr.mxu0 0.0
    %1262 = vmatpush1.xpose.msra.mxu0 0.0
    %1263 = vmatprep.subr.mxu0 0.0
    %1264 = vmatpush1.xpose.msra.mxu0 0.0
    %1265 = vmatprep.subr.mxu0 0.0
    %1266 = vmatpush1.xpose.msra.mxu0 0.0
    %1267 = vmatprep.subr.mxu0 0.0
    %1268 = vmatpush1.xpose.msra.mxu0 0.0
    %1269 = vmatprep.subr.mxu0 0.0
    %1270 = vmatpush1.xpose.msra.mxu0 0.0
    %1271 = vmatprep.subr.mxu0 0.0
    %1272 = vmatpush1.xpose.msra.mxu0 0.0
    %1273 = vmatprep.mubr.f32.mxu0 0.0
    %1274 = vmatmul.mubr.f32.gmra.mrb[0].mxu0 %v1204
    %v1275 = vpop.f32.mrb[0].mxu0
    %v1276 = vadd.f32 0.0, %v1275
    %v1277 = vpop.f32.mrb[0].mxu0
    %1278 = vdwg.mxu0
    %v1280 = vsel %vm1050, %v297, 0
    %v1283 = vsel %vm1050, %v597, 0
    %1285 = vmatprep.subr.mxu0 0.0
    %1286 = vmatpush1.xpose.msra.mxu0 %v1283
    %1287 = vmatprep.subr.mxu0 0.0
    %1288 = vmatpush1.xpose.msra.mxu0 0.0
    %1289 = vmatprep.subr.mxu0 0.0
    %1290 = vmatpush1.xpose.msra.mxu0 0.0
    %1291 = vmatprep.subr.mxu0 0.0
    %1292 = vmatpush1.xpose.msra.mxu0 0.0
    %1293 = vmatprep.subr.mxu0 0.0
    %1294 = vmatpush1.xpose.msra.mxu0 0.0
    %1295 = vmatprep.subr.mxu0 0.0
    %1296 = vmatpush1.xpose.msra.mxu0 0.0
    %1297 = vmatprep.subr.mxu0 0.0
    %1298 = vmatpush1.xpose.msra.mxu0 0.0
    %1299 = vmatprep.subr.mxu0 0.0
    %1300 = vmatpush1.xpose.msra.mxu0 0.0
    %1301 = vmatprep.subr.mxu0 0.0
    %1302 = vmatpush1.xpose.msra.mxu0 0.0
    %1303 = vmatprep.subr.mxu0 0.0
    %1304 = vmatpush1.xpose.msra.mxu0 0.0
    %1305 = vmatprep.subr.mxu0 0.0
    %1306 = vmatpush1.xpose.msra.mxu0 0.0
    %1307 = vmatprep.subr.mxu0 0.0
    %1308 = vmatpush1.xpose.msra.mxu0 0.0
    %1309 = vmatprep.subr.mxu0 0.0
    %1310 = vmatpush1.xpose.msra.mxu0 0.0
    %1311 = vmatprep.subr.mxu0 0.0
    %1312 = vmatpush1.xpose.msra.mxu0 0.0
    %1313 = vmatprep.subr.mxu0 0.0
    %1314 = vmatpush1.xpose.msra.mxu0 0.0
    %1315 = vmatprep.subr.mxu0 0.0
    %1316 = vmatpush1.xpose.msra.mxu0 0.0
    %1317 = vmatprep.subr.mxu0 0.0
    %1318 = vmatpush1.xpose.msra.mxu0 0.0
    %1319 = vmatprep.subr.mxu0 0.0
    %1320 = vmatpush1.xpose.msra.mxu0 0.0
    %1321 = vmatprep.subr.mxu0 0.0
    %1322 = vmatpush1.xpose.msra.mxu0 0.0
    %1323 = vmatprep.subr.mxu0 0.0
    %1324 = vmatpush1.xpose.msra.mxu0 0.0
    %1325 = vmatprep.subr.mxu0 0.0
    %1326 = vmatpush1.xpose.msra.mxu0 0.0
    %1327 = vmatprep.subr.mxu0 0.0
    %1328 = vmatpush1.xpose.msra.mxu0 0.0
    %1329 = vmatprep.subr.mxu0 0.0
    %1330 = vmatpush1.xpose.msra.mxu0 0.0
    %1331 = vmatprep.subr.mxu0 0.0
    %1332 = vmatpush1.xpose.msra.mxu0 0.0
    %1333 = vmatprep.subr.mxu0 0.0
    %1334 = vmatpush1.xpose.msra.mxu0 0.0
    %1335 = vmatprep.subr.mxu0 0.0
    %1336 = vmatpush1.xpose.msra.mxu0 0.0
    %1337 = vmatprep.subr.mxu0 0.0
    %1338 = vmatpush1.xpose.msra.mxu0 0.0
    %1339 = vmatprep.subr.mxu0 0.0
    %1340 = vmatpush1.xpose.msra.mxu0 0.0
    %1341 = vmatprep.subr.mxu0 0.0
    %1342 = vmatpush1.xpose.msra.mxu0 0.0
    %1343 = vmatprep.subr.mxu0 0.0
    %1344 = vmatpush1.xpose.msra.mxu0 0.0
    %1345 = vmatprep.subr.mxu0 0.0
    %1346 = vmatpush1.xpose.msra.mxu0 0.0
    %1347 = vmatprep.subr.mxu0 0.0
    %1348 = vmatpush1.xpose.msra.mxu0 0.0
    %1349 = vmatprep.mubr.f32.mxu0 0.0
    %1350 = vmatmul.mubr.f32.gmra.mrb[0].mxu0 %v1280
    %v1351 = vpop.f32.mrb[0].mxu0
    %v1352 = vadd.f32 0.0, %v1351
    %v1353 = vpop.f32.mrb[0].mxu0
    %1354 = vdwg.mxu0
    %v1356 = vsel %vm1050, %v367, 0
    %v1359 = vsel %vm1050, %v667, 0
    %1361 = vmatprep.subr.mxu0 0.0
    %1362 = vmatpush1.xpose.msra.mxu0 %v1359
    %1363 = vmatprep.subr.mxu0 0.0
    %1364 = vmatpush1.xpose.msra.mxu0 0.0
    %1365 = vmatprep.subr.mxu0 0.0
    %1366 = vmatpush1.xpose.msra.mxu0 0.0
    %1367 = vmatprep.subr.mxu0 0.0
    %1368 = vmatpush1.xpose.msra.mxu0 0.0
    %1369 = vmatprep.subr.mxu0 0.0
    %1370 = vmatpush1.xpose.msra.mxu0 0.0
    %1371 = vmatprep.subr.mxu0 0.0
    %1372 = vmatpush1.xpose.msra.mxu0 0.0
    %1373 = vmatprep.subr.mxu0 0.0
    %1374 = vmatpush1.xpose.msra.mxu0 0.0
    %1375 = vmatprep.subr.mxu0 0.0
    %1376 = vmatpush1.xpose.msra.mxu0 0.0
    %1377 = vmatprep.subr.mxu0 0.0
    %1378 = vmatpush1.xpose.msra.mxu0 0.0
    %1379 = vmatprep.subr.mxu0 0.0
    %1380 = vmatpush1.xpose.msra.mxu0 0.0
    %1381 = vmatprep.subr.mxu0 0.0
    %1382 = vmatpush1.xpose.msra.mxu0 0.0
    %1383 = vmatprep.subr.mxu0 0.0
    %1384 = vmatpush1.xpose.msra.mxu0 0.0
    %1385 = vmatprep.subr.mxu0 0.0
    %1386 = vmatpush1.xpose.msra.mxu0 0.0
    %1387 = vmatprep.subr.mxu0 0.0
    %1388 = vmatpush1.xpose.msra.mxu0 0.0
    %1389 = vmatprep.subr.mxu0 0.0
    %1390 = vmatpush1.xpose.msra.mxu0 0.0
    %1391 = vmatprep.subr.mxu0 0.0
    %1392 = vmatpush1.xpose.msra.mxu0 0.0
    %1393 = vmatprep.subr.mxu0 0.0
    %1394 = vmatpush1.xpose.msra.mxu0 0.0
    %1395 = vmatprep.subr.mxu0 0.0
    %1396 = vmatpush1.xpose.msra.mxu0 0.0
    %1397 = vmatprep.subr.mxu0 0.0
    %1398 = vmatpush1.xpose.msra.mxu0 0.0
    %1399 = vmatprep.subr.mxu0 0.0
    %1400 = vmatpush1.xpose.msra.mxu0 0.0
    %1401 = vmatprep.subr.mxu0 0.0
    %1402 = vmatpush1.xpose.msra.mxu0 0.0
    %1403 = vmatprep.subr.mxu0 0.0
    %1404 = vmatpush1.xpose.msra.mxu0 0.0
    %1405 = vmatprep.subr.mxu0 0.0
    %1406 = vmatpush1.xpose.msra.mxu0 0.0
    %1407 = vmatprep.subr.mxu0 0.0
    %1408 = vmatpush1.xpose.msra.mxu0 0.0
    %1409 = vmatprep.subr.mxu0 0.0
    %1410 = vmatpush1.xpose.msra.mxu0 0.0
    %1411 = vmatprep.subr.mxu0 0.0
    %1412 = vmatpush1.xpose.msra.mxu0 0.0
    %1413 = vmatprep.subr.mxu0 0.0
    %1414 = vmatpush1.xpose.msra.mxu0 0.0
    %1415 = vmatprep.subr.mxu0 0.0
    %1416 = vmatpush1.xpose.msra.mxu0 0.0
    %1417 = vmatprep.subr.mxu0 0.0
    %1418 = vmatpush1.xpose.msra.mxu0 0.0
    %1419 = vmatprep.subr.mxu0 0.0
    %1420 = vmatpush1.xpose.msra.mxu0 0.0
    %1421 = vmatprep.subr.mxu0 0.0
    %1422 = vmatpush1.xpose.msra.mxu0 0.0
    %1423 = vmatprep.subr.mxu0 0.0
    %1424 = vmatpush1.xpose.msra.mxu0 0.0
    %1425 = vmatprep.mubr.f32.mxu0 0.0
    %1426 = vmatmul.mubr.f32.gmra.mrb[0].mxu0 %v1356
    %v1427 = vpop.f32.mrb[0].mxu0
    %v1428 = vadd.f32 0.0, %v1427
    %v1429 = vpop.f32.mrb[0].mxu0
    %1430 = vdwg.mxu0
    %v1432 = vsel %vm1050, %v372, 0
    %v1435 = vsel %vm1050, %v672, 0
    %1437 = vmatprep.subr.mxu0 0.0
    %1438 = vmatpush1.xpose.msra.mxu0 %v1435
    %1439 = vmatprep.subr.mxu0 0.0
    %1440 = vmatpush1.xpose.msra.mxu0 0.0
    %1441 = vmatprep.subr.mxu0 0.0
    %1442 = vmatpush1.xpose.msra.mxu0 0.0
    %1443 = vmatprep.subr.mxu0 0.0
    %1444 = vmatpush1.xpose.msra.mxu0 0.0
    %1445 = vmatprep.subr.mxu0 0.0
    %1446 = vmatpush1.xpose.msra.mxu0 0.0
    %1447 = vmatprep.subr.mxu0 0.0
    %1448 = vmatpush1.xpose.msra.mxu0 0.0
    %1449 = vmatprep.subr.mxu0 0.0
    %1450 = vmatpush1.xpose.msra.mxu0 0.0
    %1451 = vmatprep.subr.mxu0 0.0
    %1452 = vmatpush1.xpose.msra.mxu0 0.0
    %1453 = vmatprep.subr.mxu0 0.0
    %1454 = vmatpush1.xpose.msra.mxu0 0.0
    %1455 = vmatprep.subr.mxu0 0.0
    %1456 = vmatpush1.xpose.msra.mxu0 0.0
    %1457 = vmatprep.subr.mxu0 0.0
    %1458 = vmatpush1.xpose.msra.mxu0 0.0
    %1459 = vmatprep.subr.mxu0 0.0
    %1460 = vmatpush1.xpose.msra.mxu0 0.0
    %1461 = vmatprep.subr.mxu0 0.0
    %1462 = vmatpush1.xpose.msra.mxu0 0.0
    %1463 = vmatprep.subr.mxu0 0.0
    %1464 = vmatpush1.xpose.msra.mxu0 0.0
    %1465 = vmatprep.subr.mxu0 0.0
    %1466 = vmatpush1.xpose.msra.mxu0 0.0
    %1467 = vmatprep.subr.mxu0 0.0
    %1468 = vmatpush1.xpose.msra.mxu0 0.0
    %1469 = vmatprep.subr.mxu0 0.0
    %1470 = vmatpush1.xpose.msra.mxu0 0.0
    %1471 = vmatprep.subr.mxu0 0.0
    %1472 = vmatpush1.xpose.msra.mxu0 0.0
    %1473 = vmatprep.subr.mxu0 0.0
    %1474 = vmatpush1.xpose.msra.mxu0 0.0
    %1475 = vmatprep.subr.mxu0 0.0
    %1476 = vmatpush1.xpose.msra.mxu0 0.0
    %1477 = vmatprep.subr.mxu0 0.0
    %1478 = vmatpush1.xpose.msra.mxu0 0.0
    %1479 = vmatprep.subr.mxu0 0.0
    %1480 = vmatpush1.xpose.msra.mxu0 0.0
    %1481 = vmatprep.subr.mxu0 0.0
    %1482 = vmatpush1.xpose.msra.mxu0 0.0
    %1483 = vmatprep.subr.mxu0 0.0
    %1484 = vmatpush1.xpose.msra.mxu0 0.0
    %1485 = vmatprep.subr.mxu0 0.0
    %1486 = vmatpush1.xpose.msra.mxu0 0.0
    %1487 = vmatprep.subr.mxu0 0.0
    %1488 = vmatpush1.xpose.msra.mxu0 0.0
    %1489 = vmatprep.subr.mxu0 0.0
    %1490 = vmatpush1.xpose.msra.mxu0 0.0
    %1491 = vmatprep.subr.mxu0 0.0
    %1492 = vmatpush1.xpose.msra.mxu0 0.0
    %1493 = vmatprep.subr.mxu0 0.0
    %1494 = vmatpush1.xpose.msra.mxu0 0.0
    %1495 = vmatprep.subr.mxu0 0.0
    %1496 = vmatpush1.xpose.msra.mxu0 0.0
    %1497 = vmatprep.subr.mxu0 0.0
    %1498 = vmatpush1.xpose.msra.mxu0 0.0
    %1499 = vmatprep.subr.mxu0 0.0
    %1500 = vmatpush1.xpose.msra.mxu0 0.0
    %1501 = vmatprep.mubr.f32.mxu0 0.0
    %1502 = vmatmul.mubr.f32.gmra.mrb[0].mxu0 %v1432
    %v1503 = vpop.f32.mrb[0].mxu0
    %v1504 = vadd.f32 0.0, %v1503
    %v1505 = vpop.f32.mrb[0].mxu0
    %1506 = vdwg.mxu0
    %v1508 = vsel %vm1050, %v442, 0
    %v1511 = vsel %vm1050, %v742, 0
    %1513 = vmatprep.subr.mxu0 0.0
    %1514 = vmatpush1.xpose.msra.mxu0 %v1511
    %1515 = vmatprep.subr.mxu0 0.0
    %1516 = vmatpush1.xpose.msra.mxu0 0.0
    %1517 = vmatprep.subr.mxu0 0.0
    %1518 = vmatpush1.xpose.msra.mxu0 0.0
    %1519 = vmatprep.subr.mxu0 0.0
    %1520 = vmatpush1.xpose.msra.mxu0 0.0
    %1521 = vmatprep.subr.mxu0 0.0
    %1522 = vmatpush1.xpose.msra.mxu0 0.0
    %1523 = vmatprep.subr.mxu0 0.0
    %1524 = vmatpush1.xpose.msra.mxu0 0.0
    %1525 = vmatprep.subr.mxu0 0.0
    %1526 = vmatpush1.xpose.msra.mxu0 0.0
    %1527 = vmatprep.subr.mxu0 0.0
    %1528 = vmatpush1.xpose.msra.mxu0 0.0
    %1529 = vmatprep.subr.mxu0 0.0
    %1530 = vmatpush1.xpose.msra.mxu0 0.0
    %1531 = vmatprep.subr.mxu0 0.0
    %1532 = vmatpush1.xpose.msra.mxu0 0.0
    %1533 = vmatprep.subr.mxu0 0.0
    %1534 = vmatpush1.xpose.msra.mxu0 0.0
    %1535 = vmatprep.subr.mxu0 0.0
    %1536 = vmatpush1.xpose.msra.mxu0 0.0
    %1537 = vmatprep.subr.mxu0 0.0
    %1538 = vmatpush1.xpose.msra.mxu0 0.0
    %1539 = vmatprep.subr.mxu0 0.0
    %1540 = vmatpush1.xpose.msra.mxu0 0.0
    %1541 = vmatprep.subr.mxu0 0.0
    %1542 = vmatpush1.xpose.msra.mxu0 0.0
    %1543 = vmatprep.subr.mxu0 0.0
    %1544 = vmatpush1.xpose.msra.mxu0 0.0
    %1545 = vmatprep.subr.mxu0 0.0
    %1546 = vmatpush1.xpose.msra.mxu0 0.0
    %1547 = vmatprep.subr.mxu0 0.0
    %1548 = vmatpush1.xpose.msra.mxu0 0.0
    %1549 = vmatprep.subr.mxu0 0.0
    %1550 = vmatpush1.xpose.msra.mxu0 0.0
    %1551 = vmatprep.subr.mxu0 0.0
    %1552 = vmatpush1.xpose.msra.mxu0 0.0
    %1553 = vmatprep.subr.mxu0 0.0
    %1554 = vmatpush1.xpose.msra.mxu0 0.0
    %1555 = vmatprep.subr.mxu0 0.0
    %1556 = vmatpush1.xpose.msra.mxu0 0.0
    %1557 = vmatprep.subr.mxu0 0.0
    %1558 = vmatpush1.xpose.msra.mxu0 0.0
    %1559 = vmatprep.subr.mxu0 0.0
    %1560 = vmatpush1.xpose.msra.mxu0 0.0
    %1561 = vmatprep.subr.mxu0 0.0
    %1562 = vmatpush1.xpose.msra.mxu0 0.0
    %1563 = vmatprep.subr.mxu0 0.0
    %1564 = vmatpush1.xpose.msra.mxu0 0.0
    %1565 = vmatprep.subr.mxu0 0.0
    %1566 = vmatpush1.xpose.msra.mxu0 0.0
    %1567 = vmatprep.subr.mxu0 0.0
    %1568 = vmatpush1.xpose.msra.mxu0 0.0
    %1569 = vmatprep.subr.mxu0 0.0
    %1570 = vmatpush1.xpose.msra.mxu0 0.0
    %1571 = vmatprep.subr.mxu0 0.0
    %1572 = vmatpush1.xpose.msra.mxu0 0.0
    %1573 = vmatprep.subr.mxu0 0.0
    %1574 = vmatpush1.xpose.msra.mxu0 0.0
    %1575 = vmatprep.subr.mxu0 0.0
    %1576 = vmatpush1.xpose.msra.mxu0 0.0
    %1577 = vmatprep.mubr.f32.mxu0 0.0
    %1578 = vmatmul.mubr.f32.gmra.mrb[0].mxu0 %v1508
    %v1579 = vpop.f32.mrb[0].mxu0
    %v1580 = vadd.f32 0.0, %v1579
    %v1581 = vpop.f32.mrb[0].mxu0
    %1582 = vdwg.mxu0
    %v1584 = vsel %vm1050, %v447, 0
    %v1587 = vsel %vm1050, %v747, 0
    %1589 = vmatprep.subr.mxu0 0.0
    %1590 = vmatpush1.xpose.msra.mxu0 %v1587
    %1591 = vmatprep.subr.mxu0 0.0
    %1592 = vmatpush1.xpose.msra.mxu0 0.0
    %1593 = vmatprep.subr.mxu0 0.0
    %1594 = vmatpush1.xpose.msra.mxu0 0.0
    %1595 = vmatprep.subr.mxu0 0.0
    %1596 = vmatpush1.xpose.msra.mxu0 0.0
    %1597 = vmatprep.subr.mxu0 0.0
    %1598 = vmatpush1.xpose.msra.mxu0 0.0
    %1599 = vmatprep.subr.mxu0 0.0
    %1600 = vmatpush1.xpose.msra.mxu0 0.0
    %1601 = vmatprep.subr.mxu0 0.0
    %1602 = vmatpush1.xpose.msra.mxu0 0.0
    %1603 = vmatprep.subr.mxu0 0.0
    %1604 = vmatpush1.xpose.msra.mxu0 0.0
    %1605 = vmatprep.subr.mxu0 0.0
    %1606 = vmatpush1.xpose.msra.mxu0 0.0
    %1607 = vmatprep.subr.mxu0 0.0
    %1608 = vmatpush1.xpose.msra.mxu0 0.0
    %1609 = vmatprep.subr.mxu0 0.0
    %1610 = vmatpush1.xpose.msra.mxu0 0.0
    %1611 = vmatprep.subr.mxu0 0.0
    %1612 = vmatpush1.xpose.msra.mxu0 0.0
    %1613 = vmatprep.subr.mxu0 0.0
    %1614 = vmatpush1.xpose.msra.mxu0 0.0
    %1615 = vmatprep.subr.mxu0 0.0
    %1616 = vmatpush1.xpose.msra.mxu0 0.0
    %1617 = vmatprep.subr.mxu0 0.0
    %1618 = vmatpush1.xpose.msra.mxu0 0.0
    %1619 = vmatprep.subr.mxu0 0.0
    %1620 = vmatpush1.xpose.msra.mxu0 0.0
    %1621 = vmatprep.subr.mxu0 0.0
    %1622 = vmatpush1.xpose.msra.mxu0 0.0
    %1623 = vmatprep.subr.mxu0 0.0
    %1624 = vmatpush1.xpose.msra.mxu0 0.0
    %1625 = vmatprep.subr.mxu0 0.0
    %1626 = vmatpush1.xpose.msra.mxu0 0.0
    %1627 = vmatprep.subr.mxu0 0.0
    %1628 = vmatpush1.xpose.msra.mxu0 0.0
    %1629 = vmatprep.subr.mxu0 0.0
    %1630 = vmatpush1.xpose.msra.mxu0 0.0
    %1631 = vmatprep.subr.mxu0 0.0
    %1632 = vmatpush1.xpose.msra.mxu0 0.0
    %1633 = vmatprep.subr.mxu0 0.0
    %1634 = vmatpush1.xpose.msra.mxu0 0.0
    %1635 = vmatprep.subr.mxu0 0.0
    %1636 = vmatpush1.xpose.msra.mxu0 0.0
    %1637 = vmatprep.subr.mxu0 0.0
    %1638 = vmatpush1.xpose.msra.mxu0 0.0
    %1639 = vmatprep.subr.mxu0 0.0
    %1640 = vmatpush1.xpose.msra.mxu0 0.0
    %1641 = vmatprep.subr.mxu0 0.0
    %1642 = vmatpush1.xpose.msra.mxu0 0.0
    %1643 = vmatprep.subr.mxu0 0.0
    %1644 = vmatpush1.xpose.msra.mxu0 0.0
    %1645 = vmatprep.subr.mxu0 0.0
    %1646 = vmatpush1.xpose.msra.mxu0 0.0
    %1647 = vmatprep.subr.mxu0 0.0
    %1648 = vmatpush1.xpose.msra.mxu0 0.0
    %1649 = vmatprep.subr.mxu0 0.0
    %1650 = vmatpush1.xpose.msra.mxu0 0.0
    %1651 = vmatprep.subr.mxu0 0.0
    %1652 = vmatpush1.xpose.msra.mxu0 0.0
    %1653 = vmatprep.mubr.f32.mxu0 0.0
    %1654 = vmatmul.mubr.f32.gmra.mrb[0].mxu0 %v1584
    %v1655 = vpop.f32.mrb[0].mxu0
    %v1656 = vadd.f32 0.0, %v1655
    %v1657 = vpop.f32.mrb[0].mxu0
    %1658 = vdwg.mxu0
    %v1659 = vsel %vm1050, %v1124, -inf
    %1660 = vmax.xlane.f32.xlu0 %v1659
    %v1661 = vpop.xlane.xlu0 %1660
    %v1662 = vsel %vm1050, %v1200, -inf
    %1663 = vmax.xlane.f32.xlu0 %v1662
    %v1664 = vpop.xlane.xlu0 %1663
    %v1665 = vsel %vm1050, %v1276, -inf
    %1666 = vmax.xlane.f32.xlu0 %v1665
    %v1667 = vpop.xlane.xlu0 %1666
    %v1668 = vsel %vm1050, %v1352, -inf
    %1669 = vmax.xlane.f32.xlu0 %v1668
    %v1670 = vpop.xlane.xlu0 %1669
    %v1671 = vsel %vm1050, %v1428, -inf
    %1672 = vmax.xlane.f32.xlu0 %v1671
    %v1673 = vpop.xlane.xlu0 %1672
    %v1674 = vsel %vm1050, %v1504, -inf
    %1675 = vmax.xlane.f32.xlu0 %v1674
    %v1676 = vpop.xlane.xlu0 %1675
    %v1677 = vsel %vm1050, %v1580, -inf
    %1678 = vmax.xlane.f32.xlu0 %v1677
    %v1679 = vpop.xlane.xlu0 %1678
    %v1680 = vsel %vm1050, %v1656, -inf
    %1681 = vmax.xlane.f32.xlu0 %v1680
    %v1682 = vpop.xlane.xlu0 %1681
    %v1683 = vsub.f32 %v1124, %v1661
    %v1684 = vsub.f32 %v1200, %v1664
    %v1685 = vsub.f32 %v1276, %v1667
    %v1686 = vsub.f32 %v1352, %v1670
    %v1687 = vsub.f32 %v1428, %v1673
    %v1688 = vsub.f32 %v1504, %v1676
    %v1689 = vsub.f32 %v1580, %v1679
    %v1690 = vsub.f32 %v1656, %v1682
    %v1691 = vmul.f32 %v1683, 1.442695
    %v1692 = vpow.pop %v1691
    %v1693 = vmul.f32 %v1684, 1.442695
    %v1694 = vpow.pop %v1693
    %v1695 = vmul.f32 %v1685, 1.442695
    %v1696 = vpow.pop %v1695
    %v1697 = vmul.f32 %v1686, 1.442695
    %v1698 = vpow.pop %v1697
    %v1699 = vmul.f32 %v1687, 1.442695
    %v1700 = vpow.pop %v1699
    %v1701 = vmul.f32 %v1688, 1.442695
    %v1702 = vpow.pop %v1701
    %v1703 = vmul.f32 %v1689, 1.442695
    %v1704 = vpow.pop %v1703
    %v1705 = vmul.f32 %v1690, 1.442695
    %v1706 = vpow.pop %v1705
    %v1707 = vsel %vm1050, %v1692, 0.0
    %1708 = vadd.xlane.f32.xlu0 %v1707
    %v1709 = vpop.xlane.xlu0 %1708
    %v1710 = vsel %vm1050, %v1694, 0.0
    %1711 = vadd.xlane.f32.xlu0 %v1710
    %v1712 = vpop.xlane.xlu0 %1711
    %v1713 = vsel %vm1050, %v1696, 0.0
    %1714 = vadd.xlane.f32.xlu0 %v1713
    %v1715 = vpop.xlane.xlu0 %1714
    %v1716 = vsel %vm1050, %v1698, 0.0
    %1717 = vadd.xlane.f32.xlu0 %v1716
    %v1718 = vpop.xlane.xlu0 %1717
    %v1719 = vsel %vm1050, %v1700, 0.0
    %1720 = vadd.xlane.f32.xlu0 %v1719
    %v1721 = vpop.xlane.xlu0 %1720
    %v1722 = vsel %vm1050, %v1702, 0.0
    %1723 = vadd.xlane.f32.xlu0 %v1722
    %v1724 = vpop.xlane.xlu0 %1723
    %v1725 = vsel %vm1050, %v1704, 0.0
    %1726 = vadd.xlane.f32.xlu0 %v1725
    %v1727 = vpop.xlane.xlu0 %1726
    %v1728 = vsel %vm1050, %v1706, 0.0
    %1729 = vadd.xlane.f32.xlu0 %v1728
    %v1730 = vpop.xlane.xlu0 %1729
    %v1731 = vrcp.pop %v1709
    %v1732 = vrcp.pop %v1712
    %v1733 = vrcp.pop %v1715
    %v1734 = vrcp.pop %v1718
    %v1735 = vrcp.pop %v1721
    %v1736 = vrcp.pop %v1724
    %v1737 = vrcp.pop %v1727
    %v1738 = vrcp.pop %v1730
    %v1739 = vmul.f32 %v1709, %v1731
    %v1740 = vmul.f32 %v1712, %v1732
    %v1741 = vmul.f32 %v1715, %v1733
    %v1742 = vmul.f32 %v1718, %v1734
    %v1743 = vmul.f32 %v1721, %v1735
    %v1744 = vmul.f32 %v1724, %v1736
    %v1745 = vmul.f32 %v1727, %v1737
    %v1746 = vmul.f32 %v1730, %v1738
    %v1747 = vsub.f32 2.0, %v1739
    %v1748 = vsub.f32 2.0, %v1740
    %v1749 = vsub.f32 2.0, %v1741
    %v1750 = vsub.f32 2.0, %v1742
    %v1751 = vsub.f32 2.0, %v1743
    %v1752 = vsub.f32 2.0, %v1744
    %v1753 = vsub.f32 2.0, %v1745
    %v1754 = vsub.f32 2.0, %v1746
    %v1755 = vmul.f32 %v1731, %v1747
    %v1756 = vmul.f32 %v1732, %v1748
    %v1757 = vmul.f32 %v1733, %v1749
    %v1758 = vmul.f32 %v1734, %v1750
    %v1759 = vmul.f32 %v1735, %v1751
    %v1760 = vmul.f32 %v1736, %v1752
    %v1761 = vmul.f32 %v1737, %v1753
    %v1762 = vmul.f32 %v1738, %v1754
    %v1763 = vmul.f32 %v1692, %v1755
    %v1764 = vmul.f32 %v1694, %v1756
    %v1765 = vmul.f32 %v1696, %v1757
    %v1766 = vmul.f32 %v1698, %v1758
    %v1767 = vmul.f32 %v1700, %v1759
    %v1768 = vmul.f32 %v1702, %v1760
    %v1769 = vmul.f32 %v1704, %v1761
    %v1770 = vmul.f32 %v1706, %v1762
    %v1772 = vsel %vm1050, %v1763, 0
    %1774 = vmatprep.subr.mxu0 0.0
    %1775 = vmatpush1.msra.mxu0 %v817
    %1776 = vmatprep.subr.mxu0 0.0
    %1777 = vmatpush1.msra.mxu0 0.0
    %1778 = vmatprep.subr.mxu0 0.0
    %1779 = vmatpush1.msra.mxu0 0.0
    %1780 = vmatprep.subr.mxu0 0.0
    %1781 = vmatpush1.msra.mxu0 0.0
    %1782 = vmatprep.subr.mxu0 0.0
    %1783 = vmatpush1.msra.mxu0 0.0
    %1784 = vmatprep.subr.mxu0 0.0
    %1785 = vmatpush1.msra.mxu0 0.0
    %1786 = vmatprep.subr.mxu0 0.0
    %1787 = vmatpush1.msra.mxu0 0.0
    %1788 = vmatprep.subr.mxu0 0.0
    %1789 = vmatpush1.msra.mxu0 0.0
    %1790 = vmatprep.subr.mxu0 0.0
    %1791 = vmatpush1.msra.mxu0 0.0
    %1792 = vmatprep.subr.mxu0 0.0
    %1793 = vmatpush1.msra.mxu0 0.0
    %1794 = vmatprep.subr.mxu0 0.0
    %1795 = vmatpush1.msra.mxu0 0.0
    %1796 = vmatprep.subr.mxu0 0.0
    %1797 = vmatpush1.msra.mxu0 0.0
    %1798 = vmatprep.subr.mxu0 0.0
    %1799 = vmatpush1.msra.mxu0 0.0
    %1800 = vmatprep.subr.mxu0 0.0
    %1801 = vmatpush1.msra.mxu0 0.0
    %1802 = vmatprep.subr.mxu0 0.0
    %1803 = vmatpush1.msra.mxu0 0.0
    %1804 = vmatprep.subr.mxu0 0.0
    %1805 = vmatpush1.msra.mxu0 0.0
    %1806 = vmatprep.subr.mxu0 0.0
    %1807 = vmatpush1.msra.mxu0 0.0
    %1808 = vmatprep.subr.mxu0 0.0
    %1809 = vmatpush1.msra.mxu0 0.0
    %1810 = vmatprep.subr.mxu0 0.0
    %1811 = vmatpush1.msra.mxu0 0.0
    %1812 = vmatprep.subr.mxu0 0.0
    %1813 = vmatpush1.msra.mxu0 0.0
    %1814 = vmatprep.subr.mxu0 0.0
    %1815 = vmatpush1.msra.mxu0 0.0
    %1816 = vmatprep.subr.mxu0 0.0
    %1817 = vmatpush1.msra.mxu0 0.0
    %1818 = vmatprep.subr.mxu0 0.0
    %1819 = vmatpush1.msra.mxu0 0.0
    %1820 = vmatprep.subr.mxu0 0.0
    %1821 = vmatpush1.msra.mxu0 0.0
    %1822 = vmatprep.subr.mxu0 0.0
    %1823 = vmatpush1.msra.mxu0 0.0
    %1824 = vmatprep.subr.mxu0 0.0
    %1825 = vmatpush1.msra.mxu0 0.0
    %1826 = vmatprep.subr.mxu0 0.0
    %1827 = vmatpush1.msra.mxu0 0.0
    %1828 = vmatprep.subr.mxu0 0.0
    %1829 = vmatpush1.msra.mxu0 0.0
    %1830 = vmatprep.subr.mxu0 0.0
    %1831 = vmatpush1.msra.mxu0 0.0
    %1832 = vmatprep.subr.mxu0 0.0
    %1833 = vmatpush1.msra.mxu0 0.0
    %1834 = vmatprep.subr.mxu0 0.0
    %1835 = vmatpush1.msra.mxu0 0.0
    %1836 = vmatprep.subr.mxu0 0.0
    %1837 = vmatpush1.msra.mxu0 0.0
    %1838 = vmatprep.mubr.f32.mxu0 0.0
    %1839 = vmatmul.mubr.f32.gmra.mrb[0].mxu0 %v1772
    %v1840 = vpop.f32.mrb[0].mxu0
    %v1841 = vadd.f32 0.0, %v1840
    %v1842 = vpop.f32.mrb[0].mxu0
    %1843 = vdwg.mxu0
    %v1845 = vsel %vm1050, %v1764, 0
    %1847 = vmatprep.subr.mxu0 0.0
    %1848 = vmatpush1.msra.mxu0 %v822
    %1849 = vmatprep.subr.mxu0 0.0
    %1850 = vmatpush1.msra.mxu0 0.0
    %1851 = vmatprep.subr.mxu0 0.0
    %1852 = vmatpush1.msra.mxu0 0.0
    %1853 = vmatprep.subr.mxu0 0.0
    %1854 = vmatpush1.msra.mxu0 0.0
    %1855 = vmatprep.subr.mxu0 0.0
    %1856 = vmatpush1.msra.mxu0 0.0
    %1857 = vmatprep.subr.mxu0 0.0
    %1858 = vmatpush1.msra.mxu0 0.0
    %1859 = vmatprep.subr.mxu0 0.0
    %1860 = vmatpush1.msra.mxu0 0.0
    %1861 = vmatprep.subr.mxu0 0.0
    %1862 = vmatpush1.msra.mxu0 0.0
    %1863 = vmatprep.subr.mxu0 0.0
    %1864 = vmatpush1.msra.mxu0 0.0
    %1865 = vmatprep.subr.mxu0 0.0
    %1866 = vmatpush1.msra.mxu0 0.0
    %1867 = vmatprep.subr.mxu0 0.0
    %1868 = vmatpush1.msra.mxu0 0.0
    %1869 = vmatprep.subr.mxu0 0.0
    %1870 = vmatpush1.msra.mxu0 0.0
    %1871 = vmatprep.subr.mxu0 0.0
    %1872 = vmatpush1.msra.mxu0 0.0
    %1873 = vmatprep.subr.mxu0 0.0
    %1874 = vmatpush1.msra.mxu0 0.0
    %1875 = vmatprep.subr.mxu0 0.0
    %1876 = vmatpush1.msra.mxu0 0.0
    %1877 = vmatprep.subr.mxu0 0.0
    %1878 = vmatpush1.msra.mxu0 0.0
    %1879 = vmatprep.subr.mxu0 0.0
    %1880 = vmatpush1.msra.mxu0 0.0
    %1881 = vmatprep.subr.mxu0 0.0
    %1882 = vmatpush1.msra.mxu0 0.0
    %1883 = vmatprep.subr.mxu0 0.0
    %1884 = vmatpush1.msra.mxu0 0.0
    %1885 = vmatprep.subr.mxu0 0.0
    %1886 = vmatpush1.msra.mxu0 0.0
    %1887 = vmatprep.subr.mxu0 0.0
    %1888 = vmatpush1.msra.mxu0 0.0
    %1889 = vmatprep.subr.mxu0 0.0
    %1890 = vmatpush1.msra.mxu0 0.0
    %1891 = vmatprep.subr.mxu0 0.0
    %1892 = vmatpush1.msra.mxu0 0.0
    %1893 = vmatprep.subr.mxu0 0.0
    %1894 = vmatpush1.msra.mxu0 0.0
    %1895 = vmatprep.subr.mxu0 0.0
    %1896 = vmatpush1.msra.mxu0 0.0
    %1897 = vmatprep.subr.mxu0 0.0
    %1898 = vmatpush1.msra.mxu0 0.0
    %1899 = vmatprep.subr.mxu0 0.0
    %1900 = vmatpush1.msra.mxu0 0.0
    %1901 = vmatprep.subr.mxu0 0.0
    %1902 = vmatpush1.msra.mxu0 0.0
    %1903 = vmatprep.subr.mxu0 0.0
    %1904 = vmatpush1.msra.mxu0 0.0
    %1905 = vmatprep.subr.mxu0 0.0
    %1906 = vmatpush1.msra.mxu0 0.0
    %1907 = vmatprep.subr.mxu0 0.0
    %1908 = vmatpush1.msra.mxu0 0.0
    %1909 = vmatprep.subr.mxu0 0.0
    %1910 = vmatpush1.msra.mxu0 0.0
    %1911 = vmatprep.mubr.f32.mxu0 0.0
    %1912 = vmatmul.mubr.f32.gmra.mrb[0].mxu0 %v1845
    %v1913 = vpop.f32.mrb[0].mxu0
    %v1914 = vadd.f32 0.0, %v1913
    %v1915 = vpop.f32.mrb[0].mxu0
    %1916 = vdwg.mxu0
    %v1918 = vsel %vm1050, %v1765, 0
    %1920 = vmatprep.subr.mxu0 0.0
    %1921 = vmatpush1.msra.mxu0 %v892
    %1922 = vmatprep.subr.mxu0 0.0
    %1923 = vmatpush1.msra.mxu0 0.0
    %1924 = vmatprep.subr.mxu0 0.0
    %1925 = vmatpush1.msra.mxu0 0.0
    %1926 = vmatprep.subr.mxu0 0.0
    %1927 = vmatpush1.msra.mxu0 0.0
    %1928 = vmatprep.subr.mxu0 0.0
    %1929 = vmatpush1.msra.mxu0 0.0
    %1930 = vmatprep.subr.mxu0 0.0
    %1931 = vmatpush1.msra.mxu0 0.0
    %1932 = vmatprep.subr.mxu0 0.0
    %1933 = vmatpush1.msra.mxu0 0.0
    %1934 = vmatprep.subr.mxu0 0.0
    %1935 = vmatpush1.msra.mxu0 0.0
    %1936 = vmatprep.subr.mxu0 0.0
    %1937 = vmatpush1.msra.mxu0 0.0
    %1938 = vmatprep.subr.mxu0 0.0
    %1939 = vmatpush1.msra.mxu0 0.0
    %1940 = vmatprep.subr.mxu0 0.0
    %1941 = vmatpush1.msra.mxu0 0.0
    %1942 = vmatprep.subr.mxu0 0.0
    %1943 = vmatpush1.msra.mxu0 0.0
    %1944 = vmatprep.subr.mxu0 0.0
    %1945 = vmatpush1.msra.mxu0 0.0
    %1946 = vmatprep.subr.mxu0 0.0
    %1947 = vmatpush1.msra.mxu0 0.0
    %1948 = vmatprep.subr.mxu0 0.0
    %1949 = vmatpush1.msra.mxu0 0.0
    %1950 = vmatprep.subr.mxu0 0.0
    %1951 = vmatpush1.msra.mxu0 0.0
    %1952 = vmatprep.subr.mxu0 0.0
    %1953 = vmatpush1.msra.mxu0 0.0
    %1954 = vmatprep.subr.mxu0 0.0
    %1955 = vmatpush1.msra.mxu0 0.0
    %1956 = vmatprep.subr.mxu0 0.0
    %1957 = vmatpush1.msra.mxu0 0.0
    %1958 = vmatprep.subr.mxu0 0.0
    %1959 = vmatpush1.msra.mxu0 0.0
    %1960 = vmatprep.subr.mxu0 0.0
    %1961 = vmatpush1.msra.mxu0 0.0
    %1962 = vmatprep.subr.mxu0 0.0
    %1963 = vmatpush1.msra.mxu0 0.0
    %1964 = vmatprep.subr.mxu0 0.0
    %1965 = vmatpush1.msra.mxu0 0.0
    %1966 = vmatprep.subr.mxu0 0.0
    %1967 = vmatpush1.msra.mxu0 0.0
    %1968 = vmatprep.subr.mxu0 0.0
    %1969 = vmatpush1.msra.mxu0 0.0
    %1970 = vmatprep.subr.mxu0 0.0
    %1971 = vmatpush1.msra.mxu0 0.0
    %1972 = vmatprep.subr.mxu0 0.0
    %1973 = vmatpush1.msra.mxu0 0.0
    %1974 = vmatprep.subr.mxu0 0.0
    %1975 = vmatpush1.msra.mxu0 0.0
    %1976 = vmatprep.subr.mxu0 0.0
    %1977 = vmatpush1.msra.mxu0 0.0
    %1978 = vmatprep.subr.mxu0 0.0
    %1979 = vmatpush1.msra.mxu0 0.0
    %1980 = vmatprep.subr.mxu0 0.0
    %1981 = vmatpush1.msra.mxu0 0.0
    %1982 = vmatprep.subr.mxu0 0.0
    %1983 = vmatpush1.msra.mxu0 0.0
    %1984 = vmatprep.mubr.f32.mxu0 0.0
    %1985 = vmatmul.mubr.f32.gmra.mrb[0].mxu0 %v1918
    %v1986 = vpop.f32.mrb[0].mxu0
    %v1987 = vadd.f32 0.0, %v1986
    %v1988 = vpop.f32.mrb[0].mxu0
    %1989 = vdwg.mxu0
    %v1991 = vsel %vm1050, %v1766, 0
    %1993 = vmatprep.subr.mxu0 0.0
    %1994 = vmatpush1.msra.mxu0 %v897
    %1995 = vmatprep.subr.mxu0 0.0
    %1996 = vmatpush1.msra.mxu0 0.0
    %1997 = vmatprep.subr.mxu0 0.0
    %1998 = vmatpush1.msra.mxu0 0.0
    %1999 = vmatprep.subr.mxu0 0.0
    %2000 = vmatpush1.msra.mxu0 0.0
    %2001 = vmatprep.subr.mxu0 0.0
    %2002 = vmatpush1.msra.mxu0 0.0
    %2003 = vmatprep.subr.mxu0 0.0
    %2004 = vmatpush1.msra.mxu0 0.0
    %2005 = vmatprep.subr.mxu0 0.0
    %2006 = vmatpush1.msra.mxu0 0.0
    %2007 = vmatprep.subr.mxu0 0.0
    %2008 = vmatpush1.msra.mxu0 0.0
    %2009 = vmatprep.subr.mxu0 0.0
    %2010 = vmatpush1.msra.mxu0 0.0
    %2011 = vmatprep.subr.mxu0 0.0
    %2012 = vmatpush1.msra.mxu0 0.0
    %2013 = vmatprep.subr.mxu0 0.0
    %2014 = vmatpush1.msra.mxu0 0.0
    %2015 = vmatprep.subr.mxu0 0.0
    %2016 = vmatpush1.msra.mxu0 0.0
    %2017 = vmatprep.subr.mxu0 0.0
    %2018 = vmatpush1.msra.mxu0 0.0
    %2019 = vmatprep.subr.mxu0 0.0
    %2020 = vmatpush1.msra.mxu0 0.0
    %2021 = vmatprep.subr.mxu0 0.0
    %2022 = vmatpush1.msra.mxu0 0.0
    %2023 = vmatprep.subr.mxu0 0.0
    %2024 = vmatpush1.msra.mxu0 0.0
    %2025 = vmatprep.subr.mxu0 0.0
    %2026 = vmatpush1.msra.mxu0 0.0
    %2027 = vmatprep.subr.mxu0 0.0
    %2028 = vmatpush1.msra.mxu0 0.0
    %2029 = vmatprep.subr.mxu0 0.0
    %2030 = vmatpush1.msra.mxu0 0.0
    %2031 = vmatprep.subr.mxu0 0.0
    %2032 = vmatpush1.msra.mxu0 0.0
    %2033 = vmatprep.subr.mxu0 0.0
    %2034 = vmatpush1.msra.mxu0 0.0
    %2035 = vmatprep.subr.mxu0 0.0
    %2036 = vmatpush1.msra.mxu0 0.0
    %2037 = vmatprep.subr.mxu0 0.0
    %2038 = vmatpush1.msra.mxu0 0.0
    %2039 = vmatprep.subr.mxu0 0.0
    %2040 = vmatpush1.msra.mxu0 0.0
    %2041 = vmatprep.subr.mxu0 0.0
    %2042 = vmatpush1.msra.mxu0 0.0
    %2043 = vmatprep.subr.mxu0 0.0
    %2044 = vmatpush1.msra.mxu0 0.0
    %2045 = vmatprep.subr.mxu0 0.0
    %2046 = vmatpush1.msra.mxu0 0.0
    %2047 = vmatprep.subr.mxu0 0.0
    %2048 = vmatpush1.msra.mxu0 0.0
    %2049 = vmatprep.subr.mxu0 0.0
    %2050 = vmatpush1.msra.mxu0 0.0
    %2051 = vmatprep.subr.mxu0 0.0
    %2052 = vmatpush1.msra.mxu0 0.0
    %2053 = vmatprep.subr.mxu0 0.0
    %2054 = vmatpush1.msra.mxu0 0.0
    %2055 = vmatprep.subr.mxu0 0.0
    %2056 = vmatpush1.msra.mxu0 0.0
    %2057 = vmatprep.mubr.f32.mxu0 0.0
    %2058 = vmatmul.mubr.f32.gmra.mrb[0].mxu0 %v1991
    %v2059 = vpop.f32.mrb[0].mxu0
    %v2060 = vadd.f32 0.0, %v2059
    %v2061 = vpop.f32.mrb[0].mxu0
    %2062 = vdwg.mxu0
    %v2064 = vsel %vm1050, %v1767, 0
    %2066 = vmatprep.subr.mxu0 0.0
    %2067 = vmatpush1.msra.mxu0 %v967
    %2068 = vmatprep.subr.mxu0 0.0
    %2069 = vmatpush1.msra.mxu0 0.0
    %2070 = vmatprep.subr.mxu0 0.0
    %2071 = vmatpush1.msra.mxu0 0.0
    %2072 = vmatprep.subr.mxu0 0.0
    %2073 = vmatpush1.msra.mxu0 0.0
    %2074 = vmatprep.subr.mxu0 0.0
    %2075 = vmatpush1.msra.mxu0 0.0
    %2076 = vmatprep.subr.mxu0 0.0
    %2077 = vmatpush1.msra.mxu0 0.0
    %2078 = vmatprep.subr.mxu0 0.0
    %2079 = vmatpush1.msra.mxu0 0.0
    %2080 = vmatprep.subr.mxu0 0.0
    %2081 = vmatpush1.msra.mxu0 0.0
    %2082 = vmatprep.subr.mxu0 0.0
    %2083 = vmatpush1.msra.mxu0 0.0
    %2084 = vmatprep.subr.mxu0 0.0
    %2085 = vmatpush1.msra.mxu0 0.0
    %2086 = vmatprep.subr.mxu0 0.0
    %2087 = vmatpush1.msra.mxu0 0.0
    %2088 = vmatprep.subr.mxu0 0.0
    %2089 = vmatpush1.msra.mxu0 0.0
    %2090 = vmatprep.subr.mxu0 0.0
    %2091 = vmatpush1.msra.mxu0 0.0
    %2092 = vmatprep.subr.mxu0 0.0
    %2093 = vmatpush1.msra.mxu0 0.0
    %2094 = vmatprep.subr.mxu0 0.0
    %2095 = vmatpush1.msra.mxu0 0.0
    %2096 = vmatprep.subr.mxu0 0.0
    %2097 = vmatpush1.msra.mxu0 0.0
    %2098 = vmatprep.subr.mxu0 0.0
    %2099 = vmatpush1.msra.mxu0 0.0
    %2100 = vmatprep.subr.mxu0 0.0
    %2101 = vmatpush1.msra.mxu0 0.0
    %2102 = vmatprep.subr.mxu0 0.0
    %2103 = vmatpush1.msra.mxu0 0.0
    %2104 = vmatprep.subr.mxu0 0.0
    %2105 = vmatpush1.msra.mxu0 0.0
    %2106 = vmatprep.subr.mxu0 0.0
    %2107 = vmatpush1.msra.mxu0 0.0
    %2108 = vmatprep.subr.mxu0 0.0
    %2109 = vmatpush1.msra.mxu0 0.0
    %2110 = vmatprep.subr.mxu0 0.0
    %2111 = vmatpush1.msra.mxu0 0.0
    %2112 = vmatprep.subr.mxu0 0.0
    %2113 = vmatpush1.msra.mxu0 0.0
    %2114 = vmatprep.subr.mxu0 0.0
    %2115 = vmatpush1.msra.mxu0 0.0
    %2116 = vmatprep.subr.mxu0 0.0
    %2117 = vmatpush1.msra.mxu0 0.0
    %2118 = vmatprep.subr.mxu0 0.0
    %2119 = vmatpush1.msra.mxu0 0.0
    %2120 = vmatprep.subr.mxu0 0.0
    %2121 = vmatpush1.msra.mxu0 0.0
    %2122 = vmatprep.subr.mxu0 0.0
    %2123 = vmatpush1.msra.mxu0 0.0
    %2124 = vmatprep.subr.mxu0 0.0
    %2125 = vmatpush1.msra.mxu0 0.0
    %2126 = vmatprep.subr.mxu0 0.0
    %2127 = vmatpush1.msra.mxu0 0.0
    %2128 = vmatprep.subr.mxu0 0.0
    %2129 = vmatpush1.msra.mxu0 0.0
    %2130 = vmatprep.mubr.f32.mxu0 0.0
    %2131 = vmatmul.mubr.f32.gmra.mrb[0].mxu0 %v2064
    %v2132 = vpop.f32.mrb[0].mxu0
    %v2133 = vadd.f32 0.0, %v2132
    %v2134 = vpop.f32.mrb[0].mxu0
    %2135 = vdwg.mxu0
    %v2137 = vsel %vm1050, %v1768, 0
    %2139 = vmatprep.subr.mxu0 0.0
    %2140 = vmatpush1.msra.mxu0 %v972
    %2141 = vmatprep.subr.mxu0 0.0
    %2142 = vmatpush1.msra.mxu0 0.0
    %2143 = vmatprep.subr.mxu0 0.0
    %2144 = vmatpush1.msra.mxu0 0.0
    %2145 = vmatprep.subr.mxu0 0.0
    %2146 = vmatpush1.msra.mxu0 0.0
    %2147 = vmatprep.subr.mxu0 0.0
    %2148 = vmatpush1.msra.mxu0 0.0
    %2149 = vmatprep.subr.mxu0 0.0
    %2150 = vmatpush1.msra.mxu0 0.0
    %2151 = vmatprep.subr.mxu0 0.0
    %2152 = vmatpush1.msra.mxu0 0.0
    %2153 = vmatprep.subr.mxu0 0.0
    %2154 = vmatpush1.msra.mxu0 0.0
    %2155 = vmatprep.subr.mxu0 0.0
    %2156 = vmatpush1.msra.mxu0 0.0
    %2157 = vmatprep.subr.mxu0 0.0
    %2158 = vmatpush1.msra.mxu0 0.0
    %2159 = vmatprep.subr.mxu0 0.0
    %2160 = vmatpush1.msra.mxu0 0.0
    %2161 = vmatprep.subr.mxu0 0.0
    %2162 = vmatpush1.msra.mxu0 0.0
    %2163 = vmatprep.subr.mxu0 0.0
    %2164 = vmatpush1.msra.mxu0 0.0
    %2165 = vmatprep.subr.mxu0 0.0
    %2166 = vmatpush1.msra.mxu0 0.0
    %2167 = vmatprep.subr.mxu0 0.0
    %2168 = vmatpush1.msra.mxu0 0.0
    %2169 = vmatprep.subr.mxu0 0.0
    %2170 = vmatpush1.msra.mxu0 0.0
    %2171 = vmatprep.subr.mxu0 0.0
    %2172 = vmatpush1.msra.mxu0 0.0
    %2173 = vmatprep.subr.mxu0 0.0
    %2174 = vmatpush1.msra.mxu0 0.0
    %2175 = vmatprep.subr.mxu0 0.0
    %2176 = vmatpush1.msra.mxu0 0.0
    %2177 = vmatprep.subr.mxu0 0.0
    %2178 = vmatpush1.msra.mxu0 0.0
    %2179 = vmatprep.subr.mxu0 0.0
    %2180 = vmatpush1.msra.mxu0 0.0
    %2181 = vmatprep.subr.mxu0 0.0
    %2182 = vmatpush1.msra.mxu0 0.0
    %2183 = vmatprep.subr.mxu0 0.0
    %2184 = vmatpush1.msra.mxu0 0.0
    %2185 = vmatprep.subr.mxu0 0.0
    %2186 = vmatpush1.msra.mxu0 0.0
    %2187 = vmatprep.subr.mxu0 0.0
    %2188 = vmatpush1.msra.mxu0 0.0
    %2189 = vmatprep.subr.mxu0 0.0
    %2190 = vmatpush1.msra.mxu0 0.0
    %2191 = vmatprep.subr.mxu0 0.0
    %2192 = vmatpush1.msra.mxu0 0.0
    %2193 = vmatprep.subr.mxu0 0.0
    %2194 = vmatpush1.msra.mxu0 0.0
    %2195 = vmatprep.subr.mxu0 0.0
    %2196 = vmatpush1.msra.mxu0 0.0
    %2197 = vmatprep.subr.mxu0 0.0
    %2198 = vmatpush1.msra.mxu0 0.0
    %2199 = vmatprep.subr.mxu0 0.0
    %2200 = vmatpush1.msra.mxu0 0.0
    %2201 = vmatprep.subr.mxu0 0.0
    %2202 = vmatpush1.msra.mxu0 0.0
    %2203 = vmatprep.mubr.f32.mxu0 0.0
    %2204 = vmatmul.mubr.f32.gmra.mrb[0].mxu0 %v2137
    %v2205 = vpop.f32.mrb[0].mxu0
    %v2206 = vadd.f32 0.0, %v2205
    %v2207 = vpop.f32.mrb[0].mxu0
    %2208 = vdwg.mxu0
    %v2210 = vsel %vm1050, %v1769, 0
    %2212 = vmatprep.subr.mxu0 0.0
    %2213 = vmatpush1.msra.mxu0 %v1042
    %2214 = vmatprep.subr.mxu0 0.0
    %2215 = vmatpush1.msra.mxu0 0.0
    %2216 = vmatprep.subr.mxu0 0.0
    %2217 = vmatpush1.msra.mxu0 0.0
    %2218 = vmatprep.subr.mxu0 0.0
    %2219 = vmatpush1.msra.mxu0 0.0
    %2220 = vmatprep.subr.mxu0 0.0
    %2221 = vmatpush1.msra.mxu0 0.0
    %2222 = vmatprep.subr.mxu0 0.0
    %2223 = vmatpush1.msra.mxu0 0.0
    %2224 = vmatprep.subr.mxu0 0.0
    %2225 = vmatpush1.msra.mxu0 0.0
    %2226 = vmatprep.subr.mxu0 0.0
    %2227 = vmatpush1.msra.mxu0 0.0
    %2228 = vmatprep.subr.mxu0 0.0
    %2229 = vmatpush1.msra.mxu0 0.0
    %2230 = vmatprep.subr.mxu0 0.0
    %2231 = vmatpush1.msra.mxu0 0.0
    %2232 = vmatprep.subr.mxu0 0.0
    %2233 = vmatpush1.msra.mxu0 0.0
    %2234 = vmatprep.subr.mxu0 0.0
    %2235 = vmatpush1.msra.mxu0 0.0
    %2236 = vmatprep.subr.mxu0 0.0
    %2237 = vmatpush1.msra.mxu0 0.0
    %2238 = vmatprep.subr.mxu0 0.0
    %2239 = vmatpush1.msra.mxu0 0.0
    %2240 = vmatprep.subr.mxu0 0.0
    %2241 = vmatpush1.msra.mxu0 0.0
    %2242 = vmatprep.subr.mxu0 0.0
    %2243 = vmatpush1.msra.mxu0 0.0
    %2244 = vmatprep.subr.mxu0 0.0
    %2245 = vmatpush1.msra.mxu0 0.0
    %2246 = vmatprep.subr.mxu0 0.0
    %2247 = vmatpush1.msra.mxu0 0.0
    %2248 = vmatprep.subr.mxu0 0.0
    %2249 = vmatpush1.msra.mxu0 0.0
    %2250 = vmatprep.subr.mxu0 0.0
    %2251 = vmatpush1.msra.mxu0 0.0
    %2252 = vmatprep.subr.mxu0 0.0
    %2253 = vmatpush1.msra.mxu0 0.0
    %2254 = vmatprep.subr.mxu0 0.0
    %2255 = vmatpush1.msra.mxu0 0.0
    %2256 = vmatprep.subr.mxu0 0.0
    %2257 = vmatpush1.msra.mxu0 0.0
    %2258 = vmatprep.subr.mxu0 0.0
    %2259 = vmatpush1.msra.mxu0 0.0
    %2260 = vmatprep.subr.mxu0 0.0
    %2261 = vmatpush1.msra.mxu0 0.0
    %2262 = vmatprep.subr.mxu0 0.0
    %2263 = vmatpush1.msra.mxu0 0.0
    %2264 = vmatprep.subr.mxu0 0.0
    %2265 = vmatpush1.msra.mxu0 0.0
    %2266 = vmatprep.subr.mxu0 0.0
    %2267 = vmatpush1.msra.mxu0 0.0
    %2268 = vmatprep.subr.mxu0 0.0
    %2269 = vmatpush1.msra.mxu0 0.0
    %2270 = vmatprep.subr.mxu0 0.0
    %2271 = vmatpush1.msra.mxu0 0.0
    %2272 = vmatprep.subr.mxu0 0.0
    %2273 = vmatpush1.msra.mxu0 0.0
    %2274 = vmatprep.subr.mxu0 0.0
    %2275 = vmatpush1.msra.mxu0 0.0
    %2276 = vmatprep.mubr.f32.mxu0 0.0
    %2277 = vmatmul.mubr.f32.gmra.mrb[0].mxu0 %v2210
    %v2278 = vpop.f32.mrb[0].mxu0
    %v2279 = vadd.f32 0.0, %v2278
    %v2280 = vpop.f32.mrb[0].mxu0
    %2281 = vdwg.mxu0
    %v2283 = vsel %vm1050, %v1770, 0
    %2285 = vmatprep.subr.mxu0 0.0
    %2286 = vmatpush1.msra.mxu0 %v1047
    %2287 = vmatprep.subr.mxu0 0.0
    %2288 = vmatpush1.msra.mxu0 0.0
    %2289 = vmatprep.subr.mxu0 0.0
    %2290 = vmatpush1.msra.mxu0 0.0
    %2291 = vmatprep.subr.mxu0 0.0
    %2292 = vmatpush1.msra.mxu0 0.0
    %2293 = vmatprep.subr.mxu0 0.0
    %2294 = vmatpush1.msra.mxu0 0.0
    %2295 = vmatprep.subr.mxu0 0.0
    %2296 = vmatpush1.msra.mxu0 0.0
    %2297 = vmatprep.subr.mxu0 0.0
    %2298 = vmatpush1.msra.mxu0 0.0
    %2299 = vmatprep.subr.mxu0 0.0
    %2300 = vmatpush1.msra.mxu0 0.0
    %2301 = vmatprep.subr.mxu0 0.0
    %2302 = vmatpush1.msra.mxu0 0.0
    %2303 = vmatprep.subr.mxu0 0.0
    %2304 = vmatpush1.msra.mxu0 0.0
    %2305 = vmatprep.subr.mxu0 0.0
    %2306 = vmatpush1.msra.mxu0 0.0
    %2307 = vmatprep.subr.mxu0 0.0
    %2308 = vmatpush1.msra.mxu0 0.0
    %2309 = vmatprep.subr.mxu0 0.0
    %2310 = vmatpush1.msra.mxu0 0.0
    %2311 = vmatprep.subr.mxu0 0.0
    %2312 = vmatpush1.msra.mxu0 0.0
    %2313 = vmatprep.subr.mxu0 0.0
    %2314 = vmatpush1.msra.mxu0 0.0
    %2315 = vmatprep.subr.mxu0 0.0
    %2316 = vmatpush1.msra.mxu0 0.0
    %2317 = vmatprep.subr.mxu0 0.0
    %2318 = vmatpush1.msra.mxu0 0.0
    %2319 = vmatprep.subr.mxu0 0.0
    %2320 = vmatpush1.msra.mxu0 0.0
    %2321 = vmatprep.subr.mxu0 0.0
    %2322 = vmatpush1.msra.mxu0 0.0
    %2323 = vmatprep.subr.mxu0 0.0
    %2324 = vmatpush1.msra.mxu0 0.0
    %2325 = vmatprep.subr.mxu0 0.0
    %2326 = vmatpush1.msra.mxu0 0.0
    %2327 = vmatprep.subr.mxu0 0.0
    %2328 = vmatpush1.msra.mxu0 0.0
    %2329 = vmatprep.subr.mxu0 0.0
    %2330 = vmatpush1.msra.mxu0 0.0
    %2331 = vmatprep.subr.mxu0 0.0
    %2332 = vmatpush1.msra.mxu0 0.0
    %2333 = vmatprep.subr.mxu0 0.0
    %2334 = vmatpush1.msra.mxu0 0.0
    %2335 = vmatprep.subr.mxu0 0.0
    %2336 = vmatpush1.msra.mxu0 0.0
    %2337 = vmatprep.subr.mxu0 0.0
    %2338 = vmatpush1.msra.mxu0 0.0
    %2339 = vmatprep.subr.mxu0 0.0
    %2340 = vmatpush1.msra.mxu0 0.0
    %2341 = vmatprep.subr.mxu0 0.0
    %2342 = vmatpush1.msra.mxu0 0.0
    %2343 = vmatprep.subr.mxu0 0.0
    %2344 = vmatpush1.msra.mxu0 0.0
    %2345 = vmatprep.subr.mxu0 0.0
    %2346 = vmatpush1.msra.mxu0 0.0
    %2347 = vmatprep.subr.mxu0 0.0
    %2348 = vmatpush1.msra.mxu0 0.0
    %2349 = vmatprep.mubr.f32.mxu0 0.0
    %2350 = vmatmul.mubr.f32.gmra.mrb[0].mxu0 %v2283
    %v2351 = vpop.f32.mrb[0].mxu0
    %v2352 = vadd.f32 0.0, %v2351
    %v2353 = vpop.f32.mrb[0].mxu0
    %2354 = vdwg.mxu0
    %v2355 = vld [vmem:[%s4] sm:$0xff]
    %v2356 = vld [vmem:[%s4 + $0x8] sm:$0xff]
    %v2357 = vld [vmem:[%s4 + $0x10] sm:$0xff]
    %v2358 = vld [vmem:[%s4 + $0x18] sm:$0xff]
    %v2360 = vsel %vm1050, %v1841, 0
    %v2363 = vsel %vm1050, %v1914, 0
    %2365 = vmatprep.subr.mxu0 0.0
    %2366 = vmatpush1.msra.mxu0 %v2355
    %2367 = vmatprep.subr.mxu0 0.0
    %2368 = vmatpush1.msra.mxu0 0.0
    %2369 = vmatprep.subr.mxu0 0.0
    %2370 = vmatpush1.msra.mxu0 0.0
    %2371 = vmatprep.subr.mxu0 0.0
    %2372 = vmatpush1.msra.mxu0 0.0
    %2373 = vmatprep.subr.mxu0 0.0
    %2374 = vmatpush1.msra.mxu0 0.0
    %2375 = vmatprep.subr.mxu0 0.0
    %2376 = vmatpush1.msra.mxu0 0.0
    %2377 = vmatprep.subr.mxu0 0.0
    %2378 = vmatpush1.msra.mxu0 0.0
    %2379 = vmatprep.subr.mxu0 0.0
    %2380 = vmatpush1.msra.mxu0 0.0
    %2381 = vmatprep.subr.mxu0 0.0
    %2382 = vmatpush1.msra.mxu0 0.0
    %2383 = vmatprep.subr.mxu0 0.0
    %2384 = vmatpush1.msra.mxu0 0.0
    %2385 = vmatprep.subr.mxu0 0.0
    %2386 = vmatpush1.msra.mxu0 0.0
    %2387 = vmatprep.subr.mxu0 0.0
    %2388 = vmatpush1.msra.mxu0 0.0
    %2389 = vmatprep.subr.mxu0 0.0
    %2390 = vmatpush1.msra.mxu0 0.0
    %2391 = vmatprep.subr.mxu0 0.0
    %2392 = vmatpush1.msra.mxu0 0.0
    %2393 = vmatprep.subr.mxu0 0.0
    %2394 = vmatpush1.msra.mxu0 0.0
    %2395 = vmatprep.subr.mxu0 0.0
    %2396 = vmatpush1.msra.mxu0 0.0
    %2397 = vmatprep.subr.mxu0 0.0
    %2398 = vmatpush1.msra.mxu0 0.0
    %2399 = vmatprep.subr.mxu0 0.0
    %2400 = vmatpush1.msra.mxu0 0.0
    %2401 = vmatprep.subr.mxu0 0.0
    %2402 = vmatpush1.msra.mxu0 0.0
    %2403 = vmatprep.subr.mxu0 0.0
    %2404 = vmatpush1.msra.mxu0 0.0
    %2405 = vmatprep.subr.mxu0 0.0
    %2406 = vmatpush1.msra.mxu0 0.0
    %2407 = vmatprep.subr.mxu0 0.0
    %2408 = vmatpush1.msra.mxu0 0.0
    %2409 = vmatprep.subr.mxu0 0.0
    %2410 = vmatpush1.msra.mxu0 0.0
    %2411 = vmatprep.subr.mxu0 0.0
    %2412 = vmatpush1.msra.mxu0 0.0
    %2413 = vmatprep.subr.mxu0 0.0
    %2414 = vmatpush1.msra.mxu0 0.0
    %2415 = vmatprep.subr.mxu0 0.0
    %2416 = vmatpush1.msra.mxu0 0.0
    %2417 = vmatprep.subr.mxu0 0.0
    %2418 = vmatpush1.msra.mxu0 0.0
    %2419 = vmatprep.subr.mxu0 0.0
    %2420 = vmatpush1.msra.mxu0 0.0
    %2421 = vmatprep.subr.mxu0 0.0
    %2422 = vmatpush1.msra.mxu0 0.0
    %2423 = vmatprep.subr.mxu0 0.0
    %2424 = vmatpush1.msra.mxu0 0.0
    %2425 = vmatprep.subr.mxu0 0.0
    %2426 = vmatpush1.msra.mxu0 0.0
    %2427 = vmatprep.subr.mxu0 0.0
    %2428 = vmatpush1.msra.mxu0 0.0
    %2429 = vmatprep.mubr.f32.mxu0 0.0
    %2430 = vmatmul.mubr.f32.gmra.mrb[0].mxu0 %v2360
    %v2431 = vpop.f32.mrb[0].mxu0
    %v2432 = vadd.f32 0.0, %v2431
    %v2433 = vpop.f32.mrb[0].mxu0
    %2434 = vmatprep.mubr.f32.mxu0 0.0
    %2435 = vmatmul.mubr.f32.gmra.mrb[0].mxu0 %v2363
    %v2436 = vpop.f32.mrb[0].mxu0
    %v2437 = vadd.f32 0.0, %v2436
    %v2438 = vpop.f32.mrb[0].mxu0
    %2439 = vdwg.mxu0
    %v2441 = vsel %vm1050, %v1987, 0
    %v2444 = vsel %vm1050, %v2060, 0
    %2446 = vmatprep.subr.mxu0 0.0
    %2447 = vmatpush1.msra.mxu0 %v2356
    %2448 = vmatprep.subr.mxu0 0.0
    %2449 = vmatpush1.msra.mxu0 0.0
    %2450 = vmatprep.subr.mxu0 0.0
    %2451 = vmatpush1.msra.mxu0 0.0
    %2452 = vmatprep.subr.mxu0 0.0
    %2453 = vmatpush1.msra.mxu0 0.0
    %2454 = vmatprep.subr.mxu0 0.0
    %2455 = vmatpush1.msra.mxu0 0.0
    %2456 = vmatprep.subr.mxu0 0.0
    %2457 = vmatpush1.msra.mxu0 0.0
    %2458 = vmatprep.subr.mxu0 0.0
    %2459 = vmatpush1.msra.mxu0 0.0
    %2460 = vmatprep.subr.mxu0 0.0
    %2461 = vmatpush1.msra.mxu0 0.0
    %2462 = vmatprep.subr.mxu0 0.0
    %2463 = vmatpush1.msra.mxu0 0.0
    %2464 = vmatprep.subr.mxu0 0.0
    %2465 = vmatpush1.msra.mxu0 0.0
    %2466 = vmatprep.subr.mxu0 0.0
    %2467 = vmatpush1.msra.mxu0 0.0
    %2468 = vmatprep.subr.mxu0 0.0
    %2469 = vmatpush1.msra.mxu0 0.0
    %2470 = vmatprep.subr.mxu0 0.0
    %2471 = vmatpush1.msra.mxu0 0.0
    %2472 = vmatprep.subr.mxu0 0.0
    %2473 = vmatpush1.msra.mxu0 0.0
    %2474 = vmatprep.subr.mxu0 0.0
    %2475 = vmatpush1.msra.mxu0 0.0
    %2476 = vmatprep.subr.mxu0 0.0
    %2477 = vmatpush1.msra.mxu0 0.0
    %2478 = vmatprep.subr.mxu0 0.0
    %2479 = vmatpush1.msra.mxu0 0.0
    %2480 = vmatprep.subr.mxu0 0.0
    %2481 = vmatpush1.msra.mxu0 0.0
    %2482 = vmatprep.subr.mxu0 0.0
    %2483 = vmatpush1.msra.mxu0 0.0
    %2484 = vmatprep.subr.mxu0 0.0
    %2485 = vmatpush1.msra.mxu0 0.0
    %2486 = vmatprep.subr.mxu0 0.0
    %2487 = vmatpush1.msra.mxu0 0.0
    %2488 = vmatprep.subr.mxu0 0.0
    %2489 = vmatpush1.msra.mxu0 0.0
    %2490 = vmatprep.subr.mxu0 0.0
    %2491 = vmatpush1.msra.mxu0 0.0
    %2492 = vmatprep.subr.mxu0 0.0
    %2493 = vmatpush1.msra.mxu0 0.0
    %2494 = vmatprep.subr.mxu0 0.0
    %2495 = vmatpush1.msra.mxu0 0.0
    %2496 = vmatprep.subr.mxu0 0.0
    %2497 = vmatpush1.msra.mxu0 0.0
    %2498 = vmatprep.subr.mxu0 0.0
    %2499 = vmatpush1.msra.mxu0 0.0
    %2500 = vmatprep.subr.mxu0 0.0
    %2501 = vmatpush1.msra.mxu0 0.0
    %2502 = vmatprep.subr.mxu0 0.0
    %2503 = vmatpush1.msra.mxu0 0.0
    %2504 = vmatprep.subr.mxu0 0.0
    %2505 = vmatpush1.msra.mxu0 0.0
    %2506 = vmatprep.subr.mxu0 0.0
    %2507 = vmatpush1.msra.mxu0 0.0
    %2508 = vmatprep.subr.mxu0 0.0
    %2509 = vmatpush1.msra.mxu0 0.0
    %2510 = vmatprep.mubr.f32.mxu0 0.0
    %2511 = vmatmul.mubr.f32.gmra.mrb[0].mxu0 %v2441
    %v2512 = vpop.f32.mrb[0].mxu0
    %v2513 = vadd.f32 0.0, %v2512
    %v2514 = vpop.f32.mrb[0].mxu0
    %2515 = vmatprep.mubr.f32.mxu0 0.0
    %2516 = vmatmul.mubr.f32.gmra.mrb[0].mxu0 %v2444
    %v2517 = vpop.f32.mrb[0].mxu0
    %v2518 = vadd.f32 0.0, %v2517
    %v2519 = vpop.f32.mrb[0].mxu0
    %2520 = vdwg.mxu0
    %v2522 = vsel %vm1050, %v2133, 0
    %v2525 = vsel %vm1050, %v2206, 0
    %2527 = vmatprep.subr.mxu0 0.0
    %2528 = vmatpush1.msra.mxu0 %v2357
    %2529 = vmatprep.subr.mxu0 0.0
    %2530 = vmatpush1.msra.mxu0 0.0
    %2531 = vmatprep.subr.mxu0 0.0
    %2532 = vmatpush1.msra.mxu0 0.0
    %2533 = vmatprep.subr.mxu0 0.0
    %2534 = vmatpush1.msra.mxu0 0.0
    %2535 = vmatprep.subr.mxu0 0.0
    %2536 = vmatpush1.msra.mxu0 0.0
    %2537 = vmatprep.subr.mxu0 0.0
    %2538 = vmatpush1.msra.mxu0 0.0
    %2539 = vmatprep.subr.mxu0 0.0
    %2540 = vmatpush1.msra.mxu0 0.0
    %2541 = vmatprep.subr.mxu0 0.0
    %2542 = vmatpush1.msra.mxu0 0.0
    %2543 = vmatprep.subr.mxu0 0.0
    %2544 = vmatpush1.msra.mxu0 0.0
    %2545 = vmatprep.subr.mxu0 0.0
    %2546 = vmatpush1.msra.mxu0 0.0
    %2547 = vmatprep.subr.mxu0 0.0
    %2548 = vmatpush1.msra.mxu0 0.0
    %2549 = vmatprep.subr.mxu0 0.0
    %2550 = vmatpush1.msra.mxu0 0.0
    %2551 = vmatprep.subr.mxu0 0.0
    %2552 = vmatpush1.msra.mxu0 0.0
    %2553 = vmatprep.subr.mxu0 0.0
    %2554 = vmatpush1.msra.mxu0 0.0
    %2555 = vmatprep.subr.mxu0 0.0
    %2556 = vmatpush1.msra.mxu0 0.0
    %2557 = vmatprep.subr.mxu0 0.0
    %2558 = vmatpush1.msra.mxu0 0.0
    %2559 = vmatprep.subr.mxu0 0.0
    %2560 = vmatpush1.msra.mxu0 0.0
    %2561 = vmatprep.subr.mxu0 0.0
    %2562 = vmatpush1.msra.mxu0 0.0
    %2563 = vmatprep.subr.mxu0 0.0
    %2564 = vmatpush1.msra.mxu0 0.0
    %2565 = vmatprep.subr.mxu0 0.0
    %2566 = vmatpush1.msra.mxu0 0.0
    %2567 = vmatprep.subr.mxu0 0.0
    %2568 = vmatpush1.msra.mxu0 0.0
    %2569 = vmatprep.subr.mxu0 0.0
    %2570 = vmatpush1.msra.mxu0 0.0
    %2571 = vmatprep.subr.mxu0 0.0
    %2572 = vmatpush1.msra.mxu0 0.0
    %2573 = vmatprep.subr.mxu0 0.0
    %2574 = vmatpush1.msra.mxu0 0.0
    %2575 = vmatprep.subr.mxu0 0.0
    %2576 = vmatpush1.msra.mxu0 0.0
    %2577 = vmatprep.subr.mxu0 0.0
    %2578 = vmatpush1.msra.mxu0 0.0
    %2579 = vmatprep.subr.mxu0 0.0
    %2580 = vmatpush1.msra.mxu0 0.0
    %2581 = vmatprep.subr.mxu0 0.0
    %2582 = vmatpush1.msra.mxu0 0.0
    %2583 = vmatprep.subr.mxu0 0.0
    %2584 = vmatpush1.msra.mxu0 0.0
    %2585 = vmatprep.subr.mxu0 0.0
    %2586 = vmatpush1.msra.mxu0 0.0
    %2587 = vmatprep.subr.mxu0 0.0
    %2588 = vmatpush1.msra.mxu0 0.0
    %2589 = vmatprep.subr.mxu0 0.0
    %2590 = vmatpush1.msra.mxu0 0.0
    %2591 = vmatprep.mubr.f32.mxu0 0.0
    %2592 = vmatmul.mubr.f32.gmra.mrb[0].mxu0 %v2522
    %v2593 = vpop.f32.mrb[0].mxu0
    %v2594 = vadd.f32 0.0, %v2593
    %v2595 = vpop.f32.mrb[0].mxu0
    %2596 = vmatprep.mubr.f32.mxu0 0.0
    %2597 = vmatmul.mubr.f32.gmra.mrb[0].mxu0 %v2525
    %v2598 = vpop.f32.mrb[0].mxu0
    %v2599 = vadd.f32 0.0, %v2598
    %v2600 = vpop.f32.mrb[0].mxu0
    %2601 = vdwg.mxu0
    %v2603 = vsel %vm1050, %v2279, 0
    %v2606 = vsel %vm1050, %v2352, 0
    %2608 = vmatprep.subr.mxu0 0.0
    %2609 = vmatpush1.msra.mxu0 %v2358
    %2610 = vmatprep.subr.mxu0 0.0
    %2611 = vmatpush1.msra.mxu0 0.0
    %2612 = vmatprep.subr.mxu0 0.0
    %2613 = vmatpush1.msra.mxu0 0.0
    %2614 = vmatprep.subr.mxu0 0.0
    %2615 = vmatpush1.msra.mxu0 0.0
    %2616 = vmatprep.subr.mxu0 0.0
    %2617 = vmatpush1.msra.mxu0 0.0
    %2618 = vmatprep.subr.mxu0 0.0
    %2619 = vmatpush1.msra.mxu0 0.0
    %2620 = vmatprep.subr.mxu0 0.0
    %2621 = vmatpush1.msra.mxu0 0.0
    %2622 = vmatprep.subr.mxu0 0.0
    %2623 = vmatpush1.msra.mxu0 0.0
    %2624 = vmatprep.subr.mxu0 0.0
    %2625 = vmatpush1.msra.mxu0 0.0
    %2626 = vmatprep.subr.mxu0 0.0
    %2627 = vmatpush1.msra.mxu0 0.0
    %2628 = vmatprep.subr.mxu0 0.0
    %2629 = vmatpush1.msra.mxu0 0.0
    %2630 = vmatprep.subr.mxu0 0.0
    %2631 = vmatpush1.msra.mxu0 0.0
    %2632 = vmatprep.subr.mxu0 0.0
    %2633 = vmatpush1.msra.mxu0 0.0
    %2634 = vmatprep.subr.mxu0 0.0
    %2635 = vmatpush1.msra.mxu0 0.0
    %2636 = vmatprep.subr.mxu0 0.0
    %2637 = vmatpush1.msra.mxu0 0.0
    %2638 = vmatprep.subr.mxu0 0.0
    %2639 = vmatpush1.msra.mxu0 0.0
    %2640 = vmatprep.subr.mxu0 0.0
    %2641 = vmatpush1.msra.mxu0 0.0
    %2642 = vmatprep.subr.mxu0 0.0
    %2643 = vmatpush1.msra.mxu0 0.0
    %2644 = vmatprep.subr.mxu0 0.0
    %2645 = vmatpush1.msra.mxu0 0.0
    %2646 = vmatprep.subr.mxu0 0.0
    %2647 = vmatpush1.msra.mxu0 0.0
    %2648 = vmatprep.subr.mxu0 0.0
    %2649 = vmatpush1.msra.mxu0 0.0
    %2650 = vmatprep.subr.mxu0 0.0
    %2651 = vmatpush1.msra.mxu0 0.0
    %2652 = vmatprep.subr.mxu0 0.0
    %2653 = vmatpush1.msra.mxu0 0.0
    %2654 = vmatprep.subr.mxu0 0.0
    %2655 = vmatpush1.msra.mxu0 0.0
    %2656 = vmatprep.subr.mxu0 0.0
    %2657 = vmatpush1.msra.mxu0 0.0
    %2658 = vmatprep.subr.mxu0 0.0
    %2659 = vmatpush1.msra.mxu0 0.0
    %2660 = vmatprep.subr.mxu0 0.0
    %2661 = vmatpush1.msra.mxu0 0.0
    %2662 = vmatprep.subr.mxu0 0.0
    %2663 = vmatpush1.msra.mxu0 0.0
    %2664 = vmatprep.subr.mxu0 0.0
    %2665 = vmatpush1.msra.mxu0 0.0
    %2666 = vmatprep.subr.mxu0 0.0
    %2667 = vmatpush1.msra.mxu0 0.0
    %2668 = vmatprep.subr.mxu0 0.0
    %2669 = vmatpush1.msra.mxu0 0.0
    %2670 = vmatprep.subr.mxu0 0.0
    %2671 = vmatpush1.msra.mxu0 0.0
    %2672 = vmatprep.mubr.f32.mxu0 0.0
    %2673 = vmatmul.mubr.f32.gmra.mrb[0].mxu0 %v2603
    %v2674 = vpop.f32.mrb[0].mxu0
    %v2675 = vadd.f32 0.0, %v2674
    %v2676 = vpop.f32.mrb[0].mxu0
    %2677 = vmatprep.mubr.f32.mxu0 0.0
    %2678 = vmatmul.mubr.f32.gmra.mrb[0].mxu0 %v2606
    %v2679 = vpop.f32.mrb[0].mxu0
    %v2680 = vadd.f32 0.0, %v2679
    %v2681 = vpop.f32.mrb[0].mxu0
    %2682 = vdwg.mxu0
    %v2683 = vsel %vm52, %v2432, 0.0
    %v2684 = vsel %vm52, %v2513, 0.0
    %v2685 = vadd.f32 %v2683, %v2684
    %v2686 = vsel %vm52, %v2594, 0.0
    %v2687 = vadd.f32 %v2685, %v2686
    %v2688 = vsel %vm52, %v2675, 0.0
    %v2689 = vadd.f32 %v2687, %v2688
    %v2690 = vsel %vm52, %v2437, 0.0
    %v2691 = vsel %vm52, %v2518, 0.0
    %v2692 = vadd.f32 %v2690, %v2691
    %v2693 = vsel %vm52, %v2599, 0.0
    %v2694 = vadd.f32 %v2692, %v2693
    %v2695 = vsel %vm52, %v2680, 0.0
    %v2696 = vadd.f32 %v2694, %v2695
    %v2697 = vadd.f32 %v48, %v2689
    %v2698 = vadd.f32 %v49, %v2696
    %v2699 = vld [vmem:[%s5] sm:$0x1]
    %v2701 = vlaneseq
    %v2702 = vshrl.u32 %v2701, 7
    %v2703 = vsub.s32 0, %v2702
    %v2704 = vrot.slane %v2699, %v2703
    %v2706 = vadd.f32 %v2697, %v2704
    %v2707 = vadd.f32 %v2698, %v2704
    %v2708 = vld [vmem:[%s6] sm:$0x1]
    %v2709 = vld [vmem:[%s7] sm:$0x1]
    %v2710 = vsel %vm52, %v2706, 0.0
    %2711 = vadd.xlane.f32.xlu0 %v2710
    %v2712 = vpop.xlane.xlu0 %2711
    %v2713 = vsel %vm52, %v2707, 0.0
    %2714 = vadd.xlane.f32.xlu0 %v2713
    %v2715 = vpop.xlane.xlu0 %2714
    %v2716 = vmul.f32 %v2712, %v59
    %v2717 = vmul.f32 %v2715, %v59
    %v2718 = vsub.f32 %v2706, %v2716
    %v2719 = vsub.f32 %v2707, %v2717
    %v2720 = vmul.f32 %v2718, %v2718
    %v2721 = vmul.f32 %v2719, %v2719
    %v2722 = vsel %vm52, %v2720, 0.0
    %2723 = vadd.xlane.f32.xlu0 %v2722
    %v2724 = vpop.xlane.xlu0 %2723
    %v2725 = vsel %vm52, %v2721, 0.0
    %2726 = vadd.xlane.f32.xlu0 %v2725
    %v2727 = vpop.xlane.xlu0 %2726
    %v2728 = vmul.f32 %v2724, %v59
    %v2729 = vmul.f32 %v2727, %v59
    %v2730 = vadd.f32 %v2728, 1e-05
    %v2731 = vadd.f32 %v2729, 1e-05
    %v2732 = vrsqrt.pop %v2730
    %v2733 = vrsqrt.pop %v2731
    %v2734 = vmul.f32 %v2718, %v2732
    %v2735 = vmul.f32 %v2719, %v2733
    %v2737 = vlaneseq
    %v2738 = vshrl.u32 %v2737, 7
    %v2739 = vsub.s32 0, %v2738
    %v2740 = vrot.slane %v2708, %v2739
    %v2742 = vmul.f32 %v2734, %v2740
    %v2743 = vmul.f32 %v2735, %v2740
    %v2745 = vlaneseq
    %v2746 = vshrl.u32 %v2745, 7
    %v2747 = vsub.s32 0, %v2746
    %v2748 = vrot.slane %v2709, %v2747
    %v2750 = vadd.f32 %v2742, %v2748
    %v2751 = vadd.f32 %v2743, %v2748
    %v2752 = vld [vmem:[%s8] sm:$0xff]
    %v2753 = vld [vmem:[%s8 + $0x8] sm:$0xff]
    %v2754 = vld [vmem:[%s8 + $0x10] sm:$0xff]
    %v2755 = vld [vmem:[%s8 + $0x18] sm:$0xff]
    %v2756 = vld [vmem:[%s9] sm:$0x1]
    %v2758 = vlaneseq
    %v2759 = vshrl.u32 %v2758, 7
    %v2760 = vsub.s32 0, %v2759
    %v2761 = vrot.slane %v2756, %v2760
    %v2764 = vsel %vm52, %v2750, 0
    %v2767 = vsel %vm52, %v2751, 0
    %2769 = vmatprep.subr.mxu0 0.0
    %2770 = vmatpush1.msra.mxu0 %v2752
    %2771 = vmatprep.subr.mxu0 0.0
    %2772 = vmatpush1.msra.mxu0 %v2753
    %2773 = vmatprep.subr.mxu0 0.0
    %2774 = vmatpush1.msra.mxu0 %v2754
    %2775 = vmatprep.subr.mxu0 0.0
    %2776 = vmatpush1.msra.mxu0 %v2755
    %2777 = vmatprep.subr.mxu0 0.0
    %2778 = vmatpush1.msra.mxu0 0.0
    %2779 = vmatprep.subr.mxu0 0.0
    %2780 = vmatpush1.msra.mxu0 0.0
    %2781 = vmatprep.subr.mxu0 0.0
    %2782 = vmatpush1.msra.mxu0 0.0
    %2783 = vmatprep.subr.mxu0 0.0
    %2784 = vmatpush1.msra.mxu0 0.0
    %2785 = vmatprep.subr.mxu0 0.0
    %2786 = vmatpush1.msra.mxu0 0.0
    %2787 = vmatprep.subr.mxu0 0.0
    %2788 = vmatpush1.msra.mxu0 0.0
    %2789 = vmatprep.subr.mxu0 0.0
    %2790 = vmatpush1.msra.mxu0 0.0
    %2791 = vmatprep.subr.mxu0 0.0
    %2792 = vmatpush1.msra.mxu0 0.0
    %2793 = vmatprep.subr.mxu0 0.0
    %2794 = vmatpush1.msra.mxu0 0.0
    %2795 = vmatprep.subr.mxu0 0.0
    %2796 = vmatpush1.msra.mxu0 0.0
    %2797 = vmatprep.subr.mxu0 0.0
    %2798 = vmatpush1.msra.mxu0 0.0
    %2799 = vmatprep.subr.mxu0 0.0
    %2800 = vmatpush1.msra.mxu0 0.0
    %2801 = vmatprep.subr.mxu0 0.0
    %2802 = vmatpush1.msra.mxu0 0.0
    %2803 = vmatprep.subr.mxu0 0.0
    %2804 = vmatpush1.msra.mxu0 0.0
    %2805 = vmatprep.subr.mxu0 0.0
    %2806 = vmatpush1.msra.mxu0 0.0
    %2807 = vmatprep.subr.mxu0 0.0
    %2808 = vmatpush1.msra.mxu0 0.0
    %2809 = vmatprep.subr.mxu0 0.0
    %2810 = vmatpush1.msra.mxu0 0.0
    %2811 = vmatprep.subr.mxu0 0.0
    %2812 = vmatpush1.msra.mxu0 0.0
    %2813 = vmatprep.subr.mxu0 0.0
    %2814 = vmatpush1.msra.mxu0 0.0
    %2815 = vmatprep.subr.mxu0 0.0
    %2816 = vmatpush1.msra.mxu0 0.0
    %2817 = vmatprep.subr.mxu0 0.0
    %2818 = vmatpush1.msra.mxu0 0.0
    %2819 = vmatprep.subr.mxu0 0.0
    %2820 = vmatpush1.msra.mxu0 0.0
    %2821 = vmatprep.subr.mxu0 0.0
    %2822 = vmatpush1.msra.mxu0 0.0
    %2823 = vmatprep.subr.mxu0 0.0
    %2824 = vmatpush1.msra.mxu0 0.0
    %2825 = vmatprep.subr.mxu0 0.0
    %2826 = vmatpush1.msra.mxu0 0.0
    %2827 = vmatprep.subr.mxu0 0.0
    %2828 = vmatpush1.msra.mxu0 0.0
    %2829 = vmatprep.subr.mxu0 0.0
    %2830 = vmatpush1.msra.mxu0 0.0
    %2831 = vmatprep.subr.mxu0 0.0
    %2832 = vmatpush1.msra.mxu0 0.0
    %2833 = vmatprep.mubr.f32.mxu0 0.0
    %2834 = vmatmul.mubr.f32.gmra.mrb[0].mxu0 %v2764
    %v2835 = vpop.f32.mrb[0].mxu0
    %v2836 = vadd.f32 %v2761, %v2835
    %v2837 = vpop.f32.mrb[0].mxu0
    %2838 = vmatprep.mubr.f32.mxu0 0.0
    %2839 = vmatmul.mubr.f32.gmra.mrb[0].mxu0 %v2767
    %v2840 = vpop.f32.mrb[0].mxu0
    %v2841 = vadd.f32 %v2761, %v2840
    %v2842 = vpop.f32.mrb[0].mxu0
    %2843 = vdwg.mxu0
    %v2844 = vmul.f32 %v2836, 0.5
    %v2845 = vmul.f32 %v2841, 0.5
    %v2846 = vmul.f32 %v2836, 0.70710677
    %v2847 = vmul.f32 %v2841, 0.70710677
    %v2848 = verf.f32.pop %v2846
    %v2849 = verf.f32.pop %v2847
    %v2850 = vadd.f32 %v2848, 1.0
    %v2851 = vadd.f32 %v2849, 1.0
    %v2852 = vmul.f32 %v2844, %v2850
    %v2853 = vmul.f32 %v2845, %v2851
    %v2854 = vld [vmem:[%s10] sm:$0xff]
    %v2855 = vld [vmem:[%s10 + $0x8] sm:$0xff]
    %v2856 = vld [vmem:[%s10 + $0x10] sm:$0xff]
    %v2857 = vld [vmem:[%s10 + $0x18] sm:$0xff]
    %v2858 = vld [vmem:[%s10 + $0x20] sm:$0xff]
    %v2859 = vld [vmem:[%s10 + $0x28] sm:$0xff]
    %v2860 = vld [vmem:[%s10 + $0x30] sm:$0xff]
    %v2861 = vld [vmem:[%s10 + $0x38] sm:$0xff]
    %vm2862 = vcmask 523264
    %v2864 = vsel %vm2862, %v2852, 0
    %v2867 = vsel %vm2862, %v2853, 0
    %2869 = vmatprep.subr.mxu0 0.0
    %2870 = vmatpush1.msra.mxu0 %v2854
    %2871 = vmatprep.subr.mxu0 0.0
    %2872 = vmatpush1.msra.mxu0 %v2855
    %2873 = vmatprep.subr.mxu0 0.0
    %2874 = vmatpush1.msra.mxu0 %v2856
    %2875 = vmatprep.subr.mxu0 0.0
    %2876 = vmatpush1.msra.mxu0 %v2857
    %2877 = vmatprep.subr.mxu0 0.0
    %2878 = vmatpush1.msra.mxu0 %v2858
    %2879 = vmatprep.subr.mxu0 0.0
    %2880 = vmatpush1.msra.mxu0 %v2859
    %2881 = vmatprep.subr.mxu0 0.0
    %2882 = vmatpush1.msra.mxu0 %v2860
    %2883 = vmatprep.subr.mxu0 0.0
    %2884 = vmatpush1.msra.mxu0 %v2861
    %2885 = vmatprep.subr.mxu0 0.0
    %2886 = vmatpush1.msra.mxu0 0.0
    %2887 = vmatprep.subr.mxu0 0.0
    %2888 = vmatpush1.msra.mxu0 0.0
    %2889 = vmatprep.subr.mxu0 0.0
    %2890 = vmatpush1.msra.mxu0 0.0
    %2891 = vmatprep.subr.mxu0 0.0
    %2892 = vmatpush1.msra.mxu0 0.0
    %2893 = vmatprep.subr.mxu0 0.0
    %2894 = vmatpush1.msra.mxu0 0.0
    %2895 = vmatprep.subr.mxu0 0.0
    %2896 = vmatpush1.msra.mxu0 0.0
    %2897 = vmatprep.subr.mxu0 0.0
    %2898 = vmatpush1.msra.mxu0 0.0
    %2899 = vmatprep.subr.mxu0 0.0
    %2900 = vmatpush1.msra.mxu0 0.0
    %2901 = vmatprep.subr.mxu0 0.0
    %2902 = vmatpush1.msra.mxu0 0.0
    %2903 = vmatprep.subr.mxu0 0.0
    %2904 = vmatpush1.msra.mxu0 0.0
    %2905 = vmatprep.subr.mxu0 0.0
    %2906 = vmatpush1.msra.mxu0 0.0
    %2907 = vmatprep.subr.mxu0 0.0
    %2908 = vmatpush1.msra.mxu0 0.0
    %2909 = vmatprep.subr.mxu0 0.0
    %2910 = vmatpush1.msra.mxu0 0.0
    %2911 = vmatprep.subr.mxu0 0.0
    %2912 = vmatpush1.msra.mxu0 0.0
    %2913 = vmatprep.subr.mxu0 0.0
    %2914 = vmatpush1.msra.mxu0 0.0
    %2915 = vmatprep.subr.mxu0 0.0
    %2916 = vmatpush1.msra.mxu0 0.0
    %2917 = vmatprep.subr.mxu0 0.0
    %2918 = vmatpush1.msra.mxu0 0.0
    %2919 = vmatprep.subr.mxu0 0.0
    %2920 = vmatpush1.msra.mxu0 0.0
    %2921 = vmatprep.subr.mxu0 0.0
    %2922 = vmatpush1.msra.mxu0 0.0
    %2923 = vmatprep.subr.mxu0 0.0
    %2924 = vmatpush1.msra.mxu0 0.0
    %2925 = vmatprep.subr.mxu0 0.0
    %2926 = vmatpush1.msra.mxu0 0.0
    %2927 = vmatprep.subr.mxu0 0.0
    %2928 = vmatpush1.msra.mxu0 0.0
    %2929 = vmatprep.subr.mxu0 0.0
    %2930 = vmatpush1.msra.mxu0 0.0
    %2931 = vmatprep.subr.mxu0 0.0
    %2932 = vmatpush1.msra.mxu0 0.0
    %2933 = vmatprep.mubr.f32.mxu0 0.0
    %2934 = vmatmul.mubr.f32.gmra.mrb[0].mxu0 %v2864
    %v2935 = vpop.f32.mrb[0].mxu0
    %v2936 = vadd.f32 0.0, %v2935
    %v2937 = vpop.f32.mrb[0].mxu0
    %2938 = vmatprep.mubr.f32.mxu0 0.0
    %2939 = vmatmul.mubr.f32.gmra.mrb[0].mxu0 %v2867
    %v2940 = vpop.f32.mrb[0].mxu0
    %v2941 = vadd.f32 0.0, %v2940
    %v2942 = vpop.f32.mrb[0].mxu0
    %2943 = vdwg.mxu0
    %v2944 = vadd.f32 %v2706, %v2936
    %v2945 = vadd.f32 %v2707, %v2941
    %v2946 = vld [vmem:[%s11] sm:$0x1]
    %v2948 = vlaneseq
    %v2949 = vshrl.u32 %v2948, 7
    %v2950 = vsub.s32 0, %v2949
    %v2951 = vrot.slane %v2946, %v2950
    %v2953 = vadd.f32 %v2944, %v2951
    %v2954 = vadd.f32 %v2945, %v2951
    %s2955 = scalar_lea.vmem %s1, 1
    %v2956 = vld [vmem:[%s2955] sm:$0x1]
    %s2957 = scalar_lea.vmem %s2, 1
    %v2958 = vld [vmem:[%s2957] sm:$0x1]
    %v2959 = vsel %vm52, %v2953, 0.0
    %2960 = vadd.xlane.f32.xlu0 %v2959
    %v2961 = vpop.xlane.xlu0 %2960
    %v2962 = vsel %vm52, %v2954, 0.0
    %2963 = vadd.xlane.f32.xlu0 %v2962
    %v2964 = vpop.xlane.xlu0 %2963
    %v2965 = vmul.f32 %v2961, %v59
    %v2966 = vmul.f32 %v2964, %v59
    %v2967 = vsub.f32 %v2953, %v2965
    %v2968 = vsub.f32 %v2954, %v2966
    %v2969 = vmul.f32 %v2967, %v2967
    %v2970 = vmul.f32 %v2968, %v2968
    %v2971 = vsel %vm52, %v2969, 0.0
    %2972 = vadd.xlane.f32.xlu0 %v2971
    %v2973 = vpop.xlane.xlu0 %2972
    %v2974 = vsel %vm52, %v2970, 0.0
    %2975 = vadd.xlane.f32.xlu0 %v2974
    %v2976 = vpop.xlane.xlu0 %2975
    %v2977 = vmul.f32 %v2973, %v59
    %v2978 = vmul.f32 %v2976, %v59
    %v2979 = vadd.f32 %v2977, 1e-05
    %v2980 = vadd.f32 %v2978, 1e-05
    %v2981 = vrsqrt.pop %v2979
    %v2982 = vrsqrt.pop %v2980
    %v2983 = vmul.f32 %v2967, %v2981
    %v2984 = vmul.f32 %v2968, %v2982
    %v2986 = vlaneseq
    %v2987 = vshrl.u32 %v2986, 7
    %v2988 = vsub.s32 0, %v2987
    %v2989 = vrot.slane %v2956, %v2988
    %v2991 = vmul.f32 %v2983, %v2989
    %v2992 = vmul.f32 %v2984, %v2989
    %v2994 = vlaneseq
    %v2995 = vshrl.u32 %v2994, 7
    %v2996 = vsub.s32 0, %v2995
    %v2997 = vrot.slane %v2958, %v2996
    %v2999 = vadd.f32 %v2991, %v2997
    %v3000 = vadd.f32 %v2992, %v2997
    %s3001 = scalar_lea.vmem %s3, 384
    %v3002 = vld [vmem:[%s3001] sm:$0xff]
    %v3003 = vld [vmem:[%s3001 + $0x8] sm:$0xff]
    %v3004 = vld [vmem:[%s3001 + $0x10] sm:$0xff]
    %v3005 = vld [vmem:[%s3001 + $0x18] sm:$0xff]
    %v3006 = vld [vmem:[%s3001 + $0x20] sm:$0xff]
    %v3007 = vld [vmem:[%s3001 + $0x28] sm:$0xff]
    %v3008 = vld [vmem:[%s3001 + $0x30] sm:$0xff]
    %v3009 = vld [vmem:[%s3001 + $0x38] sm:$0xff]
    %v3010 = vld [vmem:[%s3001 + $0x40] sm:$0xff]
    %v3011 = vld [vmem:[%s3001 + $0x48] sm:$0xff]
    %v3012 = vld [vmem:[%s3001 + $0x50] sm:$0xff]
    %v3013 = vld [vmem:[%s3001 + $0x58] sm:$0xff]
    %v3014 = vld [vmem:[%s3001 + $0x60] sm:$0xff]
    %v3015 = vld [vmem:[%s3001 + $0x68] sm:$0xff]
    %v3016 = vld [vmem:[%s3001 + $0x70] sm:$0xff]
    %v3017 = vld [vmem:[%s3001 + $0x78] sm:$0xff]
    %v3018 = vld [vmem:[%s3001 + $0x80] sm:$0xff]
    %v3019 = vld [vmem:[%s3001 + $0x88] sm:$0xff]
    %v3020 = vld [vmem:[%s3001 + $0x90] sm:$0xff]
    %v3021 = vld [vmem:[%s3001 + $0x98] sm:$0xff]
    %v3022 = vld [vmem:[%s3001 + $0xa0] sm:$0xff]
    %v3023 = vld [vmem:[%s3001 + $0xa8] sm:$0xff]
    %v3024 = vld [vmem:[%s3001 + $0xb0] sm:$0xff]
    %v3025 = vld [vmem:[%s3001 + $0xb8] sm:$0xff]
    %v3026 = vld [vmem:[%s3001 + $0xc0] sm:$0xff]
    %v3027 = vld [vmem:[%s3001 + $0xc8] sm:$0xff]
    %v3028 = vld [vmem:[%s3001 + $0xd0] sm:$0xff]
    %v3029 = vld [vmem:[%s3001 + $0xd8] sm:$0xff]
    %v3030 = vld [vmem:[%s3001 + $0xe0] sm:$0xff]
    %v3031 = vld [vmem:[%s3001 + $0xe8] sm:$0xff]
    %v3032 = vld [vmem:[%s3001 + $0xf0] sm:$0xff]
    %v3033 = vld [vmem:[%s3001 + $0xf8] sm:$0xff]
    %v3034 = vld [vmem:[%s3001 + $0x100] sm:$0xff]
    %v3035 = vld [vmem:[%s3001 + $0x108] sm:$0xff]
    %v3036 = vld [vmem:[%s3001 + $0x110] sm:$0xff]
    %v3037 = vld [vmem:[%s3001 + $0x118] sm:$0xff]
    %v3038 = vld [vmem:[%s3001 + $0x120] sm:$0xff]
    %v3039 = vld [vmem:[%s3001 + $0x128] sm:$0xff]
    %v3040 = vld [vmem:[%s3001 + $0x130] sm:$0xff]
    %v3041 = vld [vmem:[%s3001 + $0x138] sm:$0xff]
    %v3042 = vld [vmem:[%s3001 + $0x140] sm:$0xff]
    %v3043 = vld [vmem:[%s3001 + $0x148] sm:$0xff]
    %v3044 = vld [vmem:[%s3001 + $0x150] sm:$0xff]
    %v3045 = vld [vmem:[%s3001 + $0x158] sm:$0xff]
    %v3046 = vld [vmem:[%s3001 + $0x160] sm:$0xff]
    %v3047 = vld [vmem:[%s3001 + $0x168] sm:$0xff]
    %v3048 = vld [vmem:[%s3001 + $0x170] sm:$0xff]
    %v3049 = vld [vmem:[%s3001 + $0x178] sm:$0xff]
    %v3051 = vsel %vm52, %v2999, 0
    %v3054 = vsel %vm52, %v3000, 0
    %3056 = vmatprep.subr.mxu0 0.0
    %3057 = vmatpush1.msra.mxu0 %v3002
    %3058 = vmatprep.subr.mxu0 0.0
    %3059 = vmatpush1.msra.mxu0 %v3003
    %3060 = vmatprep.subr.mxu0 0.0
    %3061 = vmatpush1.msra.mxu0 %v3004
    %3062 = vmatprep.subr.mxu0 0.0
    %3063 = vmatpush1.msra.mxu0 %v3005
    %3064 = vmatprep.subr.mxu0 0.0
    %3065 = vmatpush1.msra.mxu0 0.0
    %3066 = vmatprep.subr.mxu0 0.0
    %3067 = vmatpush1.msra.mxu0 0.0
    %3068 = vmatprep.subr.mxu0 0.0
    %3069 = vmatpush1.msra.mxu0 0.0
    %3070 = vmatprep.subr.mxu0 0.0
    %3071 = vmatpush1.msra.mxu0 0.0
    %3072 = vmatprep.subr.mxu0 0.0
    %3073 = vmatpush1.msra.mxu0 0.0
    %3074 = vmatprep.subr.mxu0 0.0
    %3075 = vmatpush1.msra.mxu0 0.0
    %3076 = vmatprep.subr.mxu0 0.0
    %3077 = vmatpush1.msra.mxu0 0.0
    %3078 = vmatprep.subr.mxu0 0.0
    %3079 = vmatpush1.msra.mxu0 0.0
    %3080 = vmatprep.subr.mxu0 0.0
    %3081 = vmatpush1.msra.mxu0 0.0
    %3082 = vmatprep.subr.mxu0 0.0
    %3083 = vmatpush1.msra.mxu0 0.0
    %3084 = vmatprep.subr.mxu0 0.0
    %3085 = vmatpush1.msra.mxu0 0.0
    %3086 = vmatprep.subr.mxu0 0.0
    %3087 = vmatpush1.msra.mxu0 0.0
    %3088 = vmatprep.subr.mxu0 0.0
    %3089 = vmatpush1.msra.mxu0 0.0
    %3090 = vmatprep.subr.mxu0 0.0
    %3091 = vmatpush1.msra.mxu0 0.0
    %3092 = vmatprep.subr.mxu0 0.0
    %3093 = vmatpush1.msra.mxu0 0.0
    %3094 = vmatprep.subr.mxu0 0.0
    %3095 = vmatpush1.msra.mxu0 0.0
    %3096 = vmatprep.subr.mxu0 0.0
    %3097 = vmatpush1.msra.mxu0 0.0
    %3098 = vmatprep.subr.mxu0 0.0
    %3099 = vmatpush1.msra.mxu0 0.0
    %3100 = vmatprep.subr.mxu0 0.0
    %3101 = vmatpush1.msra.mxu0 0.0
    %3102 = vmatprep.subr.mxu0 0.0
    %3103 = vmatpush1.msra.mxu0 0.0
    %3104 = vmatprep.subr.mxu0 0.0
    %3105 = vmatpush1.msra.mxu0 0.0
    %3106 = vmatprep.subr.mxu0 0.0
    %3107 = vmatpush1.msra.mxu0 0.0
    %3108 = vmatprep.subr.mxu0 0.0
    %3109 = vmatpush1.msra.mxu0 0.0
    %3110 = vmatprep.subr.mxu0 0.0
    %3111 = vmatpush1.msra.mxu0 0.0
    %3112 = vmatprep.subr.mxu0 0.0
    %3113 = vmatpush1.msra.mxu0 0.0
    %3114 = vmatprep.subr.mxu0 0.0
    %3115 = vmatpush1.msra.mxu0 0.0
    %3116 = vmatprep.subr.mxu0 0.0
    %3117 = vmatpush1.msra.mxu0 0.0
    %3118 = vmatprep.subr.mxu0 0.0
    %3119 = vmatpush1.msra.mxu0 0.0
    %3120 = vmatprep.mubr.f32.mxu0 0.0
    %3121 = vmatmul.mubr.f32.gmra.mrb[0].mxu0 %v3051
    %v3122 = vpop.f32.mrb[0].mxu0
    %v3123 = vadd.f32 0.0, %v3122
    %v3124 = vpop.f32.mrb[0].mxu0
    %3125 = vmatprep.mubr.f32.mxu0 0.0
    %3126 = vmatmul.mubr.f32.gmra.mrb[0].mxu0 %v3054
    %v3127 = vpop.f32.mrb[0].mxu0
    %v3128 = vadd.f32 0.0, %v3127
    %v3129 = vpop.f32.mrb[0].mxu0
    %3130 = vdwg.mxu0
    %3131 = vmatprep.subr.mxu0 0.0
    %3132 = vmatpush1.msra.mxu0 %v3006
    %3133 = vmatprep.subr.mxu0 0.0
    %3134 = vmatpush1.msra.mxu0 %v3007
    %3135 = vmatprep.subr.mxu0 0.0
    %3136 = vmatpush1.msra.mxu0 %v3008
    %3137 = vmatprep.subr.mxu0 0.0
    %3138 = vmatpush1.msra.mxu0 %v3009
    %3139 = vmatprep.subr.mxu0 0.0
    %3140 = vmatpush1.msra.mxu0 0.0
    %3141 = vmatprep.subr.mxu0 0.0
    %3142 = vmatpush1.msra.mxu0 0.0
    %3143 = vmatprep.subr.mxu0 0.0
    %3144 = vmatpush1.msra.mxu0 0.0
    %3145 = vmatprep.subr.mxu0 0.0
    %3146 = vmatpush1.msra.mxu0 0.0
    %3147 = vmatprep.subr.mxu0 0.0
    %3148 = vmatpush1.msra.mxu0 0.0
    %3149 = vmatprep.subr.mxu0 0.0
    %3150 = vmatpush1.msra.mxu0 0.0
    %3151 = vmatprep.subr.mxu0 0.0
    %3152 = vmatpush1.msra.mxu0 0.0
    %3153 = vmatprep.subr.mxu0 0.0
    %3154 = vmatpush1.msra.mxu0 0.0
    %3155 = vmatprep.subr.mxu0 0.0
    %3156 = vmatpush1.msra.mxu0 0.0
    %3157 = vmatprep.subr.mxu0 0.0
    %3158 = vmatpush1.msra.mxu0 0.0
    %3159 = vmatprep.subr.mxu0 0.0
    %3160 = vmatpush1.msra.mxu0 0.0
    %3161 = vmatprep.subr.mxu0 0.0
    %3162 = vmatpush1.msra.mxu0 0.0
    %3163 = vmatprep.subr.mxu0 0.0
    %3164 = vmatpush1.msra.mxu0 0.0
    %3165 = vmatprep.subr.mxu0 0.0
    %3166 = vmatpush1.msra.mxu0 0.0
    %3167 = vmatprep.subr.mxu0 0.0
    %3168 = vmatpush1.msra.mxu0 0.0
    %3169 = vmatprep.subr.mxu0 0.0
    %3170 = vmatpush1.msra.mxu0 0.0
    %3171 = vmatprep.subr.mxu0 0.0
    %3172 = vmatpush1.msra.mxu0 0.0
    %3173 = vmatprep.subr.mxu0 0.0
    %3174 = vmatpush1.msra.mxu0 0.0
    %3175 = vmatprep.subr.mxu0 0.0
    %3176 = vmatpush1.msra.mxu0 0.0
    %3177 = vmatprep.subr.mxu0 0.0
    %3178 = vmatpush1.msra.mxu0 0.0
    %3179 = vmatprep.subr.mxu0 0.0
    %3180 = vmatpush1.msra.mxu0 0.0
    %3181 = vmatprep.subr.mxu0 0.0
    %3182 = vmatpush1.msra.mxu0 0.0
    %3183 = vmatprep.subr.mxu0 0.0
    %3184 = vmatpush1.msra.mxu0 0.0
    %3185 = vmatprep.subr.mxu0 0.0
    %3186 = vmatpush1.msra.mxu0 0.0
    %3187 = vmatprep.subr.mxu0 0.0
    %3188 = vmatpush1.msra.mxu0 0.0
    %3189 = vmatprep.subr.mxu0 0.0
    %3190 = vmatpush1.msra.mxu0 0.0
    %3191 = vmatprep.subr.mxu0 0.0
    %3192 = vmatpush1.msra.mxu0 0.0
    %3193 = vmatprep.subr.mxu0 0.0
    %3194 = vmatpush1.msra.mxu0 0.0
    %3195 = vmatprep.mubr.f32.mxu0 0.0
    %3196 = vmatmul.mubr.f32.gmra.mrb[0].mxu0 %v3051
    %v3197 = vpop.f32.mrb[0].mxu0
    %v3198 = vadd.f32 0.0, %v3197
    %v3199 = vpop.f32.mrb[0].mxu0
    %3200 = vmatprep.mubr.f32.mxu0 0.0
    %3201 = vmatmul.mubr.f32.gmra.mrb[0].mxu0 %v3054
    %v3202 = vpop.f32.mrb[0].mxu0
    %v3203 = vadd.f32 0.0, %v3202
    %v3204 = vpop.f32.mrb[0].mxu0
    %3205 = vdwg.mxu0
    %3206 = vmatprep.subr.mxu0 0.0
    %3207 = vmatpush1.msra.mxu0 %v3010
    %3208 = vmatprep.subr.mxu0 0.0
    %3209 = vmatpush1.msra.mxu0 %v3011
    %3210 = vmatprep.subr.mxu0 0.0
    %3211 = vmatpush1.msra.mxu0 %v3012
    %3212 = vmatprep.subr.mxu0 0.0
    %3213 = vmatpush1.msra.mxu0 %v3013
    %3214 = vmatprep.subr.mxu0 0.0
    %3215 = vmatpush1.msra.mxu0 0.0
    %3216 = vmatprep.subr.mxu0 0.0
    %3217 = vmatpush1.msra.mxu0 0.0
    %3218 = vmatprep.subr.mxu0 0.0
    %3219 = vmatpush1.msra.mxu0 0.0
    %3220 = vmatprep.subr.mxu0 0.0
    %3221 = vmatpush1.msra.mxu0 0.0
    %3222 = vmatprep.subr.mxu0 0.0
    %3223 = vmatpush1.msra.mxu0 0.0
    %3224 = vmatprep.subr.mxu0 0.0
    %3225 = vmatpush1.msra.mxu0 0.0
    %3226 = vmatprep.subr.mxu0 0.0
    %3227 = vmatpush1.msra.mxu0 0.0
    %3228 = vmatprep.subr.mxu0 0.0
    %3229 = vmatpush1.msra.mxu0 0.0
    %3230 = vmatprep.subr.mxu0 0.0
    %3231 = vmatpush1.msra.mxu0 0.0
    %3232 = vmatprep.subr.mxu0 0.0
    %3233 = vmatpush1.msra.mxu0 0.0
    %3234 = vmatprep.subr.mxu0 0.0
    %3235 = vmatpush1.msra.mxu0 0.0
    %3236 = vmatprep.subr.mxu0 0.0
    %3237 = vmatpush1.msra.mxu0 0.0
    %3238 = vmatprep.subr.mxu0 0.0
    %3239 = vmatpush1.msra.mxu0 0.0
    %3240 = vmatprep.subr.mxu0 0.0
    %3241 = vmatpush1.msra.mxu0 0.0
    %3242 = vmatprep.subr.mxu0 0.0
    %3243 = vmatpush1.msra.mxu0 0.0
    %3244 = vmatprep.subr.mxu0 0.0
    %3245 = vmatpush1.msra.mxu0 0.0
    %3246 = vmatprep.subr.mxu0 0.0
    %3247 = vmatpush1.msra.mxu0 0.0
    %3248 = vmatprep.subr.mxu0 0.0
    %3249 = vmatpush1.msra.mxu0 0.0
    %3250 = vmatprep.subr.mxu0 0.0
    %3251 = vmatpush1.msra.mxu0 0.0
    %3252 = vmatprep.subr.mxu0 0.0
    %3253 = vmatpush1.msra.mxu0 0.0
    %3254 = vmatprep.subr.mxu0 0.0
    %3255 = vmatpush1.msra.mxu0 0.0
    %3256 = vmatprep.subr.mxu0 0.0
    %3257 = vmatpush1.msra.mxu0 0.0
    %3258 = vmatprep.subr.mxu0 0.0
    %3259 = vmatpush1.msra.mxu0 0.0
    %3260 = vmatprep.subr.mxu0 0.0
    %3261 = vmatpush1.msra.mxu0 0.0
    %3262 = vmatprep.subr.mxu0 0.0
    %3263 = vmatpush1.msra.mxu0 0.0
    %3264 = vmatprep.subr.mxu0 0.0
    %3265 = vmatpush1.msra.mxu0 0.0
    %3266 = vmatprep.subr.mxu0 0.0
    %3267 = vmatpush1.msra.mxu0 0.0
    %3268 = vmatprep.subr.mxu0 0.0
    %3269 = vmatpush1.msra.mxu0 0.0
    %3270 = vmatprep.mubr.f32.mxu0 0.0
    %3271 = vmatmul.mubr.f32.gmra.mrb[0].mxu0 %v3051
    %v3272 = vpop.f32.mrb[0].mxu0
    %v3273 = vadd.f32 0.0, %v3272
    %v3274 = vpop.f32.mrb[0].mxu0
    %3275 = vmatprep.mubr.f32.mxu0 0.0
    %3276 = vmatmul.mubr.f32.gmra.mrb[0].mxu0 %v3054
    %v3277 = vpop.f32.mrb[0].mxu0
    %v3278 = vadd.f32 0.0, %v3277
    %v3279 = vpop.f32.mrb[0].mxu0
    %3280 = vdwg.mxu0
    %3281 = vmatprep.subr.mxu0 0.0
    %3282 = vmatpush1.msra.mxu0 %v3014
    %3283 = vmatprep.subr.mxu0 0.0
    %3284 = vmatpush1.msra.mxu0 %v3015
    %3285 = vmatprep.subr.mxu0 0.0
    %3286 = vmatpush1.msra.mxu0 %v3016
    %3287 = vmatprep.subr.mxu0 0.0
    %3288 = vmatpush1.msra.mxu0 %v3017
    %3289 = vmatprep.subr.mxu0 0.0
    %3290 = vmatpush1.msra.mxu0 0.0
    %3291 = vmatprep.subr.mxu0 0.0
    %3292 = vmatpush1.msra.mxu0 0.0
    %3293 = vmatprep.subr.mxu0 0.0
    %3294 = vmatpush1.msra.mxu0 0.0
    %3295 = vmatprep.subr.mxu0 0.0
    %3296 = vmatpush1.msra.mxu0 0.0
    %3297 = vmatprep.subr.mxu0 0.0
    %3298 = vmatpush1.msra.mxu0 0.0
    %3299 = vmatprep.subr.mxu0 0.0
    %3300 = vmatpush1.msra.mxu0 0.0
    %3301 = vmatprep.subr.mxu0 0.0
    %3302 = vmatpush1.msra.mxu0 0.0
    %3303 = vmatprep.subr.mxu0 0.0
    %3304 = vmatpush1.msra.mxu0 0.0
    %3305 = vmatprep.subr.mxu0 0.0
    %3306 = vmatpush1.msra.mxu0 0.0
    %3307 = vmatprep.subr.mxu0 0.0
    %3308 = vmatpush1.msra.mxu0 0.0
    %3309 = vmatprep.subr.mxu0 0.0
    %3310 = vmatpush1.msra.mxu0 0.0
    %3311 = vmatprep.subr.mxu0 0.0
    %3312 = vmatpush1.msra.mxu0 0.0
    %3313 = vmatprep.subr.mxu0 0.0
    %3314 = vmatpush1.msra.mxu0 0.0
    %3315 = vmatprep.subr.mxu0 0.0
    %3316 = vmatpush1.msra.mxu0 0.0
    %3317 = vmatprep.subr.mxu0 0.0
    %3318 = vmatpush1.msra.mxu0 0.0
    %3319 = vmatprep.subr.mxu0 0.0
    %3320 = vmatpush1.msra.mxu0 0.0
    %3321 = vmatprep.subr.mxu0 0.0
    %3322 = vmatpush1.msra.mxu0 0.0
    %3323 = vmatprep.subr.mxu0 0.0
    %3324 = vmatpush1.msra.mxu0 0.0
    %3325 = vmatprep.subr.mxu0 0.0
    %3326 = vmatpush1.msra.mxu0 0.0
    %3327 = vmatprep.subr.mxu0 0.0
    %3328 = vmatpush1.msra.mxu0 0.0
    %3329 = vmatprep.subr.mxu0 0.0
    %3330 = vmatpush1.msra.mxu0 0.0
    %3331 = vmatprep.subr.mxu0 0.0
    %3332 = vmatpush1.msra.mxu0 0.0
    %3333 = vmatprep.subr.mxu0 0.0
    %3334 = vmatpush1.msra.mxu0 0.0
    %3335 = vmatprep.subr.mxu0 0.0
    %3336 = vmatpush1.msra.mxu0 0.0
    %3337 = vmatprep.subr.mxu0 0.0
    %3338 = vmatpush1.msra.mxu0 0.0
    %3339 = vmatprep.subr.mxu0 0.0
    %3340 = vmatpush1.msra.mxu0 0.0
    %3341 = vmatprep.subr.mxu0 0.0
    %3342 = vmatpush1.msra.mxu0 0.0
    %3343 = vmatprep.subr.mxu0 0.0
    %3344 = vmatpush1.msra.mxu0 0.0
    %3345 = vmatprep.mubr.f32.mxu0 0.0
    %3346 = vmatmul.mubr.f32.gmra.mrb[0].mxu0 %v3051
    %v3347 = vpop.f32.mrb[0].mxu0
    %v3348 = vadd.f32 0.0, %v3347
    %v3349 = vpop.f32.mrb[0].mxu0
    %3350 = vmatprep.mubr.f32.mxu0 0.0
    %3351 = vmatmul.mubr.f32.gmra.mrb[0].mxu0 %v3054
    %v3352 = vpop.f32.mrb[0].mxu0
    %v3353 = vadd.f32 0.0, %v3352
    %v3354 = vpop.f32.mrb[0].mxu0
    %3355 = vdwg.mxu0
    %3356 = vmatprep.subr.mxu0 0.0
    %3357 = vmatpush1.msra.mxu0 %v3018
    %3358 = vmatprep.subr.mxu0 0.0
    %3359 = vmatpush1.msra.mxu0 %v3019
    %3360 = vmatprep.subr.mxu0 0.0
    %3361 = vmatpush1.msra.mxu0 %v3020
    %3362 = vmatprep.subr.mxu0 0.0
    %3363 = vmatpush1.msra.mxu0 %v3021
    %3364 = vmatprep.subr.mxu0 0.0
    %3365 = vmatpush1.msra.mxu0 0.0
    %3366 = vmatprep.subr.mxu0 0.0
    %3367 = vmatpush1.msra.mxu0 0.0
    %3368 = vmatprep.subr.mxu0 0.0
    %3369 = vmatpush1.msra.mxu0 0.0
    %3370 = vmatprep.subr.mxu0 0.0
    %3371 = vmatpush1.msra.mxu0 0.0
    %3372 = vmatprep.subr.mxu0 0.0
    %3373 = vmatpush1.msra.mxu0 0.0
    %3374 = vmatprep.subr.mxu0 0.0
    %3375 = vmatpush1.msra.mxu0 0.0
    %3376 = vmatprep.subr.mxu0 0.0
    %3377 = vmatpush1.msra.mxu0 0.0
    %3378 = vmatprep.subr.mxu0 0.0
    %3379 = vmatpush1.msra.mxu0 0.0
    %3380 = vmatprep.subr.mxu0 0.0
    %3381 = vmatpush1.msra.mxu0 0.0
    %3382 = vmatprep.subr.mxu0 0.0
    %3383 = vmatpush1.msra.mxu0 0.0
    %3384 = vmatprep.subr.mxu0 0.0
    %3385 = vmatpush1.msra.mxu0 0.0
    %3386 = vmatprep.subr.mxu0 0.0
    %3387 = vmatpush1.msra.mxu0 0.0
    %3388 = vmatprep.subr.mxu0 0.0
    %3389 = vmatpush1.msra.mxu0 0.0
    %3390 = vmatprep.subr.mxu0 0.0
    %3391 = vmatpush1.msra.mxu0 0.0
    %3392 = vmatprep.subr.mxu0 0.0
    %3393 = vmatpush1.msra.mxu0 0.0
    %3394 = vmatprep.subr.mxu0 0.0
    %3395 = vmatpush1.msra.mxu0 0.0
    %3396 = vmatprep.subr.mxu0 0.0
    %3397 = vmatpush1.msra.mxu0 0.0
    %3398 = vmatprep.subr.mxu0 0.0
    %3399 = vmatpush1.msra.mxu0 0.0
    %3400 = vmatprep.subr.mxu0 0.0
    %3401 = vmatpush1.msra.mxu0 0.0
    %3402 = vmatprep.subr.mxu0 0.0
    %3403 = vmatpush1.msra.mxu0 0.0
    %3404 = vmatprep.subr.mxu0 0.0
    %3405 = vmatpush1.msra.mxu0 0.0
    %3406 = vmatprep.subr.mxu0 0.0
    %3407 = vmatpush1.msra.mxu0 0.0
    %3408 = vmatprep.subr.mxu0 0.0
    %3409 = vmatpush1.msra.mxu0 0.0
    %3410 = vmatprep.subr.mxu0 0.0
    %3411 = vmatpush1.msra.mxu0 0.0
    %3412 = vmatprep.subr.mxu0 0.0
    %3413 = vmatpush1.msra.mxu0 0.0
    %3414 = vmatprep.subr.mxu0 0.0
    %3415 = vmatpush1.msra.mxu0 0.0
    %3416 = vmatprep.subr.mxu0 0.0
    %3417 = vmatpush1.msra.mxu0 0.0
    %3418 = vmatprep.subr.mxu0 0.0
    %3419 = vmatpush1.msra.mxu0 0.0
    %3420 = vmatprep.mubr.f32.mxu0 0.0
    %3421 = vmatmul.mubr.f32.gmra.mrb[0].mxu0 %v3051
    %v3422 = vpop.f32.mrb[0].mxu0
    %v3423 = vadd.f32 0.0, %v3422
    %v3424 = vpop.f32.mrb[0].mxu0
    %3425 = vmatprep.mubr.f32.mxu0 0.0
    %3426 = vmatmul.mubr.f32.gmra.mrb[0].mxu0 %v3054
    %v3427 = vpop.f32.mrb[0].mxu0
    %v3428 = vadd.f32 0.0, %v3427
    %v3429 = vpop.f32.mrb[0].mxu0
    %3430 = vdwg.mxu0
    %3431 = vmatprep.subr.mxu0 0.0
    %3432 = vmatpush1.msra.mxu0 %v3022
    %3433 = vmatprep.subr.mxu0 0.0
    %3434 = vmatpush1.msra.mxu0 %v3023
    %3435 = vmatprep.subr.mxu0 0.0
    %3436 = vmatpush1.msra.mxu0 %v3024
    %3437 = vmatprep.subr.mxu0 0.0
    %3438 = vmatpush1.msra.mxu0 %v3025
    %3439 = vmatprep.subr.mxu0 0.0
    %3440 = vmatpush1.msra.mxu0 0.0
    %3441 = vmatprep.subr.mxu0 0.0
    %3442 = vmatpush1.msra.mxu0 0.0
    %3443 = vmatprep.subr.mxu0 0.0
    %3444 = vmatpush1.msra.mxu0 0.0
    %3445 = vmatprep.subr.mxu0 0.0
    %3446 = vmatpush1.msra.mxu0 0.0
    %3447 = vmatprep.subr.mxu0 0.0
    %3448 = vmatpush1.msra.mxu0 0.0
    %3449 = vmatprep.subr.mxu0 0.0
    %3450 = vmatpush1.msra.mxu0 0.0
    %3451 = vmatprep.subr.mxu0 0.0
    %3452 = vmatpush1.msra.mxu0 0.0
    %3453 = vmatprep.subr.mxu0 0.0
    %3454 = vmatpush1.msra.mxu0 0.0
    %3455 = vmatprep.subr.mxu0 0.0
    %3456 = vmatpush1.msra.mxu0 0.0
    %3457 = vmatprep.subr.mxu0 0.0
    %3458 = vmatpush1.msra.mxu0 0.0
    %3459 = vmatprep.subr.mxu0 0.0
    %3460 = vmatpush1.msra.mxu0 0.0
    %3461 = vmatprep.subr.mxu0 0.0
    %3462 = vmatpush1.msra.mxu0 0.0
    %3463 = vmatprep.subr.mxu0 0.0
    %3464 = vmatpush1.msra.mxu0 0.0
    %3465 = vmatprep.subr.mxu0 0.0
    %3466 = vmatpush1.msra.mxu0 0.0
    %3467 = vmatprep.subr.mxu0 0.0
    %3468 = vmatpush1.msra.mxu0 0.0
    %3469 = vmatprep.subr.mxu0 0.0
    %3470 = vmatpush1.msra.mxu0 0.0
    %3471 = vmatprep.subr.mxu0 0.0
    %3472 = vmatpush1.msra.mxu0 0.0
    %3473 = vmatprep.subr.mxu0 0.0
    %3474 = vmatpush1.msra.mxu0 0.0
    %3475 = vmatprep.subr.mxu0 0.0
    %3476 = vmatpush1.msra.mxu0 0.0
    %3477 = vmatprep.subr.mxu0 0.0
    %3478 = vmatpush1.msra.mxu0 0.0
    %3479 = vmatprep.subr.mxu0 0.0
    %3480 = vmatpush1.msra.mxu0 0.0
    %3481 = vmatprep.subr.mxu0 0.0
    %3482 = vmatpush1.msra.mxu0 0.0
    %3483 = vmatprep.subr.mxu0 0.0
    %3484 = vmatpush1.msra.mxu0 0.0
    %3485 = vmatprep.subr.mxu0 0.0
    %3486 = vmatpush1.msra.mxu0 0.0
    %3487 = vmatprep.subr.mxu0 0.0
    %3488 = vmatpush1.msra.mxu0 0.0
    %3489 = vmatprep.subr.mxu0 0.0
    %3490 = vmatpush1.msra.mxu0 0.0
    %3491 = vmatprep.subr.mxu0 0.0
    %3492 = vmatpush1.msra.mxu0 0.0
    %3493 = vmatprep.subr.mxu0 0.0
    %3494 = vmatpush1.msra.mxu0 0.0
    %3495 = vmatprep.mubr.f32.mxu0 0.0
    %3496 = vmatmul.mubr.f32.gmra.mrb[0].mxu0 %v3051
    %v3497 = vpop.f32.mrb[0].mxu0
    %v3498 = vadd.f32 0.0, %v3497
    %v3499 = vpop.f32.mrb[0].mxu0
    %3500 = vmatprep.mubr.f32.mxu0 0.0
    %3501 = vmatmul.mubr.f32.gmra.mrb[0].mxu0 %v3054
    %v3502 = vpop.f32.mrb[0].mxu0
    %v3503 = vadd.f32 0.0, %v3502
    %v3504 = vpop.f32.mrb[0].mxu0
    %3505 = vdwg.mxu0
    %3506 = vmatprep.subr.mxu0 0.0
    %3507 = vmatpush1.msra.mxu0 %v3026
    %3508 = vmatprep.subr.mxu0 0.0
    %3509 = vmatpush1.msra.mxu0 %v3027
    %3510 = vmatprep.subr.mxu0 0.0
    %3511 = vmatpush1.msra.mxu0 %v3028
    %3512 = vmatprep.subr.mxu0 0.0
    %3513 = vmatpush1.msra.mxu0 %v3029
    %3514 = vmatprep.subr.mxu0 0.0
    %3515 = vmatpush1.msra.mxu0 0.0
    %3516 = vmatprep.subr.mxu0 0.0
    %3517 = vmatpush1.msra.mxu0 0.0
    %3518 = vmatprep.subr.mxu0 0.0
    %3519 = vmatpush1.msra.mxu0 0.0
    %3520 = vmatprep.subr.mxu0 0.0
    %3521 = vmatpush1.msra.mxu0 0.0
    %3522 = vmatprep.subr.mxu0 0.0
    %3523 = vmatpush1.msra.mxu0 0.0
    %3524 = vmatprep.subr.mxu0 0.0
    %3525 = vmatpush1.msra.mxu0 0.0
    %3526 = vmatprep.subr.mxu0 0.0
    %3527 = vmatpush1.msra.mxu0 0.0
    %3528 = vmatprep.subr.mxu0 0.0
    %3529 = vmatpush1.msra.mxu0 0.0
    %3530 = vmatprep.subr.mxu0 0.0
    %3531 = vmatpush1.msra.mxu0 0.0
    %3532 = vmatprep.subr.mxu0 0.0
    %3533 = vmatpush1.msra.mxu0 0.0
    %3534 = vmatprep.subr.mxu0 0.0
    %3535 = vmatpush1.msra.mxu0 0.0
    %3536 = vmatprep.subr.mxu0 0.0
    %3537 = vmatpush1.msra.mxu0 0.0
    %3538 = vmatprep.subr.mxu0 0.0
    %3539 = vmatpush1.msra.mxu0 0.0
    %3540 = vmatprep.subr.mxu0 0.0
    %3541 = vmatpush1.msra.mxu0 0.0
    %3542 = vmatprep.subr.mxu0 0.0
    %3543 = vmatpush1.msra.mxu0 0.0
    %3544 = vmatprep.subr.mxu0 0.0
    %3545 = vmatpush1.msra.mxu0 0.0
    %3546 = vmatprep.subr.mxu0 0.0
    %3547 = vmatpush1.msra.mxu0 0.0
    %3548 = vmatprep.subr.mxu0 0.0
    %3549 = vmatpush1.msra.mxu0 0.0
    %3550 = vmatprep.subr.mxu0 0.0
    %3551 = vmatpush1.msra.mxu0 0.0
    %3552 = vmatprep.subr.mxu0 0.0
    %3553 = vmatpush1.msra.mxu0 0.0
    %3554 = vmatprep.subr.mxu0 0.0
    %3555 = vmatpush1.msra.mxu0 0.0
    %3556 = vmatprep.subr.mxu0 0.0
    %3557 = vmatpush1.msra.mxu0 0.0
    %3558 = vmatprep.subr.mxu0 0.0
    %3559 = vmatpush1.msra.mxu0 0.0
    %3560 = vmatprep.subr.mxu0 0.0
    %3561 = vmatpush1.msra.mxu0 0.0
    %3562 = vmatprep.subr.mxu0 0.0
    %3563 = vmatpush1.msra.mxu0 0.0
    %3564 = vmatprep.subr.mxu0 0.0
    %3565 = vmatpush1.msra.mxu0 0.0
    %3566 = vmatprep.subr.mxu0 0.0
    %3567 = vmatpush1.msra.mxu0 0.0
    %3568 = vmatprep.subr.mxu0 0.0
    %3569 = vmatpush1.msra.mxu0 0.0
    %3570 = vmatprep.mubr.f32.mxu0 0.0
    %3571 = vmatmul.mubr.f32.gmra.mrb[0].mxu0 %v3051
    %v3572 = vpop.f32.mrb[0].mxu0
    %v3573 = vadd.f32 0.0, %v3572
    %v3574 = vpop.f32.mrb[0].mxu0
    %3575 = vmatprep.mubr.f32.mxu0 0.0
    %3576 = vmatmul.mubr.f32.gmra.mrb[0].mxu0 %v3054
    %v3577 = vpop.f32.mrb[0].mxu0
    %v3578 = vadd.f32 0.0, %v3577
    %v3579 = vpop.f32.mrb[0].mxu0
    %3580 = vdwg.mxu0
    %3581 = vmatprep.subr.mxu0 0.0
    %3582 = vmatpush1.msra.mxu0 %v3030
    %3583 = vmatprep.subr.mxu0 0.0
    %3584 = vmatpush1.msra.mxu0 %v3031
    %3585 = vmatprep.subr.mxu0 0.0
    %3586 = vmatpush1.msra.mxu0 %v3032
    %3587 = vmatprep.subr.mxu0 0.0
    %3588 = vmatpush1.msra.mxu0 %v3033
    %3589 = vmatprep.subr.mxu0 0.0
    %3590 = vmatpush1.msra.mxu0 0.0
    %3591 = vmatprep.subr.mxu0 0.0
    %3592 = vmatpush1.msra.mxu0 0.0
    %3593 = vmatprep.subr.mxu0 0.0
    %3594 = vmatpush1.msra.mxu0 0.0
    %3595 = vmatprep.subr.mxu0 0.0
    %3596 = vmatpush1.msra.mxu0 0.0
    %3597 = vmatprep.subr.mxu0 0.0
    %3598 = vmatpush1.msra.mxu0 0.0
    %3599 = vmatprep.subr.mxu0 0.0
    %3600 = vmatpush1.msra.mxu0 0.0
    %3601 = vmatprep.subr.mxu0 0.0
    %3602 = vmatpush1.msra.mxu0 0.0
    %3603 = vmatprep.subr.mxu0 0.0
    %3604 = vmatpush1.msra.mxu0 0.0
    %3605 = vmatprep.subr.mxu0 0.0
    %3606 = vmatpush1.msra.mxu0 0.0
    %3607 = vmatprep.subr.mxu0 0.0
    %3608 = vmatpush1.msra.mxu0 0.0
    %3609 = vmatprep.subr.mxu0 0.0
    %3610 = vmatpush1.msra.mxu0 0.0
    %3611 = vmatprep.subr.mxu0 0.0
    %3612 = vmatpush1.msra.mxu0 0.0
    %3613 = vmatprep.subr.mxu0 0.0
    %3614 = vmatpush1.msra.mxu0 0.0
    %3615 = vmatprep.subr.mxu0 0.0
    %3616 = vmatpush1.msra.mxu0 0.0
    %3617 = vmatprep.subr.mxu0 0.0
    %3618 = vmatpush1.msra.mxu0 0.0
    %3619 = vmatprep.subr.mxu0 0.0
    %3620 = vmatpush1.msra.mxu0 0.0
    %3621 = vmatprep.subr.mxu0 0.0
    %3622 = vmatpush1.msra.mxu0 0.0
    %3623 = vmatprep.subr.mxu0 0.0
    %3624 = vmatpush1.msra.mxu0 0.0
    %3625 = vmatprep.subr.mxu0 0.0
    %3626 = vmatpush1.msra.mxu0 0.0
    %3627 = vmatprep.subr.mxu0 0.0
    %3628 = vmatpush1.msra.mxu0 0.0
    %3629 = vmatprep.subr.mxu0 0.0
    %3630 = vmatpush1.msra.mxu0 0.0
    %3631 = vmatprep.subr.mxu0 0.0
    %3632 = vmatpush1.msra.mxu0 0.0
    %3633 = vmatprep.subr.mxu0 0.0
    %3634 = vmatpush1.msra.mxu0 0.0
    %3635 = vmatprep.subr.mxu0 0.0
    %3636 = vmatpush1.msra.mxu0 0.0
    %3637 = vmatprep.subr.mxu0 0.0
    %3638 = vmatpush1.msra.mxu0 0.0
    %3639 = vmatprep.subr.mxu0 0.0
    %3640 = vmatpush1.msra.mxu0 0.0
    %3641 = vmatprep.subr.mxu0 0.0
    %3642 = vmatpush1.msra.mxu0 0.0
    %3643 = vmatprep.subr.mxu0 0.0
    %3644 = vmatpush1.msra.mxu0 0.0
    %3645 = vmatprep.mubr.f32.mxu0 0.0
    %3646 = vmatmul.mubr.f32.gmra.mrb[0].mxu0 %v3051
    %v3647 = vpop.f32.mrb[0].mxu0
    %v3648 = vadd.f32 0.0, %v3647
    %v3649 = vpop.f32.mrb[0].mxu0
    %3650 = vmatprep.mubr.f32.mxu0 0.0
    %3651 = vmatmul.mubr.f32.gmra.mrb[0].mxu0 %v3054
    %v3652 = vpop.f32.mrb[0].mxu0
    %v3653 = vadd.f32 0.0, %v3652
    %v3654 = vpop.f32.mrb[0].mxu0
    %3655 = vdwg.mxu0
    %3656 = vmatprep.subr.mxu0 0.0
    %3657 = vmatpush1.msra.mxu0 %v3034
    %3658 = vmatprep.subr.mxu0 0.0
    %3659 = vmatpush1.msra.mxu0 %v3035
    %3660 = vmatprep.subr.mxu0 0.0
    %3661 = vmatpush1.msra.mxu0 %v3036
    %3662 = vmatprep.subr.mxu0 0.0
    %3663 = vmatpush1.msra.mxu0 %v3037
    %3664 = vmatprep.subr.mxu0 0.0
    %3665 = vmatpush1.msra.mxu0 0.0
    %3666 = vmatprep.subr.mxu0 0.0
    %3667 = vmatpush1.msra.mxu0 0.0
    %3668 = vmatprep.subr.mxu0 0.0
    %3669 = vmatpush1.msra.mxu0 0.0
    %3670 = vmatprep.subr.mxu0 0.0
    %3671 = vmatpush1.msra.mxu0 0.0
    %3672 = vmatprep.subr.mxu0 0.0
    %3673 = vmatpush1.msra.mxu0 0.0
    %3674 = vmatprep.subr.mxu0 0.0
    %3675 = vmatpush1.msra.mxu0 0.0
    %3676 = vmatprep.subr.mxu0 0.0
    %3677 = vmatpush1.msra.mxu0 0.0
    %3678 = vmatprep.subr.mxu0 0.0
    %3679 = vmatpush1.msra.mxu0 0.0
    %3680 = vmatprep.subr.mxu0 0.0
    %3681 = vmatpush1.msra.mxu0 0.0
    %3682 = vmatprep.subr.mxu0 0.0
    %3683 = vmatpush1.msra.mxu0 0.0
    %3684 = vmatprep.subr.mxu0 0.0
    %3685 = vmatpush1.msra.mxu0 0.0
    %3686 = vmatprep.subr.mxu0 0.0
    %3687 = vmatpush1.msra.mxu0 0.0
    %3688 = vmatprep.subr.mxu0 0.0
    %3689 = vmatpush1.msra.mxu0 0.0
    %3690 = vmatprep.subr.mxu0 0.0
    %3691 = vmatpush1.msra.mxu0 0.0
    %3692 = vmatprep.subr.mxu0 0.0
    %3693 = vmatpush1.msra.mxu0 0.0
    %3694 = vmatprep.subr.mxu0 0.0
    %3695 = vmatpush1.msra.mxu0 0.0
    %3696 = vmatprep.subr.mxu0 0.0
    %3697 = vmatpush1.msra.mxu0 0.0
    %3698 = vmatprep.subr.mxu0 0.0
    %3699 = vmatpush1.msra.mxu0 0.0
    %3700 = vmatprep.subr.mxu0 0.0
    %3701 = vmatpush1.msra.mxu0 0.0
    %3702 = vmatprep.subr.mxu0 0.0
    %3703 = vmatpush1.msra.mxu0 0.0
    %3704 = vmatprep.subr.mxu0 0.0
    %3705 = vmatpush1.msra.mxu0 0.0
    %3706 = vmatprep.subr.mxu0 0.0
    %3707 = vmatpush1.msra.mxu0 0.0
    %3708 = vmatprep.subr.mxu0 0.0
    %3709 = vmatpush1.msra.mxu0 0.0
    %3710 = vmatprep.subr.mxu0 0.0
    %3711 = vmatpush1.msra.mxu0 0.0
    %3712 = vmatprep.subr.mxu0 0.0
    %3713 = vmatpush1.msra.mxu0 0.0
    %3714 = vmatprep.subr.mxu0 0.0
    %3715 = vmatpush1.msra.mxu0 0.0
    %3716 = vmatprep.subr.mxu0 0.0
    %3717 = vmatpush1.msra.mxu0 0.0
    %3718 = vmatprep.subr.mxu0 0.0
    %3719 = vmatpush1.msra.mxu0 0.0
    %3720 = vmatprep.mubr.f32.mxu0 0.0
    %3721 = vmatmul.mubr.f32.gmra.mrb[0].mxu0 %v3051
    %v3722 = vpop.f32.mrb[0].mxu0
    %v3723 = vadd.f32 0.0, %v3722
    %v3724 = vpop.f32.mrb[0].mxu0
    %3725 = vmatprep.mubr.f32.mxu0 0.0
    %3726 = vmatmul.mubr.f32.gmra.mrb[0].mxu0 %v3054
    %v3727 = vpop.f32.mrb[0].mxu0
    %v3728 = vadd.f32 0.0, %v3727
    %v3729 = vpop.f32.mrb[0].mxu0
    %3730 = vdwg.mxu0
    %3731 = vmatprep.subr.mxu0 0.0
    %3732 = vmatpush1.msra.mxu0 %v3038
    %3733 = vmatprep.subr.mxu0 0.0
    %3734 = vmatpush1.msra.mxu0 %v3039
    %3735 = vmatprep.subr.mxu0 0.0
    %3736 = vmatpush1.msra.mxu0 %v3040
    %3737 = vmatprep.subr.mxu0 0.0
    %3738 = vmatpush1.msra.mxu0 %v3041
    %3739 = vmatprep.subr.mxu0 0.0
    %3740 = vmatpush1.msra.mxu0 0.0
    %3741 = vmatprep.subr.mxu0 0.0
    %3742 = vmatpush1.msra.mxu0 0.0
    %3743 = vmatprep.subr.mxu0 0.0
    %3744 = vmatpush1.msra.mxu0 0.0
    %3745 = vmatprep.subr.mxu0 0.0
    %3746 = vmatpush1.msra.mxu0 0.0
    %3747 = vmatprep.subr.mxu0 0.0
    %3748 = vmatpush1.msra.mxu0 0.0
    %3749 = vmatprep.subr.mxu0 0.0
    %3750 = vmatpush1.msra.mxu0 0.0
    %3751 = vmatprep.subr.mxu0 0.0
    %3752 = vmatpush1.msra.mxu0 0.0
    %3753 = vmatprep.subr.mxu0 0.0
    %3754 = vmatpush1.msra.mxu0 0.0
    %3755 = vmatprep.subr.mxu0 0.0
    %3756 = vmatpush1.msra.mxu0 0.0
    %3757 = vmatprep.subr.mxu0 0.0
    %3758 = vmatpush1.msra.mxu0 0.0
    %3759 = vmatprep.subr.mxu0 0.0
    %3760 = vmatpush1.msra.mxu0 0.0
    %3761 = vmatprep.subr.mxu0 0.0
    %3762 = vmatpush1.msra.mxu0 0.0
    %3763 = vmatprep.subr.mxu0 0.0
    %3764 = vmatpush1.msra.mxu0 0.0
    %3765 = vmatprep.subr.mxu0 0.0
    %3766 = vmatpush1.msra.mxu0 0.0
    %3767 = vmatprep.subr.mxu0 0.0
    %3768 = vmatpush1.msra.mxu0 0.0
    %3769 = vmatprep.subr.mxu0 0.0
    %3770 = vmatpush1.msra.mxu0 0.0
    %3771 = vmatprep.subr.mxu0 0.0
    %3772 = vmatpush1.msra.mxu0 0.0
    %3773 = vmatprep.subr.mxu0 0.0
    %3774 = vmatpush1.msra.mxu0 0.0
    %3775 = vmatprep.subr.mxu0 0.0
    %3776 = vmatpush1.msra.mxu0 0.0
    %3777 = vmatprep.subr.mxu0 0.0
    %3778 = vmatpush1.msra.mxu0 0.0
    %3779 = vmatprep.subr.mxu0 0.0
    %3780 = vmatpush1.msra.mxu0 0.0
    %3781 = vmatprep.subr.mxu0 0.0
    %3782 = vmatpush1.msra.mxu0 0.0
    %3783 = vmatprep.subr.mxu0 0.0
    %3784 = vmatpush1.msra.mxu0 0.0
    %3785 = vmatprep.subr.mxu0 0.0
    %3786 = vmatpush1.msra.mxu0 0.0
    %3787 = vmatprep.subr.mxu0 0.0
    %3788 = vmatpush1.msra.mxu0 0.0
    %3789 = vmatprep.subr.mxu0 0.0
    %3790 = vmatpush1.msra.mxu0 0.0
    %3791 = vmatprep.subr.mxu0 0.0
    %3792 = vmatpush1.msra.mxu0 0.0
    %3793 = vmatprep.subr.mxu0 0.0
    %3794 = vmatpush1.msra.mxu0 0.0
    %3795 = vmatprep.mubr.f32.mxu0 0.0
    %3796 = vmatmul.mubr.f32.gmra.mrb[0].mxu0 %v3051
    %v3797 = vpop.f32.mrb[0].mxu0
    %v3798 = vadd.f32 0.0, %v3797
    %v3799 = vpop.f32.mrb[0].mxu0
    %3800 = vmatprep.mubr.f32.mxu0 0.0
    %3801 = vmatmul.mubr.f32.gmra.mrb[0].mxu0 %v3054
    %v3802 = vpop.f32.mrb[0].mxu0
    %v3803 = vadd.f32 0.0, %v3802
    %v3804 = vpop.f32.mrb[0].mxu0
    %3805 = vdwg.mxu0
    %3806 = vmatprep.subr.mxu0 0.0
    %3807 = vmatpush1.msra.mxu0 %v3042
    %3808 = vmatprep.subr.mxu0 0.0
    %3809 = vmatpush1.msra.mxu0 %v3043
    %3810 = vmatprep.subr.mxu0 0.0
    %3811 = vmatpush1.msra.mxu0 %v3044
    %3812 = vmatprep.subr.mxu0 0.0
    %3813 = vmatpush1.msra.mxu0 %v3045
    %3814 = vmatprep.subr.mxu0 0.0
    %3815 = vmatpush1.msra.mxu0 0.0
    %3816 = vmatprep.subr.mxu0 0.0
    %3817 = vmatpush1.msra.mxu0 0.0
    %3818 = vmatprep.subr.mxu0 0.0
    %3819 = vmatpush1.msra.mxu0 0.0
    %3820 = vmatprep.subr.mxu0 0.0
    %3821 = vmatpush1.msra.mxu0 0.0
    %3822 = vmatprep.subr.mxu0 0.0
    %3823 = vmatpush1.msra.mxu0 0.0
    %3824 = vmatprep.subr.mxu0 0.0
    %3825 = vmatpush1.msra.mxu0 0.0
    %3826 = vmatprep.subr.mxu0 0.0
    %3827 = vmatpush1.msra.mxu0 0.0
    %3828 = vmatprep.subr.mxu0 0.0
    %3829 = vmatpush1.msra.mxu0 0.0
    %3830 = vmatprep.subr.mxu0 0.0
    %3831 = vmatpush1.msra.mxu0 0.0
    %3832 = vmatprep.subr.mxu0 0.0
    %3833 = vmatpush1.msra.mxu0 0.0
    %3834 = vmatprep.subr.mxu0 0.0
    %3835 = vmatpush1.msra.mxu0 0.0
    %3836 = vmatprep.subr.mxu0 0.0
    %3837 = vmatpush1.msra.mxu0 0.0
    %3838 = vmatprep.subr.mxu0 0.0
    %3839 = vmatpush1.msra.mxu0 0.0
    %3840 = vmatprep.subr.mxu0 0.0
    %3841 = vmatpush1.msra.mxu0 0.0
    %3842 = vmatprep.subr.mxu0 0.0
    %3843 = vmatpush1.msra.mxu0 0.0
    %3844 = vmatprep.subr.mxu0 0.0
    %3845 = vmatpush1.msra.mxu0 0.0
    %3846 = vmatprep.subr.mxu0 0.0
    %3847 = vmatpush1.msra.mxu0 0.0
    %3848 = vmatprep.subr.mxu0 0.0
    %3849 = vmatpush1.msra.mxu0 0.0
    %3850 = vmatprep.subr.mxu0 0.0
    %3851 = vmatpush1.msra.mxu0 0.0
    %3852 = vmatprep.subr.mxu0 0.0
    %3853 = vmatpush1.msra.mxu0 0.0
    %3854 = vmatprep.subr.mxu0 0.0
    %3855 = vmatpush1.msra.mxu0 0.0
    %3856 = vmatprep.subr.mxu0 0.0
    %3857 = vmatpush1.msra.mxu0 0.0
    %3858 = vmatprep.subr.mxu0 0.0
    %3859 = vmatpush1.msra.mxu0 0.0
    %3860 = vmatprep.subr.mxu0 0.0
    %3861 = vmatpush1.msra.mxu0 0.0
    %3862 = vmatprep.subr.mxu0 0.0
    %3863 = vmatpush1.msra.mxu0 0.0
    %3864 = vmatprep.subr.mxu0 0.0
    %3865 = vmatpush1.msra.mxu0 0.0
    %3866 = vmatprep.subr.mxu0 0.0
    %3867 = vmatpush1.msra.mxu0 0.0
    %3868 = vmatprep.subr.mxu0 0.0
    %3869 = vmatpush1.msra.mxu0 0.0
    %3870 = vmatprep.mubr.f32.mxu0 0.0
    %3871 = vmatmul.mubr.f32.gmra.mrb[0].mxu0 %v3051
    %v3872 = vpop.f32.mrb[0].mxu0
    %v3873 = vadd.f32 0.0, %v3872
    %v3874 = vpop.f32.mrb[0].mxu0
    %3875 = vmatprep.mubr.f32.mxu0 0.0
    %3876 = vmatmul.mubr.f32.gmra.mrb[0].mxu0 %v3054
    %v3877 = vpop.f32.mrb[0].mxu0
    %v3878 = vadd.f32 0.0, %v3877
    %v3879 = vpop.f32.mrb[0].mxu0
    %3880 = vdwg.mxu0
    %3881 = vmatprep.subr.mxu0 0.0
    %3882 = vmatpush1.msra.mxu0 %v3046
    %3883 = vmatprep.subr.mxu0 0.0
    %3884 = vmatpush1.msra.mxu0 %v3047
    %3885 = vmatprep.subr.mxu0 0.0
    %3886 = vmatpush1.msra.mxu0 %v3048
    %3887 = vmatprep.subr.mxu0 0.0
    %3888 = vmatpush1.msra.mxu0 %v3049
    %3889 = vmatprep.subr.mxu0 0.0
    %3890 = vmatpush1.msra.mxu0 0.0
    %3891 = vmatprep.subr.mxu0 0.0
    %3892 = vmatpush1.msra.mxu0 0.0
    %3893 = vmatprep.subr.mxu0 0.0
    %3894 = vmatpush1.msra.mxu0 0.0
    %3895 = vmatprep.subr.mxu0 0.0
    %3896 = vmatpush1.msra.mxu0 0.0
    %3897 = vmatprep.subr.mxu0 0.0
    %3898 = vmatpush1.msra.mxu0 0.0
    %3899 = vmatprep.subr.mxu0 0.0
    %3900 = vmatpush1.msra.mxu0 0.0
    %3901 = vmatprep.subr.mxu0 0.0
    %3902 = vmatpush1.msra.mxu0 0.0
    %3903 = vmatprep.subr.mxu0 0.0
    %3904 = vmatpush1.msra.mxu0 0.0
    %3905 = vmatprep.subr.mxu0 0.0
    %3906 = vmatpush1.msra.mxu0 0.0
    %3907 = vmatprep.subr.mxu0 0.0
    %3908 = vmatpush1.msra.mxu0 0.0
    %3909 = vmatprep.subr.mxu0 0.0
    %3910 = vmatpush1.msra.mxu0 0.0
    %3911 = vmatprep.subr.mxu0 0.0
    %3912 = vmatpush1.msra.mxu0 0.0
    %3913 = vmatprep.subr.mxu0 0.0
    %3914 = vmatpush1.msra.mxu0 0.0
    %3915 = vmatprep.subr.mxu0 0.0
    %3916 = vmatpush1.msra.mxu0 0.0
    %3917 = vmatprep.subr.mxu0 0.0
    %3918 = vmatpush1.msra.mxu0 0.0
    %3919 = vmatprep.subr.mxu0 0.0
    %3920 = vmatpush1.msra.mxu0 0.0
    %3921 = vmatprep.subr.mxu0 0.0
    %3922 = vmatpush1.msra.mxu0 0.0
    %3923 = vmatprep.subr.mxu0 0.0
    %3924 = vmatpush1.msra.mxu0 0.0
    %3925 = vmatprep.subr.mxu0 0.0
    %3926 = vmatpush1.msra.mxu0 0.0
    %3927 = vmatprep.subr.mxu0 0.0
    %3928 = vmatpush1.msra.mxu0 0.0
    %3929 = vmatprep.subr.mxu0 0.0
    %3930 = vmatpush1.msra.mxu0 0.0
    %3931 = vmatprep.subr.mxu0 0.0
    %3932 = vmatpush1.msra.mxu0 0.0
    %3933 = vmatprep.subr.mxu0 0.0
    %3934 = vmatpush1.msra.mxu0 0.0
    %3935 = vmatprep.subr.mxu0 0.0
    %3936 = vmatpush1.msra.mxu0 0.0
    %3937 = vmatprep.subr.mxu0 0.0
    %3938 = vmatpush1.msra.mxu0 0.0
    %3939 = vmatprep.subr.mxu0 0.0
    %3940 = vmatpush1.msra.mxu0 0.0
    %3941 = vmatprep.subr.mxu0 0.0
    %3942 = vmatpush1.msra.mxu0 0.0
    %3943 = vmatprep.subr.mxu0 0.0
    %3944 = vmatpush1.msra.mxu0 0.0
    %3945 = vmatprep.mubr.f32.mxu0 0.0
    %3946 = vmatmul.mubr.f32.gmra.mrb[0].mxu0 %v3051
    %v3947 = vpop.f32.mrb[0].mxu0
    %v3948 = vadd.f32 0.0, %v3947
    %v3949 = vpop.f32.mrb[0].mxu0
    %3950 = vmatprep.mubr.f32.mxu0 0.0
    %3951 = vmatmul.mubr.f32.gmra.mrb[0].mxu0 %v3054
    %v3952 = vpop.f32.mrb[0].mxu0
    %v3953 = vadd.f32 0.0, %v3952
    %v3954 = vpop.f32.mrb[0].mxu0
    %3955 = vdwg.mxu0
    %v3957 = vsel %vm1050, %v3123, 0
    %v3960 = vsel %vm1050, %v3423, 0
    %3962 = vmatprep.subr.mxu0 0.0
    %3963 = vmatpush1.xpose.msra.mxu0 %v3960
    %3964 = vmatprep.subr.mxu0 0.0
    %3965 = vmatpush1.xpose.msra.mxu0 0.0
    %3966 = vmatprep.subr.mxu0 0.0
    %3967 = vmatpush1.xpose.msra.mxu0 0.0
    %3968 = vmatprep.subr.mxu0 0.0
    %3969 = vmatpush1.xpose.msra.mxu0 0.0
    %3970 = vmatprep.subr.mxu0 0.0
    %3971 = vmatpush1.xpose.msra.mxu0 0.0
    %3972 = vmatprep.subr.mxu0 0.0
    %3973 = vmatpush1.xpose.msra.mxu0 0.0
    %3974 = vmatprep.subr.mxu0 0.0
    %3975 = vmatpush1.xpose.msra.mxu0 0.0
    %3976 = vmatprep.subr.mxu0 0.0
    %3977 = vmatpush1.xpose.msra.mxu0 0.0
    %3978 = vmatprep.subr.mxu0 0.0
    %3979 = vmatpush1.xpose.msra.mxu0 0.0
    %3980 = vmatprep.subr.mxu0 0.0
    %3981 = vmatpush1.xpose.msra.mxu0 0.0
    %3982 = vmatprep.subr.mxu0 0.0
    %3983 = vmatpush1.xpose.msra.mxu0 0.0
    %3984 = vmatprep.subr.mxu0 0.0
    %3985 = vmatpush1.xpose.msra.mxu0 0.0
    %3986 = vmatprep.subr.mxu0 0.0
    %3987 = vmatpush1.xpose.msra.mxu0 0.0
    %3988 = vmatprep.subr.mxu0 0.0
    %3989 = vmatpush1.xpose.msra.mxu0 0.0
    %3990 = vmatprep.subr.mxu0 0.0
    %3991 = vmatpush1.xpose.msra.mxu0 0.0
    %3992 = vmatprep.subr.mxu0 0.0
    %3993 = vmatpush1.xpose.msra.mxu0 0.0
    %3994 = vmatprep.subr.mxu0 0.0
    %3995 = vmatpush1.xpose.msra.mxu0 0.0
    %3996 = vmatprep.subr.mxu0 0.0
    %3997 = vmatpush1.xpose.msra.mxu0 0.0
    %3998 = vmatprep.subr.mxu0 0.0
    %3999 = vmatpush1.xpose.msra.mxu0 0.0
    %4000 = vmatprep.subr.mxu0 0.0
    %4001 = vmatpush1.xpose.msra.mxu0 0.0
    %4002 = vmatprep.subr.mxu0 0.0
    %4003 = vmatpush1.xpose.msra.mxu0 0.0
    %4004 = vmatprep.subr.mxu0 0.0
    %4005 = vmatpush1.xpose.msra.mxu0 0.0
    %4006 = vmatprep.subr.mxu0 0.0
    %4007 = vmatpush1.xpose.msra.mxu0 0.0
    %4008 = vmatprep.subr.mxu0 0.0
    %4009 = vmatpush1.xpose.msra.mxu0 0.0
    %4010 = vmatprep.subr.mxu0 0.0
    %4011 = vmatpush1.xpose.msra.mxu0 0.0
    %4012 = vmatprep.subr.mxu0 0.0
    %4013 = vmatpush1.xpose.msra.mxu0 0.0
    %4014 = vmatprep.subr.mxu0 0.0
    %4015 = vmatpush1.xpose.msra.mxu0 0.0
    %4016 = vmatprep.subr.mxu0 0.0
    %4017 = vmatpush1.xpose.msra.mxu0 0.0
    %4018 = vmatprep.subr.mxu0 0.0
    %4019 = vmatpush1.xpose.msra.mxu0 0.0
    %4020 = vmatprep.subr.mxu0 0.0
    %4021 = vmatpush1.xpose.msra.mxu0 0.0
    %4022 = vmatprep.subr.mxu0 0.0
    %4023 = vmatpush1.xpose.msra.mxu0 0.0
    %4024 = vmatprep.subr.mxu0 0.0
    %4025 = vmatpush1.xpose.msra.mxu0 0.0
    %4026 = vmatprep.mubr.f32.mxu0 0.0
    %4027 = vmatmul.mubr.f32.gmra.mrb[0].mxu0 %v3957
    %v4028 = vpop.f32.mrb[0].mxu0
    %v4029 = vadd.f32 0.0, %v4028
    %v4030 = vpop.f32.mrb[0].mxu0
    %4031 = vdwg.mxu0
    %v4033 = vsel %vm1050, %v3128, 0
    %v4036 = vsel %vm1050, %v3428, 0
    %4038 = vmatprep.subr.mxu0 0.0
    %4039 = vmatpush1.xpose.msra.mxu0 %v4036
    %4040 = vmatprep.subr.mxu0 0.0
    %4041 = vmatpush1.xpose.msra.mxu0 0.0
    %4042 = vmatprep.subr.mxu0 0.0
    %4043 = vmatpush1.xpose.msra.mxu0 0.0
    %4044 = vmatprep.subr.mxu0 0.0
    %4045 = vmatpush1.xpose.msra.mxu0 0.0
    %4046 = vmatprep.subr.mxu0 0.0
    %4047 = vmatpush1.xpose.msra.mxu0 0.0
    %4048 = vmatprep.subr.mxu0 0.0
    %4049 = vmatpush1.xpose.msra.mxu0 0.0
    %4050 = vmatprep.subr.mxu0 0.0
    %4051 = vmatpush1.xpose.msra.mxu0 0.0
    %4052 = vmatprep.subr.mxu0 0.0
    %4053 = vmatpush1.xpose.msra.mxu0 0.0
    %4054 = vmatprep.subr.mxu0 0.0
    %4055 = vmatpush1.xpose.msra.mxu0 0.0
    %4056 = vmatprep.subr.mxu0 0.0
    %4057 = vmatpush1.xpose.msra.mxu0 0.0
    %4058 = vmatprep.subr.mxu0 0.0
    %4059 = vmatpush1.xpose.msra.mxu0 0.0
    %4060 = vmatprep.subr.mxu0 0.0
    %4061 = vmatpush1.xpose.msra.mxu0 0.0
    %4062 = vmatprep.subr.mxu0 0.0
    %4063 = vmatpush1.xpose.msra.mxu0 0.0
    %4064 = vmatprep.subr.mxu0 0.0
    %4065 = vmatpush1.xpose.msra.mxu0 0.0
    %4066 = vmatprep.subr.mxu0 0.0
    %4067 = vmatpush1.xpose.msra.mxu0 0.0
    %4068 = vmatprep.subr.mxu0 0.0
    %4069 = vmatpush1.xpose.msra.mxu0 0.0
    %4070 = vmatprep.subr.mxu0 0.0
    %4071 = vmatpush1.xpose.msra.mxu0 0.0
    %4072 = vmatprep.subr.mxu0 0.0
    %4073 = vmatpush1.xpose.msra.mxu0 0.0
    %4074 = vmatprep.subr.mxu0 0.0
    %4075 = vmatpush1.xpose.msra.mxu0 0.0
    %4076 = vmatprep.subr.mxu0 0.0
    %4077 = vmatpush1.xpose.msra.mxu0 0.0
    %4078 = vmatprep.subr.mxu0 0.0
    %4079 = vmatpush1.xpose.msra.mxu0 0.0
    %4080 = vmatprep.subr.mxu0 0.0
    %4081 = vmatpush1.xpose.msra.mxu0 0.0
    %4082 = vmatprep.subr.mxu0 0.0
    %4083 = vmatpush1.xpose.msra.mxu0 0.0
    %4084 = vmatprep.subr.mxu0 0.0
    %4085 = vmatpush1.xpose.msra.mxu0 0.0
    %4086 = vmatprep.subr.mxu0 0.0
    %4087 = vmatpush1.xpose.msra.mxu0 0.0
    %4088 = vmatprep.subr.mxu0 0.0
    %4089 = vmatpush1.xpose.msra.mxu0 0.0
    %4090 = vmatprep.subr.mxu0 0.0
    %4091 = vmatpush1.xpose.msra.mxu0 0.0
    %4092 = vmatprep.subr.mxu0 0.0
    %4093 = vmatpush1.xpose.msra.mxu0 0.0
    %4094 = vmatprep.subr.mxu0 0.0
    %4095 = vmatpush1.xpose.msra.mxu0 0.0
    %4096 = vmatprep.subr.mxu0 0.0
    %4097 = vmatpush1.xpose.msra.mxu0 0.0
    %4098 = vmatprep.subr.mxu0 0.0
    %4099 = vmatpush1.xpose.msra.mxu0 0.0
    %4100 = vmatprep.subr.mxu0 0.0
    %4101 = vmatpush1.xpose.msra.mxu0 0.0
    %4102 = vmatprep.mubr.f32.mxu0 0.0
    %4103 = vmatmul.mubr.f32.gmra.mrb[0].mxu0 %v4033
    %v4104 = vpop.f32.mrb[0].mxu0
    %v4105 = vadd.f32 0.0, %v4104
    %v4106 = vpop.f32.mrb[0].mxu0
    %4107 = vdwg.mxu0
    %v4109 = vsel %vm1050, %v3198, 0
    %v4112 = vsel %vm1050, %v3498, 0
    %4114 = vmatprep.subr.mxu0 0.0
    %4115 = vmatpush1.xpose.msra.mxu0 %v4112
    %4116 = vmatprep.subr.mxu0 0.0
    %4117 = vmatpush1.xpose.msra.mxu0 0.0
    %4118 = vmatprep.subr.mxu0 0.0
    %4119 = vmatpush1.xpose.msra.mxu0 0.0
    %4120 = vmatprep.subr.mxu0 0.0
    %4121 = vmatpush1.xpose.msra.mxu0 0.0
    %4122 = vmatprep.subr.mxu0 0.0
    %4123 = vmatpush1.xpose.msra.mxu0 0.0
    %4124 = vmatprep.subr.mxu0 0.0
    %4125 = vmatpush1.xpose.msra.mxu0 0.0
    %4126 = vmatprep.subr.mxu0 0.0
    %4127 = vmatpush1.xpose.msra.mxu0 0.0
    %4128 = vmatprep.subr.mxu0 0.0
    %4129 = vmatpush1.xpose.msra.mxu0 0.0
    %4130 = vmatprep.subr.mxu0 0.0
    %4131 = vmatpush1.xpose.msra.mxu0 0.0
    %4132 = vmatprep.subr.mxu0 0.0
    %4133 = vmatpush1.xpose.msra.mxu0 0.0
    %4134 = vmatprep.subr.mxu0 0.0
    %4135 = vmatpush1.xpose.msra.mxu0 0.0
    %4136 = vmatprep.subr.mxu0 0.0
    %4137 = vmatpush1.xpose.msra.mxu0 0.0
    %4138 = vmatprep.subr.mxu0 0.0
    %4139 = vmatpush1.xpose.msra.mxu0 0.0
    %4140 = vmatprep.subr.mxu0 0.0
    %4141 = vmatpush1.xpose.msra.mxu0 0.0
    %4142 = vmatprep.subr.mxu0 0.0
    %4143 = vmatpush1.xpose.msra.mxu0 0.0
    %4144 = vmatprep.subr.mxu0 0.0
    %4145 = vmatpush1.xpose.msra.mxu0 0.0
    %4146 = vmatprep.subr.mxu0 0.0
    %4147 = vmatpush1.xpose.msra.mxu0 0.0
    %4148 = vmatprep.subr.mxu0 0.0
    %4149 = vmatpush1.xpose.msra.mxu0 0.0
    %4150 = vmatprep.subr.mxu0 0.0
    %4151 = vmatpush1.xpose.msra.mxu0 0.0
    %4152 = vmatprep.subr.mxu0 0.0
    %4153 = vmatpush1.xpose.msra.mxu0 0.0
    %4154 = vmatprep.subr.mxu0 0.0
    %4155 = vmatpush1.xpose.msra.mxu0 0.0
    %4156 = vmatprep.subr.mxu0 0.0
    %4157 = vmatpush1.xpose.msra.mxu0 0.0
    %4158 = vmatprep.subr.mxu0 0.0
    %4159 = vmatpush1.xpose.msra.mxu0 0.0
    %4160 = vmatprep.subr.mxu0 0.0
    %4161 = vmatpush1.xpose.msra.mxu0 0.0
    %4162 = vmatprep.subr.mxu0 0.0
    %4163 = vmatpush1.xpose.msra.mxu0 0.0
    %4164 = vmatprep.subr.mxu0 0.0
    %4165 = vmatpush1.xpose.msra.mxu0 0.0
    %4166 = vmatprep.subr.mxu0 0.0
    %4167 = vmatpush1.xpose.msra.mxu0 0.0
    %4168 = vmatprep.subr.mxu0 0.0
    %4169 = vmatpush1.xpose.msra.mxu0 0.0
    %4170 = vmatprep.subr.mxu0 0.0
    %4171 = vmatpush1.xpose.msra.mxu0 0.0
    %4172 = vmatprep.subr.mxu0 0.0
    %4173 = vmatpush1.xpose.msra.mxu0 0.0
    %4174 = vmatprep.subr.mxu0 0.0
    %4175 = vmatpush1.xpose.msra.mxu0 0.0
    %4176 = vmatprep.subr.mxu0 0.0
    %4177 = vmatpush1.xpose.msra.mxu0 0.0
    %4178 = vmatprep.mubr.f32.mxu0 0.0
    %4179 = vmatmul.mubr.f32.gmra.mrb[0].mxu0 %v4109
    %v4180 = vpop.f32.mrb[0].mxu0
    %v4181 = vadd.f32 0.0, %v4180
    %v4182 = vpop.f32.mrb[0].mxu0
    %4183 = vdwg.mxu0
    %v4185 = vsel %vm1050, %v3203, 0
    %v4188 = vsel %vm1050, %v3503, 0
    %4190 = vmatprep.subr.mxu0 0.0
    %4191 = vmatpush1.xpose.msra.mxu0 %v4188
    %4192 = vmatprep.subr.mxu0 0.0
    %4193 = vmatpush1.xpose.msra.mxu0 0.0
    %4194 = vmatprep.subr.mxu0 0.0
    %4195 = vmatpush1.xpose.msra.mxu0 0.0
    %4196 = vmatprep.subr.mxu0 0.0
    %4197 = vmatpush1.xpose.msra.mxu0 0.0
    %4198 = vmatprep.subr.mxu0 0.0
    %4199 = vmatpush1.xpose.msra.mxu0 0.0
    %4200 = vmatprep.subr.mxu0 0.0
    %4201 = vmatpush1.xpose.msra.mxu0 0.0
    %4202 = vmatprep.subr.mxu0 0.0
    %4203 = vmatpush1.xpose.msra.mxu0 0.0
    %4204 = vmatprep.subr.mxu0 0.0
    %4205 = vmatpush1.xpose.msra.mxu0 0.0
    %4206 = vmatprep.subr.mxu0 0.0
    %4207 = vmatpush1.xpose.msra.mxu0 0.0
    %4208 = vmatprep.subr.mxu0 0.0
    %4209 = vmatpush1.xpose.msra.mxu0 0.0
    %4210 = vmatprep.subr.mxu0 0.0
    %4211 = vmatpush1.xpose.msra.mxu0 0.0
    %4212 = vmatprep.subr.mxu0 0.0
    %4213 = vmatpush1.xpose.msra.mxu0 0.0
    %4214 = vmatprep.subr.mxu0 0.0
    %4215 = vmatpush1.xpose.msra.mxu0 0.0
    %4216 = vmatprep.subr.mxu0 0.0
    %4217 = vmatpush1.xpose.msra.mxu0 0.0
    %4218 = vmatprep.subr.mxu0 0.0
    %4219 = vmatpush1.xpose.msra.mxu0 0.0
    %4220 = vmatprep.subr.mxu0 0.0
    %4221 = vmatpush1.xpose.msra.mxu0 0.0
    %4222 = vmatprep.subr.mxu0 0.0
    %4223 = vmatpush1.xpose.msra.mxu0 0.0
    %4224 = vmatprep.subr.mxu0 0.0
    %4225 = vmatpush1.xpose.msra.mxu0 0.0
    %4226 = vmatprep.subr.mxu0 0.0
    %4227 = vmatpush1.xpose.msra.mxu0 0.0
    %4228 = vmatprep.subr.mxu0 0.0
    %4229 = vmatpush1.xpose.msra.mxu0 0.0
    %4230 = vmatprep.subr.mxu0 0.0
    %4231 = vmatpush1.xpose.msra.mxu0 0.0
    %4232 = vmatprep.subr.mxu0 0.0
    %4233 = vmatpush1.xpose.msra.mxu0 0.0
    %4234 = vmatprep.subr.mxu0 0.0
    %4235 = vmatpush1.xpose.msra.mxu0 0.0
    %4236 = vmatprep.subr.mxu0 0.0
    %4237 = vmatpush1.xpose.msra.mxu0 0.0
    %4238 = vmatprep.subr.mxu0 0.0
    %4239 = vmatpush1.xpose.msra.mxu0 0.0
    %4240 = vmatprep.subr.mxu0 0.0
    %4241 = vmatpush1.xpose.msra.mxu0 0.0
    %4242 = vmatprep.subr.mxu0 0.0
    %4243 = vmatpush1.xpose.msra.mxu0 0.0
    %4244 = vmatprep.subr.mxu0 0.0
    %4245 = vmatpush1.xpose.msra.mxu0 0.0
    %4246 = vmatprep.subr.mxu0 0.0
    %4247 = vmatpush1.xpose.msra.mxu0 0.0
    %4248 = vmatprep.subr.mxu0 0.0
    %4249 = vmatpush1.xpose.msra.mxu0 0.0
    %4250 = vmatprep.subr.mxu0 0.0
    %4251 = vmatpush1.xpose.msra.mxu0 0.0
    %4252 = vmatprep.subr.mxu0 0.0
    %4253 = vmatpush1.xpose.msra.mxu0 0.0
    %4254 = vmatprep.mubr.f32.mxu0 0.0
    %4255 = vmatmul.mubr.f32.gmra.mrb[0].mxu0 %v4185
    %v4256 = vpop.f32.mrb[0].mxu0
    %v4257 = vadd.f32 0.0, %v4256
    %v4258 = vpop.f32.mrb[0].mxu0
    %4259 = vdwg.mxu0
    %v4261 = vsel %vm1050, %v3273, 0
    %v4264 = vsel %vm1050, %v3573, 0
    %4266 = vmatprep.subr.mxu0 0.0
    %4267 = vmatpush1.xpose.msra.mxu0 %v4264
    %4268 = vmatprep.subr.mxu0 0.0
    %4269 = vmatpush1.xpose.msra.mxu0 0.0
    %4270 = vmatprep.subr.mxu0 0.0
    %4271 = vmatpush1.xpose.msra.mxu0 0.0
    %4272 = vmatprep.subr.mxu0 0.0
    %4273 = vmatpush1.xpose.msra.mxu0 0.0
    %4274 = vmatprep.subr.mxu0 0.0
    %4275 = vmatpush1.xpose.msra.mxu0 0.0
    %4276 = vmatprep.subr.mxu0 0.0
    %4277 = vmatpush1.xpose.msra.mxu0 0.0
    %4278 = vmatprep.subr.mxu0 0.0
    %4279 = vmatpush1.xpose.msra.mxu0 0.0
    %4280 = vmatprep.subr.mxu0 0.0
    %4281 = vmatpush1.xpose.msra.mxu0 0.0
    %4282 = vmatprep.subr.mxu0 0.0
    %4283 = vmatpush1.xpose.msra.mxu0 0.0
    %4284 = vmatprep.subr.mxu0 0.0
    %4285 = vmatpush1.xpose.msra.mxu0 0.0
    %4286 = vmatprep.subr.mxu0 0.0
    %4287 = vmatpush1.xpose.msra.mxu0 0.0
    %4288 = vmatprep.subr.mxu0 0.0
    %4289 = vmatpush1.xpose.msra.mxu0 0.0
    %4290 = vmatprep.subr.mxu0 0.0
    %4291 = vmatpush1.xpose.msra.mxu0 0.0
    %4292 = vmatprep.subr.mxu0 0.0
    %4293 = vmatpush1.xpose.msra.mxu0 0.0
    %4294 = vmatprep.subr.mxu0 0.0
    %4295 = vmatpush1.xpose.msra.mxu0 0.0
    %4296 = vmatprep.subr.mxu0 0.0
    %4297 = vmatpush1.xpose.msra.mxu0 0.0
    %4298 = vmatprep.subr.mxu0 0.0
    %4299 = vmatpush1.xpose.msra.mxu0 0.0
    %4300 = vmatprep.subr.mxu0 0.0
    %4301 = vmatpush1.xpose.msra.mxu0 0.0
    %4302 = vmatprep.subr.mxu0 0.0
    %4303 = vmatpush1.xpose.msra.mxu0 0.0
    %4304 = vmatprep.subr.mxu0 0.0
    %4305 = vmatpush1.xpose.msra.mxu0 0.0
    %4306 = vmatprep.subr.mxu0 0.0
    %4307 = vmatpush1.xpose.msra.mxu0 0.0
    %4308 = vmatprep.subr.mxu0 0.0
    %4309 = vmatpush1.xpose.msra.mxu0 0.0
    %4310 = vmatprep.subr.mxu0 0.0
    %4311 = vmatpush1.xpose.msra.mxu0 0.0
    %4312 = vmatprep.subr.mxu0 0.0
    %4313 = vmatpush1.xpose.msra.mxu0 0.0
    %4314 = vmatprep.subr.mxu0 0.0
    %4315 = vmatpush1.xpose.msra.mxu0 0.0
    %4316 = vmatprep.subr.mxu0 0.0
    %4317 = vmatpush1.xpose.msra.mxu0 0.0
    %4318 = vmatprep.subr.mxu0 0.0
    %4319 = vmatpush1.xpose.msra.mxu0 0.0
    %4320 = vmatprep.subr.mxu0 0.0
    %4321 = vmatpush1.xpose.msra.mxu0 0.0
    %4322 = vmatprep.subr.mxu0 0.0
    %4323 = vmatpush1.xpose.msra.mxu0 0.0
    %4324 = vmatprep.subr.mxu0 0.0
    %4325 = vmatpush1.xpose.msra.mxu0 0.0
    %4326 = vmatprep.subr.mxu0 0.0
    %4327 = vmatpush1.xpose.msra.mxu0 0.0
    %4328 = vmatprep.subr.mxu0 0.0
    %4329 = vmatpush1.xpose.msra.mxu0 0.0
    %4330 = vmatprep.mubr.f32.mxu0 0.0
    %4331 = vmatmul.mubr.f32.gmra.mrb[0].mxu0 %v4261
    %v4332 = vpop.f32.mrb[0].mxu0
    %v4333 = vadd.f32 0.0, %v4332
    %v4334 = vpop.f32.mrb[0].mxu0
    %4335 = vdwg.mxu0
    %v4337 = vsel %vm1050, %v3278, 0
    %v4340 = vsel %vm1050, %v3578, 0
    %4342 = vmatprep.subr.mxu0 0.0
    %4343 = vmatpush1.xpose.msra.mxu0 %v4340
    %4344 = vmatprep.subr.mxu0 0.0
    %4345 = vmatpush1.xpose.msra.mxu0 0.0
    %4346 = vmatprep.subr.mxu0 0.0
    %4347 = vmatpush1.xpose.msra.mxu0 0.0
    %4348 = vmatprep.subr.mxu0 0.0
    %4349 = vmatpush1.xpose.msra.mxu0 0.0
    %4350 = vmatprep.subr.mxu0 0.0
    %4351 = vmatpush1.xpose.msra.mxu0 0.0
    %4352 = vmatprep.subr.mxu0 0.0
    %4353 = vmatpush1.xpose.msra.mxu0 0.0
    %4354 = vmatprep.subr.mxu0 0.0
    %4355 = vmatpush1.xpose.msra.mxu0 0.0
    %4356 = vmatprep.subr.mxu0 0.0
    %4357 = vmatpush1.xpose.msra.mxu0 0.0
    %4358 = vmatprep.subr.mxu0 0.0
    %4359 = vmatpush1.xpose.msra.mxu0 0.0
    %4360 = vmatprep.subr.mxu0 0.0
    %4361 = vmatpush1.xpose.msra.mxu0 0.0
    %4362 = vmatprep.subr.mxu0 0.0
    %4363 = vmatpush1.xpose.msra.mxu0 0.0
    %4364 = vmatprep.subr.mxu0 0.0
    %4365 = vmatpush1.xpose.msra.mxu0 0.0
    %4366 = vmatprep.subr.mxu0 0.0
    %4367 = vmatpush1.xpose.msra.mxu0 0.0
    %4368 = vmatprep.subr.mxu0 0.0
    %4369 = vmatpush1.xpose.msra.mxu0 0.0
    %4370 = vmatprep.subr.mxu0 0.0
    %4371 = vmatpush1.xpose.msra.mxu0 0.0
    %4372 = vmatprep.subr.mxu0 0.0
    %4373 = vmatpush1.xpose.msra.mxu0 0.0
    %4374 = vmatprep.subr.mxu0 0.0
    %4375 = vmatpush1.xpose.msra.mxu0 0.0
    %4376 = vmatprep.subr.mxu0 0.0
    %4377 = vmatpush1.xpose.msra.mxu0 0.0
    %4378 = vmatprep.subr.mxu0 0.0
    %4379 = vmatpush1.xpose.msra.mxu0 0.0
    %4380 = vmatprep.subr.mxu0 0.0
    %4381 = vmatpush1.xpose.msra.mxu0 0.0
    %4382 = vmatprep.subr.mxu0 0.0
    %4383 = vmatpush1.xpose.msra.mxu0 0.0
    %4384 = vmatprep.subr.mxu0 0.0
    %4385 = vmatpush1.xpose.msra.mxu0 0.0
    %4386 = vmatprep.subr.mxu0 0.0
    %4387 = vmatpush1.xpose.msra.mxu0 0.0
    %4388 = vmatprep.subr.mxu0 0.0
    %4389 = vmatpush1.xpose.msra.mxu0 0.0
    %4390 = vmatprep.subr.mxu0 0.0
    %4391 = vmatpush1.xpose.msra.mxu0 0.0
    %4392 = vmatprep.subr.mxu0 0.0
    %4393 = vmatpush1.xpose.msra.mxu0 0.0
    %4394 = vmatprep.subr.mxu0 0.0
    %4395 = vmatpush1.xpose.msra.mxu0 0.0
    %4396 = vmatprep.subr.mxu0 0.0
    %4397 = vmatpush1.xpose.msra.mxu0 0.0
    %4398 = vmatprep.subr.mxu0 0.0
    %4399 = vmatpush1.xpose.msra.mxu0 0.0
    %4400 = vmatprep.subr.mxu0 0.0
    %4401 = vmatpush1.xpose.msra.mxu0 0.0
    %4402 = vmatprep.subr.mxu0 0.0
    %4403 = vmatpush1.xpose.msra.mxu0 0.0
    %4404 = vmatprep.subr.mxu0 0.0
    %4405 = vmatpush1.xpose.msra.mxu0 0.0
    %4406 = vmatprep.mubr.f32.mxu0 0.0
    %4407 = vmatmul.mubr.f32.gmra.mrb[0].mxu0 %v4337
    %v4408 = vpop.f32.mrb[0].mxu0
    %v4409 = vadd.f32 0.0, %v4408
    %v4410 = vpop.f32.mrb[0].mxu0
    %4411 = vdwg.mxu0
    %v4413 = vsel %vm1050, %v3348, 0
    %v4416 = vsel %vm1050, %v3648, 0
    %4418 = vmatprep.subr.mxu0 0.0
    %4419 = vmatpush1.xpose.msra.mxu0 %v4416
    %4420 = vmatprep.subr.mxu0 0.0
    %4421 = vmatpush1.xpose.msra.mxu0 0.0
    %4422 = vmatprep.subr.mxu0 0.0
    %4423 = vmatpush1.xpose.msra.mxu0 0.0
    %4424 = vmatprep.subr.mxu0 0.0
    %4425 = vmatpush1.xpose.msra.mxu0 0.0
    %4426 = vmatprep.subr.mxu0 0.0
    %4427 = vmatpush1.xpose.msra.mxu0 0.0
    %4428 = vmatprep.subr.mxu0 0.0
    %4429 = vmatpush1.xpose.msra.mxu0 0.0
    %4430 = vmatprep.subr.mxu0 0.0
    %4431 = vmatpush1.xpose.msra.mxu0 0.0
    %4432 = vmatprep.subr.mxu0 0.0
    %4433 = vmatpush1.xpose.msra.mxu0 0.0
    %4434 = vmatprep.subr.mxu0 0.0
    %4435 = vmatpush1.xpose.msra.mxu0 0.0
    %4436 = vmatprep.subr.mxu0 0.0
    %4437 = vmatpush1.xpose.msra.mxu0 0.0
    %4438 = vmatprep.subr.mxu0 0.0
    %4439 = vmatpush1.xpose.msra.mxu0 0.0
    %4440 = vmatprep.subr.mxu0 0.0
    %4441 = vmatpush1.xpose.msra.mxu0 0.0
    %4442 = vmatprep.subr.mxu0 0.0
    %4443 = vmatpush1.xpose.msra.mxu0 0.0
    %4444 = vmatprep.subr.mxu0 0.0
    %4445 = vmatpush1.xpose.msra.mxu0 0.0
    %4446 = vmatprep.subr.mxu0 0.0
    %4447 = vmatpush1.xpose.msra.mxu0 0.0
    %4448 = vmatprep.subr.mxu0 0.0
    %4449 = vmatpush1.xpose.msra.mxu0 0.0
    %4450 = vmatprep.subr.mxu0 0.0
    %4451 = vmatpush1.xpose.msra.mxu0 0.0
    %4452 = vmatprep.subr.mxu0 0.0
    %4453 = vmatpush1.xpose.msra.mxu0 0.0
    %4454 = vmatprep.subr.mxu0 0.0
    %4455 = vmatpush1.xpose.msra.mxu0 0.0
    %4456 = vmatprep.subr.mxu0 0.0
    %4457 = vmatpush1.xpose.msra.mxu0 0.0
    %4458 = vmatprep.subr.mxu0 0.0
    %4459 = vmatpush1.xpose.msra.mxu0 0.0
    %4460 = vmatprep.subr.mxu0 0.0
    %4461 = vmatpush1.xpose.msra.mxu0 0.0
    %4462 = vmatprep.subr.mxu0 0.0
    %4463 = vmatpush1.xpose.msra.mxu0 0.0
    %4464 = vmatprep.subr.mxu0 0.0
    %4465 = vmatpush1.xpose.msra.mxu0 0.0
    %4466 = vmatprep.subr.mxu0 0.0
    %4467 = vmatpush1.xpose.msra.mxu0 0.0
    %4468 = vmatprep.subr.mxu0 0.0
    %4469 = vmatpush1.xpose.msra.mxu0 0.0
    %4470 = vmatprep.subr.mxu0 0.0
    %4471 = vmatpush1.xpose.msra.mxu0 0.0
    %4472 = vmatprep.subr.mxu0 0.0
    %4473 = vmatpush1.xpose.msra.mxu0 0.0
    %4474 = vmatprep.subr.mxu0 0.0
    %4475 = vmatpush1.xpose.msra.mxu0 0.0
    %4476 = vmatprep.subr.mxu0 0.0
    %4477 = vmatpush1.xpose.msra.mxu0 0.0
    %4478 = vmatprep.subr.mxu0 0.0
    %4479 = vmatpush1.xpose.msra.mxu0 0.0
    %4480 = vmatprep.subr.mxu0 0.0
    %4481 = vmatpush1.xpose.msra.mxu0 0.0
    %4482 = vmatprep.mubr.f32.mxu0 0.0
    %4483 = vmatmul.mubr.f32.gmra.mrb[0].mxu0 %v4413
    %v4484 = vpop.f32.mrb[0].mxu0
    %v4485 = vadd.f32 0.0, %v4484
    %v4486 = vpop.f32.mrb[0].mxu0
    %4487 = vdwg.mxu0
    %v4489 = vsel %vm1050, %v3353, 0
    %v4492 = vsel %vm1050, %v3653, 0
    %4494 = vmatprep.subr.mxu0 0.0
    %4495 = vmatpush1.xpose.msra.mxu0 %v4492
    %4496 = vmatprep.subr.mxu0 0.0
    %4497 = vmatpush1.xpose.msra.mxu0 0.0
    %4498 = vmatprep.subr.mxu0 0.0
    %4499 = vmatpush1.xpose.msra.mxu0 0.0
    %4500 = vmatprep.subr.mxu0 0.0
    %4501 = vmatpush1.xpose.msra.mxu0 0.0
    %4502 = vmatprep.subr.mxu0 0.0
    %4503 = vmatpush1.xpose.msra.mxu0 0.0
    %4504 = vmatprep.subr.mxu0 0.0
    %4505 = vmatpush1.xpose.msra.mxu0 0.0
    %4506 = vmatprep.subr.mxu0 0.0
    %4507 = vmatpush1.xpose.msra.mxu0 0.0
    %4508 = vmatprep.subr.mxu0 0.0
    %4509 = vmatpush1.xpose.msra.mxu0 0.0
    %4510 = vmatprep.subr.mxu0 0.0
    %4511 = vmatpush1.xpose.msra.mxu0 0.0
    %4512 = vmatprep.subr.mxu0 0.0
    %4513 = vmatpush1.xpose.msra.mxu0 0.0
    %4514 = vmatprep.subr.mxu0 0.0
    %4515 = vmatpush1.xpose.msra.mxu0 0.0
    %4516 = vmatprep.subr.mxu0 0.0
    %4517 = vmatpush1.xpose.msra.mxu0 0.0
    %4518 = vmatprep.subr.mxu0 0.0
    %4519 = vmatpush1.xpose.msra.mxu0 0.0
    %4520 = vmatprep.subr.mxu0 0.0
    %4521 = vmatpush1.xpose.msra.mxu0 0.0
    %4522 = vmatprep.subr.mxu0 0.0
    %4523 = vmatpush1.xpose.msra.mxu0 0.0
    %4524 = vmatprep.subr.mxu0 0.0
    %4525 = vmatpush1.xpose.msra.mxu0 0.0
    %4526 = vmatprep.subr.mxu0 0.0
    %4527 = vmatpush1.xpose.msra.mxu0 0.0
    %4528 = vmatprep.subr.mxu0 0.0
    %4529 = vmatpush1.xpose.msra.mxu0 0.0
    %4530 = vmatprep.subr.mxu0 0.0
    %4531 = vmatpush1.xpose.msra.mxu0 0.0
    %4532 = vmatprep.subr.mxu0 0.0
    %4533 = vmatpush1.xpose.msra.mxu0 0.0
    %4534 = vmatprep.subr.mxu0 0.0
    %4535 = vmatpush1.xpose.msra.mxu0 0.0
    %4536 = vmatprep.subr.mxu0 0.0
    %4537 = vmatpush1.xpose.msra.mxu0 0.0
    %4538 = vmatprep.subr.mxu0 0.0
    %4539 = vmatpush1.xpose.msra.mxu0 0.0
    %4540 = vmatprep.subr.mxu0 0.0
    %4541 = vmatpush1.xpose.msra.mxu0 0.0
    %4542 = vmatprep.subr.mxu0 0.0
    %4543 = vmatpush1.xpose.msra.mxu0 0.0
    %4544 = vmatprep.subr.mxu0 0.0
    %4545 = vmatpush1.xpose.msra.mxu0 0.0
    %4546 = vmatprep.subr.mxu0 0.0
    %4547 = vmatpush1.xpose.msra.mxu0 0.0
    %4548 = vmatprep.subr.mxu0 0.0
    %4549 = vmatpush1.xpose.msra.mxu0 0.0
    %4550 = vmatprep.subr.mxu0 0.0
    %4551 = vmatpush1.xpose.msra.mxu0 0.0
    %4552 = vmatprep.subr.mxu0 0.0
    %4553 = vmatpush1.xpose.msra.mxu0 0.0
    %4554 = vmatprep.subr.mxu0 0.0
    %4555 = vmatpush1.xpose.msra.mxu0 0.0
    %4556 = vmatprep.subr.mxu0 0.0
    %4557 = vmatpush1.xpose.msra.mxu0 0.0
    %4558 = vmatprep.mubr.f32.mxu0 0.0
    %4559 = vmatmul.mubr.f32.gmra.mrb[0].mxu0 %v4489
    %v4560 = vpop.f32.mrb[0].mxu0
    %v4561 = vadd.f32 0.0, %v4560
    %v4562 = vpop.f32.mrb[0].mxu0
    %4563 = vdwg.mxu0
    %v4564 = vsel %vm1050, %v4029, -inf
    %4565 = vmax.xlane.f32.xlu0 %v4564
    %v4566 = vpop.xlane.xlu0 %4565
    %v4567 = vsel %vm1050, %v4105, -inf
    %4568 = vmax.xlane.f32.xlu0 %v4567
    %v4569 = vpop.xlane.xlu0 %4568
    %v4570 = vsel %vm1050, %v4181, -inf
    %4571 = vmax.xlane.f32.xlu0 %v4570
    %v4572 = vpop.xlane.xlu0 %4571
    %v4573 = vsel %vm1050, %v4257, -inf
    %4574 = vmax.xlane.f32.xlu0 %v4573
    %v4575 = vpop.xlane.xlu0 %4574
    %v4576 = vsel %vm1050, %v4333, -inf
    %4577 = vmax.xlane.f32.xlu0 %v4576
    %v4578 = vpop.xlane.xlu0 %4577
    %v4579 = vsel %vm1050, %v4409, -inf
    %4580 = vmax.xlane.f32.xlu0 %v4579
    %v4581 = vpop.xlane.xlu0 %4580
    %v4582 = vsel %vm1050, %v4485, -inf
    %4583 = vmax.xlane.f32.xlu0 %v4582
    %v4584 = vpop.xlane.xlu0 %4583
    %v4585 = vsel %vm1050, %v4561, -inf
    %4586 = vmax.xlane.f32.xlu0 %v4585
    %v4587 = vpop.xlane.xlu0 %4586
    %v4588 = vsub.f32 %v4029, %v4566
    %v4589 = vsub.f32 %v4105, %v4569
    %v4590 = vsub.f32 %v4181, %v4572
    %v4591 = vsub.f32 %v4257, %v4575
    %v4592 = vsub.f32 %v4333, %v4578
    %v4593 = vsub.f32 %v4409, %v4581
    %v4594 = vsub.f32 %v4485, %v4584
    %v4595 = vsub.f32 %v4561, %v4587
    %v4596 = vmul.f32 %v4588, 1.442695
    %v4597 = vpow.pop %v4596
    %v4598 = vmul.f32 %v4589, 1.442695
    %v4599 = vpow.pop %v4598
    %v4600 = vmul.f32 %v4590, 1.442695
    %v4601 = vpow.pop %v4600
    %v4602 = vmul.f32 %v4591, 1.442695
    %v4603 = vpow.pop %v4602
    %v4604 = vmul.f32 %v4592, 1.442695
    %v4605 = vpow.pop %v4604
    %v4606 = vmul.f32 %v4593, 1.442695
    %v4607 = vpow.pop %v4606
    %v4608 = vmul.f32 %v4594, 1.442695
    %v4609 = vpow.pop %v4608
    %v4610 = vmul.f32 %v4595, 1.442695
    %v4611 = vpow.pop %v4610
    %v4612 = vsel %vm1050, %v4597, 0.0
    %4613 = vadd.xlane.f32.xlu0 %v4612
    %v4614 = vpop.xlane.xlu0 %4613
    %v4615 = vsel %vm1050, %v4599, 0.0
    %4616 = vadd.xlane.f32.xlu0 %v4615
    %v4617 = vpop.xlane.xlu0 %4616
    %v4618 = vsel %vm1050, %v4601, 0.0
    %4619 = vadd.xlane.f32.xlu0 %v4618
    %v4620 = vpop.xlane.xlu0 %4619
    %v4621 = vsel %vm1050, %v4603, 0.0
    %4622 = vadd.xlane.f32.xlu0 %v4621
    %v4623 = vpop.xlane.xlu0 %4622
    %v4624 = vsel %vm1050, %v4605, 0.0
    %4625 = vadd.xlane.f32.xlu0 %v4624
    %v4626 = vpop.xlane.xlu0 %4625
    %v4627 = vsel %vm1050, %v4607, 0.0
    %4628 = vadd.xlane.f32.xlu0 %v4627
    %v4629 = vpop.xlane.xlu0 %4628
    %v4630 = vsel %vm1050, %v4609, 0.0
    %4631 = vadd.xlane.f32.xlu0 %v4630
    %v4632 = vpop.xlane.xlu0 %4631
    %v4633 = vsel %vm1050, %v4611, 0.0
    %4634 = vadd.xlane.f32.xlu0 %v4633
    %v4635 = vpop.xlane.xlu0 %4634
    %v4636 = vrcp.pop %v4614
    %v4637 = vrcp.pop %v4617
    %v4638 = vrcp.pop %v4620
    %v4639 = vrcp.pop %v4623
    %v4640 = vrcp.pop %v4626
    %v4641 = vrcp.pop %v4629
    %v4642 = vrcp.pop %v4632
    %v4643 = vrcp.pop %v4635
    %v4644 = vmul.f32 %v4614, %v4636
    %v4645 = vmul.f32 %v4617, %v4637
    %v4646 = vmul.f32 %v4620, %v4638
    %v4647 = vmul.f32 %v4623, %v4639
    %v4648 = vmul.f32 %v4626, %v4640
    %v4649 = vmul.f32 %v4629, %v4641
    %v4650 = vmul.f32 %v4632, %v4642
    %v4651 = vmul.f32 %v4635, %v4643
    %v4652 = vsub.f32 2.0, %v4644
    %v4653 = vsub.f32 2.0, %v4645
    %v4654 = vsub.f32 2.0, %v4646
    %v4655 = vsub.f32 2.0, %v4647
    %v4656 = vsub.f32 2.0, %v4648
    %v4657 = vsub.f32 2.0, %v4649
    %v4658 = vsub.f32 2.0, %v4650
    %v4659 = vsub.f32 2.0, %v4651
    %v4660 = vmul.f32 %v4636, %v4652
    %v4661 = vmul.f32 %v4637, %v4653
    %v4662 = vmul.f32 %v4638, %v4654
    %v4663 = vmul.f32 %v4639, %v4655
    %v4664 = vmul.f32 %v4640, %v4656
    %v4665 = vmul.f32 %v4641, %v4657
    %v4666 = vmul.f32 %v4642, %v4658
    %v4667 = vmul.f32 %v4643, %v4659
    %v4668 = vmul.f32 %v4597, %v4660
    %v4669 = vmul.f32 %v4599, %v4661
    %v4670 = vmul.f32 %v4601, %v4662
    %v4671 = vmul.f32 %v4603, %v4663
    %v4672 = vmul.f32 %v4605, %v4664
    %v4673 = vmul.f32 %v4607, %v4665
    %v4674 = vmul.f32 %v4609, %v4666
    %v4675 = vmul.f32 %v4611, %v4667
    %v4677 = vsel %vm1050, %v4668, 0
    %4679 = vmatprep.subr.mxu0 0.0
    %4680 = vmatpush1.msra.mxu0 %v3723
    %4681 = vmatprep.subr.mxu0 0.0
    %4682 = vmatpush1.msra.mxu0 0.0
    %4683 = vmatprep.subr.mxu0 0.0
    %4684 = vmatpush1.msra.mxu0 0.0
    %4685 = vmatprep.subr.mxu0 0.0
    %4686 = vmatpush1.msra.mxu0 0.0
    %4687 = vmatprep.subr.mxu0 0.0
    %4688 = vmatpush1.msra.mxu0 0.0
    %4689 = vmatprep.subr.mxu0 0.0
    %4690 = vmatpush1.msra.mxu0 0.0
    %4691 = vmatprep.subr.mxu0 0.0
    %4692 = vmatpush1.msra.mxu0 0.0
    %4693 = vmatprep.subr.mxu0 0.0
    %4694 = vmatpush1.msra.mxu0 0.0
    %4695 = vmatprep.subr.mxu0 0.0
    %4696 = vmatpush1.msra.mxu0 0.0
    %4697 = vmatprep.subr.mxu0 0.0
    %4698 = vmatpush1.msra.mxu0 0.0
    %4699 = vmatprep.subr.mxu0 0.0
    %4700 = vmatpush1.msra.mxu0 0.0
    %4701 = vmatprep.subr.mxu0 0.0
    %4702 = vmatpush1.msra.mxu0 0.0
    %4703 = vmatprep.subr.mxu0 0.0
    %4704 = vmatpush1.msra.mxu0 0.0
    %4705 = vmatprep.subr.mxu0 0.0
    %4706 = vmatpush1.msra.mxu0 0.0
    %4707 = vmatprep.subr.mxu0 0.0
    %4708 = vmatpush1.msra.mxu0 0.0
    %4709 = vmatprep.subr.mxu0 0.0
    %4710 = vmatpush1.msra.mxu0 0.0
    %4711 = vmatprep.subr.mxu0 0.0
    %4712 = vmatpush1.msra.mxu0 0.0
    %4713 = vmatprep.subr.mxu0 0.0
    %4714 = vmatpush1.msra.mxu0 0.0
    %4715 = vmatprep.subr.mxu0 0.0
    %4716 = vmatpush1.msra.mxu0 0.0
    %4717 = vmatprep.subr.mxu0 0.0
    %4718 = vmatpush1.msra.mxu0 0.0
    %4719 = vmatprep.subr.mxu0 0.0
    %4720 = vmatpush1.msra.mxu0 0.0
    %4721 = vmatprep.subr.mxu0 0.0
    %4722 = vmatpush1.msra.mxu0 0.0
    %4723 = vmatprep.subr.mxu0 0.0
    %4724 = vmatpush1.msra.mxu0 0.0
    %4725 = vmatprep.subr.mxu0 0.0
    %4726 = vmatpush1.msra.mxu0 0.0
    %4727 = vmatprep.subr.mxu0 0.0
    %4728 = vmatpush1.msra.mxu0 0.0
    %4729 = vmatprep.subr.mxu0 0.0
    %4730 = vmatpush1.msra.mxu0 0.0
    %4731 = vmatprep.subr.mxu0 0.0
    %4732 = vmatpush1.msra.mxu0 0.0
    %4733 = vmatprep.subr.mxu0 0.0
    %4734 = vmatpush1.msra.mxu0 0.0
    %4735 = vmatprep.subr.mxu0 0.0
    %4736 = vmatpush1.msra.mxu0 0.0
    %4737 = vmatprep.subr.mxu0 0.0
    %4738 = vmatpush1.msra.mxu0 0.0
    %4739 = vmatprep.subr.mxu0 0.0
    %4740 = vmatpush1.msra.mxu0 0.0
    %4741 = vmatprep.subr.mxu0 0.0
    %4742 = vmatpush1.msra.mxu0 0.0
    %4743 = vmatprep.mubr.f32.mxu0 0.0
    %4744 = vmatmul.mubr.f32.gmra.mrb[0].mxu0 %v4677
    %v4745 = vpop.f32.mrb[0].mxu0
    %v4746 = vadd.f32 0.0, %v4745
    %v4747 = vpop.f32.mrb[0].mxu0
    %4748 = vdwg.mxu0
    %v4750 = vsel %vm1050, %v4669, 0
    %4752 = vmatprep.subr.mxu0 0.0
    %4753 = vmatpush1.msra.mxu0 %v3728
    %4754 = vmatprep.subr.mxu0 0.0
    %4755 = vmatpush1.msra.mxu0 0.0
    %4756 = vmatprep.subr.mxu0 0.0
    %4757 = vmatpush1.msra.mxu0 0.0
    %4758 = vmatprep.subr.mxu0 0.0
    %4759 = vmatpush1.msra.mxu0 0.0
    %4760 = vmatprep.subr.mxu0 0.0
    %4761 = vmatpush1.msra.mxu0 0.0
    %4762 = vmatprep.subr.mxu0 0.0
    %4763 = vmatpush1.msra.mxu0 0.0
    %4764 = vmatprep.subr.mxu0 0.0
    %4765 = vmatpush1.msra.mxu0 0.0
    %4766 = vmatprep.subr.mxu0 0.0
    %4767 = vmatpush1.msra.mxu0 0.0
    %4768 = vmatprep.subr.mxu0 0.0
    %4769 = vmatpush1.msra.mxu0 0.0
    %4770 = vmatprep.subr.mxu0 0.0
    %4771 = vmatpush1.msra.mxu0 0.0
    %4772 = vmatprep.subr.mxu0 0.0
    %4773 = vmatpush1.msra.mxu0 0.0
    %4774 = vmatprep.subr.mxu0 0.0
    %4775 = vmatpush1.msra.mxu0 0.0
    %4776 = vmatprep.subr.mxu0 0.0
    %4777 = vmatpush1.msra.mxu0 0.0
    %4778 = vmatprep.subr.mxu0 0.0
    %4779 = vmatpush1.msra.mxu0 0.0
    %4780 = vmatprep.subr.mxu0 0.0
    %4781 = vmatpush1.msra.mxu0 0.0
    %4782 = vmatprep.subr.mxu0 0.0
    %4783 = vmatpush1.msra.mxu0 0.0
    %4784 = vmatprep.subr.mxu0 0.0
    %4785 = vmatpush1.msra.mxu0 0.0
    %4786 = vmatprep.subr.mxu0 0.0
    %4787 = vmatpush1.msra.mxu0 0.0
    %4788 = vmatprep.subr.mxu0 0.0
    %4789 = vmatpush1.msra.mxu0 0.0
    %4790 = vmatprep.subr.mxu0 0.0
    %4791 = vmatpush1.msra.mxu0 0.0
    %4792 = vmatprep.subr.mxu0 0.0
    %4793 = vmatpush1.msra.mxu0 0.0
    %4794 = vmatprep.subr.mxu0 0.0
    %4795 = vmatpush1.msra.mxu0 0.0
    %4796 = vmatprep.subr.mxu0 0.0
    %4797 = vmatpush1.msra.mxu0 0.0
    %4798 = vmatprep.subr.mxu0 0.0
    %4799 = vmatpush1.msra.mxu0 0.0
    %4800 = vmatprep.subr.mxu0 0.0
    %4801 = vmatpush1.msra.mxu0 0.0
    %4802 = vmatprep.subr.mxu0 0.0
    %4803 = vmatpush1.msra.mxu0 0.0
    %4804 = vmatprep.subr.mxu0 0.0
    %4805 = vmatpush1.msra.mxu0 0.0
    %4806 = vmatprep.subr.mxu0 0.0
    %4807 = vmatpush1.msra.mxu0 0.0
    %4808 = vmatprep.subr.mxu0 0.0
    %4809 = vmatpush1.msra.mxu0 0.0
    %4810 = vmatprep.subr.mxu0 0.0
    %4811 = vmatpush1.msra.mxu0 0.0
    %4812 = vmatprep.subr.mxu0 0.0
    %4813 = vmatpush1.msra.mxu0 0.0
    %4814 = vmatprep.subr.mxu0 0.0
    %4815 = vmatpush1.msra.mxu0 0.0
    %4816 = vmatprep.mubr.f32.mxu0 0.0
    %4817 = vmatmul.mubr.f32.gmra.mrb[0].mxu0 %v4750
    %v4818 = vpop.f32.mrb[0].mxu0
    %v4819 = vadd.f32 0.0, %v4818
    %v4820 = vpop.f32.mrb[0].mxu0
    %4821 = vdwg.mxu0
    %v4823 = vsel %vm1050, %v4670, 0
    %4825 = vmatprep.subr.mxu0 0.0
    %4826 = vmatpush1.msra.mxu0 %v3798
    %4827 = vmatprep.subr.mxu0 0.0
    %4828 = vmatpush1.msra.mxu0 0.0
    %4829 = vmatprep.subr.mxu0 0.0
    %4830 = vmatpush1.msra.mxu0 0.0
    %4831 = vmatprep.subr.mxu0 0.0
    %4832 = vmatpush1.msra.mxu0 0.0
    %4833 = vmatprep.subr.mxu0 0.0
    %4834 = vmatpush1.msra.mxu0 0.0
    %4835 = vmatprep.subr.mxu0 0.0
    %4836 = vmatpush1.msra.mxu0 0.0
    %4837 = vmatprep.subr.mxu0 0.0
    %4838 = vmatpush1.msra.mxu0 0.0
    %4839 = vmatprep.subr.mxu0 0.0
    %4840 = vmatpush1.msra.mxu0 0.0
    %4841 = vmatprep.subr.mxu0 0.0
    %4842 = vmatpush1.msra.mxu0 0.0
    %4843 = vmatprep.subr.mxu0 0.0
    %4844 = vmatpush1.msra.mxu0 0.0
    %4845 = vmatprep.subr.mxu0 0.0
    %4846 = vmatpush1.msra.mxu0 0.0
    %4847 = vmatprep.subr.mxu0 0.0
    %4848 = vmatpush1.msra.mxu0 0.0
    %4849 = vmatprep.subr.mxu0 0.0
    %4850 = vmatpush1.msra.mxu0 0.0
    %4851 = vmatprep.subr.mxu0 0.0
    %4852 = vmatpush1.msra.mxu0 0.0
    %4853 = vmatprep.subr.mxu0 0.0
    %4854 = vmatpush1.msra.mxu0 0.0
    %4855 = vmatprep.subr.mxu0 0.0
    %4856 = vmatpush1.msra.mxu0 0.0
    %4857 = vmatprep.subr.mxu0 0.0
    %4858 = vmatpush1.msra.mxu0 0.0
    %4859 = vmatprep.subr.mxu0 0.0
    %4860 = vmatpush1.msra.mxu0 0.0
    %4861 = vmatprep.subr.mxu0 0.0
    %4862 = vmatpush1.msra.mxu0 0.0
    %4863 = vmatprep.subr.mxu0 0.0
    %4864 = vmatpush1.msra.mxu0 0.0
    %4865 = vmatprep.subr.mxu0 0.0
    %4866 = vmatpush1.msra.mxu0 0.0
    %4867 = vmatprep.subr.mxu0 0.0
    %4868 = vmatpush1.msra.mxu0 0.0
    %4869 = vmatprep.subr.mxu0 0.0
    %4870 = vmatpush1.msra.mxu0 0.0
    %4871 = vmatprep.subr.mxu0 0.0
    %4872 = vmatpush1.msra.mxu0 0.0
    %4873 = vmatprep.subr.mxu0 0.0
    %4874 = vmatpush1.msra.mxu0 0.0
    %4875 = vmatprep.subr.mxu0 0.0
    %4876 = vmatpush1.msra.mxu0 0.0
    %4877 = vmatprep.subr.mxu0 0.0
    %4878 = vmatpush1.msra.mxu0 0.0
    %4879 = vmatprep.subr.mxu0 0.0
    %4880 = vmatpush1.msra.mxu0 0.0
    %4881 = vmatprep.subr.mxu0 0.0
    %4882 = vmatpush1.msra.mxu0 0.0
    %4883 = vmatprep.subr.mxu0 0.0
    %4884 = vmatpush1.msra.mxu0 0.0
    %4885 = vmatprep.subr.mxu0 0.0
    %4886 = vmatpush1.msra.mxu0 0.0
    %4887 = vmatprep.subr.mxu0 0.0
    %4888 = vmatpush1.msra.mxu0 0.0
    %4889 = vmatprep.mubr.f32.mxu0 0.0
    %4890 = vmatmul.mubr.f32.gmra.mrb[0].mxu0 %v4823
    %v4891 = vpop.f32.mrb[0].mxu0
    %v4892 = vadd.f32 0.0, %v4891
    %v4893 = vpop.f32.mrb[0].mxu0
    %4894 = vdwg.mxu0
    %v4896 = vsel %vm1050, %v4671, 0
    %4898 = vmatprep.subr.mxu0 0.0
    %4899 = vmatpush1.msra.mxu0 %v3803
    %4900 = vmatprep.subr.mxu0 0.0
    %4901 = vmatpush1.msra.mxu0 0.0
    %4902 = vmatprep.subr.mxu0 0.0
    %4903 = vmatpush1.msra.mxu0 0.0
    %4904 = vmatprep.subr.mxu0 0.0
    %4905 = vmatpush1.msra.mxu0 0.0
    %4906 = vmatprep.subr.mxu0 0.0
    %4907 = vmatpush1.msra.mxu0 0.0
    %4908 = vmatprep.subr.mxu0 0.0
    %4909 = vmatpush1.msra.mxu0 0.0
    %4910 = vmatprep.subr.mxu0 0.0
    %4911 = vmatpush1.msra.mxu0 0.0
    %4912 = vmatprep.subr.mxu0 0.0
    %4913 = vmatpush1.msra.mxu0 0.0
    %4914 = vmatprep.subr.mxu0 0.0
    %4915 = vmatpush1.msra.mxu0 0.0
    %4916 = vmatprep.subr.mxu0 0.0
    %4917 = vmatpush1.msra.mxu0 0.0
    %4918 = vmatprep.subr.mxu0 0.0
    %4919 = vmatpush1.msra.mxu0 0.0
    %4920 = vmatprep.subr.mxu0 0.0
    %4921 = vmatpush1.msra.mxu0 0.0
    %4922 = vmatprep.subr.mxu0 0.0
    %4923 = vmatpush1.msra.mxu0 0.0
    %4924 = vmatprep.subr.mxu0 0.0
    %4925 = vmatpush1.msra.mxu0 0.0
    %4926 = vmatprep.subr.mxu0 0.0
    %4927 = vmatpush1.msra.mxu0 0.0
    %4928 = vmatprep.subr.mxu0 0.0
    %4929 = vmatpush1.msra.mxu0 0.0
    %4930 = vmatprep.subr.mxu0 0.0
    %4931 = vmatpush1.msra.mxu0 0.0
    %4932 = vmatprep.subr.mxu0 0.0
    %4933 = vmatpush1.msra.mxu0 0.0
    %4934 = vmatprep.subr.mxu0 0.0
    %4935 = vmatpush1.msra.mxu0 0.0
    %4936 = vmatprep.subr.mxu0 0.0
    %4937 = vmatpush1.msra.mxu0 0.0
    %4938 = vmatprep.subr.mxu0 0.0
    %4939 = vmatpush1.msra.mxu0 0.0
    %4940 = vmatprep.subr.mxu0 0.0
    %4941 = vmatpush1.msra.mxu0 0.0
    %4942 = vmatprep.subr.mxu0 0.0
    %4943 = vmatpush1.msra.mxu0 0.0
    %4944 = vmatprep.subr.mxu0 0.0
    %4945 = vmatpush1.msra.mxu0 0.0
    %4946 = vmatprep.subr.mxu0 0.0
    %4947 = vmatpush1.msra.mxu0 0.0
    %4948 = vmatprep.subr.mxu0 0.0
    %4949 = vmatpush1.msra.mxu0 0.0
    %4950 = vmatprep.subr.mxu0 0.0
    %4951 = vmatpush1.msra.mxu0 0.0
    %4952 = vmatprep.subr.mxu0 0.0
    %4953 = vmatpush1.msra.mxu0 0.0
    %4954 = vmatprep.subr.mxu0 0.0
    %4955 = vmatpush1.msra.mxu0 0.0
    %4956 = vmatprep.subr.mxu0 0.0
    %4957 = vmatpush1.msra.mxu0 0.0
    %4958 = vmatprep.subr.mxu0 0.0
    %4959 = vmatpush1.msra.mxu0 0.0
    %4960 = vmatprep.subr.mxu0 0.0
    %4961 = vmatpush1.msra.mxu0 0.0
    %4962 = vmatprep.mubr.f32.mxu0 0.0
    %4963 = vmatmul.mubr.f32.gmra.mrb[0].mxu0 %v4896
    %v4964 = vpop.f32.mrb[0].mxu0
    %v4965 = vadd.f32 0.0, %v4964
    %v4966 = vpop.f32.mrb[0].mxu0
    %4967 = vdwg.mxu0
    %v4969 = vsel %vm1050, %v4672, 0
    %4971 = vmatprep.subr.mxu0 0.0
    %4972 = vmatpush1.msra.mxu0 %v3873
    %4973 = vmatprep.subr.mxu0 0.0
    %4974 = vmatpush1.msra.mxu0 0.0
    %4975 = vmatprep.subr.mxu0 0.0
    %4976 = vmatpush1.msra.mxu0 0.0
    %4977 = vmatprep.subr.mxu0 0.0
    %4978 = vmatpush1.msra.mxu0 0.0
    %4979 = vmatprep.subr.mxu0 0.0
    %4980 = vmatpush1.msra.mxu0 0.0
    %4981 = vmatprep.subr.mxu0 0.0
    %4982 = vmatpush1.msra.mxu0 0.0
    %4983 = vmatprep.subr.mxu0 0.0
    %4984 = vmatpush1.msra.mxu0 0.0
    %4985 = vmatprep.subr.mxu0 0.0
    %4986 = vmatpush1.msra.mxu0 0.0
    %4987 = vmatprep.subr.mxu0 0.0
    %4988 = vmatpush1.msra.mxu0 0.0
    %4989 = vmatprep.subr.mxu0 0.0
    %4990 = vmatpush1.msra.mxu0 0.0
    %4991 = vmatprep.subr.mxu0 0.0
    %4992 = vmatpush1.msra.mxu0 0.0
    %4993 = vmatprep.subr.mxu0 0.0
    %4994 = vmatpush1.msra.mxu0 0.0
    %4995 = vmatprep.subr.mxu0 0.0
    %4996 = vmatpush1.msra.mxu0 0.0
    %4997 = vmatprep.subr.mxu0 0.0
    %4998 = vmatpush1.msra.mxu0 0.0
    %4999 = vmatprep.subr.mxu0 0.0
    %5000 = vmatpush1.msra.mxu0 0.0
    %5001 = vmatprep.subr.mxu0 0.0
    %5002 = vmatpush1.msra.mxu0 0.0
    %5003 = vmatprep.subr.mxu0 0.0
    %5004 = vmatpush1.msra.mxu0 0.0
    %5005 = vmatprep.subr.mxu0 0.0
    %5006 = vmatpush1.msra.mxu0 0.0
    %5007 = vmatprep.subr.mxu0 0.0
    %5008 = vmatpush1.msra.mxu0 0.0
    %5009 = vmatprep.subr.mxu0 0.0
    %5010 = vmatpush1.msra.mxu0 0.0
    %5011 = vmatprep.subr.mxu0 0.0
    %5012 = vmatpush1.msra.mxu0 0.0
    %5013 = vmatprep.subr.mxu0 0.0
    %5014 = vmatpush1.msra.mxu0 0.0
    %5015 = vmatprep.subr.mxu0 0.0
    %5016 = vmatpush1.msra.mxu0 0.0
    %5017 = vmatprep.subr.mxu0 0.0
    %5018 = vmatpush1.msra.mxu0 0.0
    %5019 = vmatprep.subr.mxu0 0.0
    %5020 = vmatpush1.msra.mxu0 0.0
    %5021 = vmatprep.subr.mxu0 0.0
    %5022 = vmatpush1.msra.mxu0 0.0
    %5023 = vmatprep.subr.mxu0 0.0
    %5024 = vmatpush1.msra.mxu0 0.0
    %5025 = vmatprep.subr.mxu0 0.0
    %5026 = vmatpush1.msra.mxu0 0.0
    %5027 = vmatprep.subr.mxu0 0.0
    %5028 = vmatpush1.msra.mxu0 0.0
    %5029 = vmatprep.subr.mxu0 0.0
    %5030 = vmatpush1.msra.mxu0 0.0
    %5031 = vmatprep.subr.mxu0 0.0
    %5032 = vmatpush1.msra.mxu0 0.0
    %5033 = vmatprep.subr.mxu0 0.0
    %5034 = vmatpush1.msra.mxu0 0.0
    %5035 = vmatprep.mubr.f32.mxu0 0.0
    %5036 = vmatmul.mubr.f32.gmra.mrb[0].mxu0 %v4969
    %v5037 = vpop.f32.mrb[0].mxu0
    %v5038 = vadd.f32 0.0, %v5037
    %v5039 = vpop.f32.mrb[0].mxu0
    %5040 = vdwg.mxu0
    %v5042 = vsel %vm1050, %v4673, 0
    %5044 = vmatprep.subr.mxu0 0.0
    %5045 = vmatpush1.msra.mxu0 %v3878
    %5046 = vmatprep.subr.mxu0 0.0
    %5047 = vmatpush1.msra.mxu0 0.0
    %5048 = vmatprep.subr.mxu0 0.0
    %5049 = vmatpush1.msra.mxu0 0.0
    %5050 = vmatprep.subr.mxu0 0.0
    %5051 = vmatpush1.msra.mxu0 0.0
    %5052 = vmatprep.subr.mxu0 0.0
    %5053 = vmatpush1.msra.mxu0 0.0
    %5054 = vmatprep.subr.mxu0 0.0
    %5055 = vmatpush1.msra.mxu0 0.0
    %5056 = vmatprep.subr.mxu0 0.0
    %5057 = vmatpush1.msra.mxu0 0.0
    %5058 = vmatprep.subr.mxu0 0.0
    %5059 = vmatpush1.msra.mxu0 0.0
    %5060 = vmatprep.subr.mxu0 0.0
    %5061 = vmatpush1.msra.mxu0 0.0
    %5062 = vmatprep.subr.mxu0 0.0
    %5063 = vmatpush1.msra.mxu0 0.0
    %5064 = vmatprep.subr.mxu0 0.0
    %5065 = vmatpush1.msra.mxu0 0.0
    %5066 = vmatprep.subr.mxu0 0.0
    %5067 = vmatpush1.msra.mxu0 0.0
    %5068 = vmatprep.subr.mxu0 0.0
    %5069 = vmatpush1.msra.mxu0 0.0
    %5070 = vmatprep.subr.mxu0 0.0
    %5071 = vmatpush1.msra.mxu0 0.0
    %5072 = vmatprep.subr.mxu0 0.0
    %5073 = vmatpush1.msra.mxu0 0.0
    %5074 = vmatprep.subr.mxu0 0.0
    %5075 = vmatpush1.msra.mxu0 0.0
    %5076 = vmatprep.subr.mxu0 0.0
    %5077 = vmatpush1.msra.mxu0 0.0
    %5078 = vmatprep.subr.mxu0 0.0
    %5079 = vmatpush1.msra.mxu0 0.0
    %5080 = vmatprep.subr.mxu0 0.0
    %5081 = vmatpush1.msra.mxu0 0.0
    %5082 = vmatprep.subr.mxu0 0.0
    %5083 = vmatpush1.msra.mxu0 0.0
    %5084 = vmatprep.subr.mxu0 0.0
    %5085 = vmatpush1.msra.mxu0 0.0
    %5086 = vmatprep.subr.mxu0 0.0
    %5087 = vmatpush1.msra.mxu0 0.0
    %5088 = vmatprep.subr.mxu0 0.0
    %5089 = vmatpush1.msra.mxu0 0.0
    %5090 = vmatprep.subr.mxu0 0.0
    %5091 = vmatpush1.msra.mxu0 0.0
    %5092 = vmatprep.subr.mxu0 0.0
    %5093 = vmatpush1.msra.mxu0 0.0
    %5094 = vmatprep.subr.mxu0 0.0
    %5095 = vmatpush1.msra.mxu0 0.0
    %5096 = vmatprep.subr.mxu0 0.0
    %5097 = vmatpush1.msra.mxu0 0.0
    %5098 = vmatprep.subr.mxu0 0.0
    %5099 = vmatpush1.msra.mxu0 0.0
    %5100 = vmatprep.subr.mxu0 0.0
    %5101 = vmatpush1.msra.mxu0 0.0
    %5102 = vmatprep.subr.mxu0 0.0
    %5103 = vmatpush1.msra.mxu0 0.0
    %5104 = vmatprep.subr.mxu0 0.0
    %5105 = vmatpush1.msra.mxu0 0.0
    %5106 = vmatprep.subr.mxu0 0.0
    %5107 = vmatpush1.msra.mxu0 0.0
    %5108 = vmatprep.mubr.f32.mxu0 0.0
    %5109 = vmatmul.mubr.f32.gmra.mrb[0].mxu0 %v5042
    %v5110 = vpop.f32.mrb[0].mxu0
    %v5111 = vadd.f32 0.0, %v5110
    %v5112 = vpop.f32.mrb[0].mxu0
    %5113 = vdwg.mxu0
    %v5115 = vsel %vm1050, %v4674, 0
    %5117 = vmatprep.subr.mxu0 0.0
    %5118 = vmatpush1.msra.mxu0 %v3948
    %5119 = vmatprep.subr.mxu0 0.0
    %5120 = vmatpush1.msra.mxu0 0.0
    %5121 = vmatprep.subr.mxu0 0.0
    %5122 = vmatpush1.msra.mxu0 0.0
    %5123 = vmatprep.subr.mxu0 0.0
    %5124 = vmatpush1.msra.mxu0 0.0
    %5125 = vmatprep.subr.mxu0 0.0
    %5126 = vmatpush1.msra.mxu0 0.0
    %5127 = vmatprep.subr.mxu0 0.0
    %5128 = vmatpush1.msra.mxu0 0.0
    %5129 = vmatprep.subr.mxu0 0.0
    %5130 = vmatpush1.msra.mxu0 0.0
    %5131 = vmatprep.subr.mxu0 0.0
    %5132 = vmatpush1.msra.mxu0 0.0
    %5133 = vmatprep.subr.mxu0 0.0
    %5134 = vmatpush1.msra.mxu0 0.0
    %5135 = vmatprep.subr.mxu0 0.0
    %5136 = vmatpush1.msra.mxu0 0.0
    %5137 = vmatprep.subr.mxu0 0.0
    %5138 = vmatpush1.msra.mxu0 0.0
    %5139 = vmatprep.subr.mxu0 0.0
    %5140 = vmatpush1.msra.mxu0 0.0
    %5141 = vmatprep.subr.mxu0 0.0
    %5142 = vmatpush1.msra.mxu0 0.0
    %5143 = vmatprep.subr.mxu0 0.0
    %5144 = vmatpush1.msra.mxu0 0.0
    %5145 = vmatprep.subr.mxu0 0.0
    %5146 = vmatpush1.msra.mxu0 0.0
    %5147 = vmatprep.subr.mxu0 0.0
    %5148 = vmatpush1.msra.mxu0 0.0
    %5149 = vmatprep.subr.mxu0 0.0
    %5150 = vmatpush1.msra.mxu0 0.0
    %5151 = vmatprep.subr.mxu0 0.0
    %5152 = vmatpush1.msra.mxu0 0.0
    %5153 = vmatprep.subr.mxu0 0.0
    %5154 = vmatpush1.msra.mxu0 0.0
    %5155 = vmatprep.subr.mxu0 0.0
    %5156 = vmatpush1.msra.mxu0 0.0
    %5157 = vmatprep.subr.mxu0 0.0
    %5158 = vmatpush1.msra.mxu0 0.0
    %5159 = vmatprep.subr.mxu0 0.0
    %5160 = vmatpush1.msra.mxu0 0.0
    %5161 = vmatprep.subr.mxu0 0.0
    %5162 = vmatpush1.msra.mxu0 0.0
    %5163 = vmatprep.subr.mxu0 0.0
    %5164 = vmatpush1.msra.mxu0 0.0
    %5165 = vmatprep.subr.mxu0 0.0
    %5166 = vmatpush1.msra.mxu0 0.0
    %5167 = vmatprep.subr.mxu0 0.0
    %5168 = vmatpush1.msra.mxu0 0.0
    %5169 = vmatprep.subr.mxu0 0.0
    %5170 = vmatpush1.msra.mxu0 0.0
    %5171 = vmatprep.subr.mxu0 0.0
    %5172 = vmatpush1.msra.mxu0 0.0
    %5173 = vmatprep.subr.mxu0 0.0
    %5174 = vmatpush1.msra.mxu0 0.0
    %5175 = vmatprep.subr.mxu0 0.0
    %5176 = vmatpush1.msra.mxu0 0.0
    %5177 = vmatprep.subr.mxu0 0.0
    %5178 = vmatpush1.msra.mxu0 0.0
    %5179 = vmatprep.subr.mxu0 0.0
    %5180 = vmatpush1.msra.mxu0 0.0
    %5181 = vmatprep.mubr.f32.mxu0 0.0
    %5182 = vmatmul.mubr.f32.gmra.mrb[0].mxu0 %v5115
    %v5183 = vpop.f32.mrb[0].mxu0
    %v5184 = vadd.f32 0.0, %v5183
    %v5185 = vpop.f32.mrb[0].mxu0
    %5186 = vdwg.mxu0
    %v5188 = vsel %vm1050, %v4675, 0
    %5190 = vmatprep.subr.mxu0 0.0
    %5191 = vmatpush1.msra.mxu0 %v3953
    %5192 = vmatprep.subr.mxu0 0.0
    %5193 = vmatpush1.msra.mxu0 0.0
    %5194 = vmatprep.subr.mxu0 0.0
    %5195 = vmatpush1.msra.mxu0 0.0
    %5196 = vmatprep.subr.mxu0 0.0
    %5197 = vmatpush1.msra.mxu0 0.0
    %5198 = vmatprep.subr.mxu0 0.0
    %5199 = vmatpush1.msra.mxu0 0.0
    %5200 = vmatprep.subr.mxu0 0.0
    %5201 = vmatpush1.msra.mxu0 0.0
    %5202 = vmatprep.subr.mxu0 0.0
    %5203 = vmatpush1.msra.mxu0 0.0
    %5204 = vmatprep.subr.mxu0 0.0
    %5205 = vmatpush1.msra.mxu0 0.0
    %5206 = vmatprep.subr.mxu0 0.0
    %5207 = vmatpush1.msra.mxu0 0.0
    %5208 = vmatprep.subr.mxu0 0.0
    %5209 = vmatpush1.msra.mxu0 0.0
    %5210 = vmatprep.subr.mxu0 0.0
    %5211 = vmatpush1.msra.mxu0 0.0
    %5212 = vmatprep.subr.mxu0 0.0
    %5213 = vmatpush1.msra.mxu0 0.0
    %5214 = vmatprep.subr.mxu0 0.0
    %5215 = vmatpush1.msra.mxu0 0.0
    %5216 = vmatprep.subr.mxu0 0.0
    %5217 = vmatpush1.msra.mxu0 0.0
    %5218 = vmatprep.subr.mxu0 0.0
    %5219 = vmatpush1.msra.mxu0 0.0
    %5220 = vmatprep.subr.mxu0 0.0
    %5221 = vmatpush1.msra.mxu0 0.0
    %5222 = vmatprep.subr.mxu0 0.0
    %5223 = vmatpush1.msra.mxu0 0.0
    %5224 = vmatprep.subr.mxu0 0.0
    %5225 = vmatpush1.msra.mxu0 0.0
    %5226 = vmatprep.subr.mxu0 0.0
    %5227 = vmatpush1.msra.mxu0 0.0
    %5228 = vmatprep.subr.mxu0 0.0
    %5229 = vmatpush1.msra.mxu0 0.0
    %5230 = vmatprep.subr.mxu0 0.0
    %5231 = vmatpush1.msra.mxu0 0.0
    %5232 = vmatprep.subr.mxu0 0.0
    %5233 = vmatpush1.msra.mxu0 0.0
    %5234 = vmatprep.subr.mxu0 0.0
    %5235 = vmatpush1.msra.mxu0 0.0
    %5236 = vmatprep.subr.mxu0 0.0
    %5237 = vmatpush1.msra.mxu0 0.0
    %5238 = vmatprep.subr.mxu0 0.0
    %5239 = vmatpush1.msra.mxu0 0.0
    %5240 = vmatprep.subr.mxu0 0.0
    %5241 = vmatpush1.msra.mxu0 0.0
    %5242 = vmatprep.subr.mxu0 0.0
    %5243 = vmatpush1.msra.mxu0 0.0
    %5244 = vmatprep.subr.mxu0 0.0
    %5245 = vmatpush1.msra.mxu0 0.0
    %5246 = vmatprep.subr.mxu0 0.0
    %5247 = vmatpush1.msra.mxu0 0.0
    %5248 = vmatprep.subr.mxu0 0.0
    %5249 = vmatpush1.msra.mxu0 0.0
    %5250 = vmatprep.subr.mxu0 0.0
    %5251 = vmatpush1.msra.mxu0 0.0
    %5252 = vmatprep.subr.mxu0 0.0
    %5253 = vmatpush1.msra.mxu0 0.0
    %5254 = vmatprep.mubr.f32.mxu0 0.0
    %5255 = vmatmul.mubr.f32.gmra.mrb[0].mxu0 %v5188
    %v5256 = vpop.f32.mrb[0].mxu0
    %v5257 = vadd.f32 0.0, %v5256
    %v5258 = vpop.f32.mrb[0].mxu0
    %5259 = vdwg.mxu0
    %s5260 = scalar_lea.vmem %s4, 32
    %v5261 = vld [vmem:[%s5260] sm:$0xff]
    %v5262 = vld [vmem:[%s5260 + $0x8] sm:$0xff]
    %v5263 = vld [vmem:[%s5260 + $0x10] sm:$0xff]
    %v5264 = vld [vmem:[%s5260 + $0x18] sm:$0xff]
    %v5266 = vsel %vm1050, %v4746, 0
    %v5269 = vsel %vm1050, %v4819, 0
    %5271 = vmatprep.subr.mxu0 0.0
    %5272 = vmatpush1.msra.mxu0 %v5261
    %5273 = vmatprep.subr.mxu0 0.0
    %5274 = vmatpush1.msra.mxu0 0.0
    %5275 = vmatprep.subr.mxu0 0.0
    %5276 = vmatpush1.msra.mxu0 0.0
    %5277 = vmatprep.subr.mxu0 0.0
    %5278 = vmatpush1.msra.mxu0 0.0
    %5279 = vmatprep.subr.mxu0 0.0
    %5280 = vmatpush1.msra.mxu0 0.0
    %5281 = vmatprep.subr.mxu0 0.0
    %5282 = vmatpush1.msra.mxu0 0.0
    %5283 = vmatprep.subr.mxu0 0.0
    %5284 = vmatpush1.msra.mxu0 0.0
    %5285 = vmatprep.subr.mxu0 0.0
    %5286 = vmatpush1.msra.mxu0 0.0
    %5287 = vmatprep.subr.mxu0 0.0
    %5288 = vmatpush1.msra.mxu0 0.0
    %5289 = vmatprep.subr.mxu0 0.0
    %5290 = vmatpush1.msra.mxu0 0.0
    %5291 = vmatprep.subr.mxu0 0.0
    %5292 = vmatpush1.msra.mxu0 0.0
    %5293 = vmatprep.subr.mxu0 0.0
    %5294 = vmatpush1.msra.mxu0 0.0
    %5295 = vmatprep.subr.mxu0 0.0
    %5296 = vmatpush1.msra.mxu0 0.0
    %5297 = vmatprep.subr.mxu0 0.0
    %5298 = vmatpush1.msra.mxu0 0.0
    %5299 = vmatprep.subr.mxu0 0.0
    %5300 = vmatpush1.msra.mxu0 0.0
    %5301 = vmatprep.subr.mxu0 0.0
    %5302 = vmatpush1.msra.mxu0 0.0
    %5303 = vmatprep.subr.mxu0 0.0
    %5304 = vmatpush1.msra.mxu0 0.0
    %5305 = vmatprep.subr.mxu0 0.0
    %5306 = vmatpush1.msra.mxu0 0.0
    %5307 = vmatprep.subr.mxu0 0.0
    %5308 = vmatpush1.msra.mxu0 0.0
    %5309 = vmatprep.subr.mxu0 0.0
    %5310 = vmatpush1.msra.mxu0 0.0
    %5311 = vmatprep.subr.mxu0 0.0
    %5312 = vmatpush1.msra.mxu0 0.0
    %5313 = vmatprep.subr.mxu0 0.0
    %5314 = vmatpush1.msra.mxu0 0.0
    %5315 = vmatprep.subr.mxu0 0.0
    %5316 = vmatpush1.msra.mxu0 0.0
    %5317 = vmatprep.subr.mxu0 0.0
    %5318 = vmatpush1.msra.mxu0 0.0
    %5319 = vmatprep.subr.mxu0 0.0
    %5320 = vmatpush1.msra.mxu0 0.0
    %5321 = vmatprep.subr.mxu0 0.0
    %5322 = vmatpush1.msra.mxu0 0.0
    %5323 = vmatprep.subr.mxu0 0.0
    %5324 = vmatpush1.msra.mxu0 0.0
    %5325 = vmatprep.subr.mxu0 0.0
    %5326 = vmatpush1.msra.mxu0 0.0
    %5327 = vmatprep.subr.mxu0 0.0
    %5328 = vmatpush1.msra.mxu0 0.0
    %5329 = vmatprep.subr.mxu0 0.0
    %5330 = vmatpush1.msra.mxu0 0.0
    %5331 = vmatprep.subr.mxu0 0.0
    %5332 = vmatpush1.msra.mxu0 0.0
    %5333 = vmatprep.subr.mxu0 0.0
    %5334 = vmatpush1.msra.mxu0 0.0
    %5335 = vmatprep.mubr.f32.mxu0 0.0
    %5336 = vmatmul.mubr.f32.gmra.mrb[0].mxu0 %v5266
    %v5337 = vpop.f32.mrb[0].mxu0
    %v5338 = vadd.f32 0.0, %v5337
    %v5339 = vpop.f32.mrb[0].mxu0
    %5340 = vmatprep.mubr.f32.mxu0 0.0
    %5341 = vmatmul.mubr.f32.gmra.mrb[0].mxu0 %v5269
    %v5342 = vpop.f32.mrb[0].mxu0
    %v5343 = vadd.f32 0.0, %v5342
    %v5344 = vpop.f32.mrb[0].mxu0
    %5345 = vdwg.mxu0
    %v5347 = vsel %vm1050, %v4892, 0
    %v5350 = vsel %vm1050, %v4965, 0
    %5352 = vmatprep.subr.mxu0 0.0
    %5353 = vmatpush1.msra.mxu0 %v5262
    %5354 = vmatprep.subr.mxu0 0.0
    %5355 = vmatpush1.msra.mxu0 0.0
    %5356 = vmatprep.subr.mxu0 0.0
    %5357 = vmatpush1.msra.mxu0 0.0
    %5358 = vmatprep.subr.mxu0 0.0
    %5359 = vmatpush1.msra.mxu0 0.0
    %5360 = vmatprep.subr.mxu0 0.0
    %5361 = vmatpush1.msra.mxu0 0.0
    %5362 = vmatprep.subr.mxu0 0.0
    %5363 = vmatpush1.msra.mxu0 0.0
    %5364 = vmatprep.subr.mxu0 0.0
    %5365 = vmatpush1.msra.mxu0 0.0
    %5366 = vmatprep.subr.mxu0 0.0
    %5367 = vmatpush1.msra.mxu0 0.0
    %5368 = vmatprep.subr.mxu0 0.0
    %5369 = vmatpush1.msra.mxu0 0.0
    %5370 = vmatprep.subr.mxu0 0.0
    %5371 = vmatpush1.msra.mxu0 0.0
    %5372 = vmatprep.subr.mxu0 0.0
    %5373 = vmatpush1.msra.mxu0 0.0
    %5374 = vmatprep.subr.mxu0 0.0
    %5375 = vmatpush1.msra.mxu0 0.0
    %5376 = vmatprep.subr.mxu0 0.0
    %5377 = vmatpush1.msra.mxu0 0.0
    %5378 = vmatprep.subr.mxu0 0.0
    %5379 = vmatpush1.msra.mxu0 0.0
    %5380 = vmatprep.subr.mxu0 0.0
    %5381 = vmatpush1.msra.mxu0 0.0
    %5382 = vmatprep.subr.mxu0 0.0
    %5383 = vmatpush1.msra.mxu0 0.0
    %5384 = vmatprep.subr.mxu0 0.0
    %5385 = vmatpush1.msra.mxu0 0.0
    %5386 = vmatprep.subr.mxu0 0.0
    %5387 = vmatpush1.msra.mxu0 0.0
    %5388 = vmatprep.subr.mxu0 0.0
    %5389 = vmatpush1.msra.mxu0 0.0
    %5390 = vmatprep.subr.mxu0 0.0
    %5391 = vmatpush1.msra.mxu0 0.0
    %5392 = vmatprep.subr.mxu0 0.0
    %5393 = vmatpush1.msra.mxu0 0.0
    %5394 = vmatprep.subr.mxu0 0.0
    %5395 = vmatpush1.msra.mxu0 0.0
    %5396 = vmatprep.subr.mxu0 0.0
    %5397 = vmatpush1.msra.mxu0 0.0
    %5398 = vmatprep.subr.mxu0 0.0
    %5399 = vmatpush1.msra.mxu0 0.0
    %5400 = vmatprep.subr.mxu0 0.0
    %5401 = vmatpush1.msra.mxu0 0.0
    %5402 = vmatprep.subr.mxu0 0.0
    %5403 = vmatpush1.msra.mxu0 0.0
    %5404 = vmatprep.subr.mxu0 0.0
    %5405 = vmatpush1.msra.mxu0 0.0
    %5406 = vmatprep.subr.mxu0 0.0
    %5407 = vmatpush1.msra.mxu0 0.0
    %5408 = vmatprep.subr.mxu0 0.0
    %5409 = vmatpush1.msra.mxu0 0.0
    %5410 = vmatprep.subr.mxu0 0.0
    %5411 = vmatpush1.msra.mxu0 0.0
    %5412 = vmatprep.subr.mxu0 0.0
    %5413 = vmatpush1.msra.mxu0 0.0
    %5414 = vmatprep.subr.mxu0 0.0
    %5415 = vmatpush1.msra.mxu0 0.0
    %5416 = vmatprep.mubr.f32.mxu0 0.0
    %5417 = vmatmul.mubr.f32.gmra.mrb[0].mxu0 %v5347
    %v5418 = vpop.f32.mrb[0].mxu0
    %v5419 = vadd.f32 0.0, %v5418
    %v5420 = vpop.f32.mrb[0].mxu0
    %5421 = vmatprep.mubr.f32.mxu0 0.0
    %5422 = vmatmul.mubr.f32.gmra.mrb[0].mxu0 %v5350
    %v5423 = vpop.f32.mrb[0].mxu0
    %v5424 = vadd.f32 0.0, %v5423
    %v5425 = vpop.f32.mrb[0].mxu0
    %5426 = vdwg.mxu0
    %v5428 = vsel %vm1050, %v5038, 0
    %v5431 = vsel %vm1050, %v5111, 0
    %5433 = vmatprep.subr.mxu0 0.0
    %5434 = vmatpush1.msra.mxu0 %v5263
    %5435 = vmatprep.subr.mxu0 0.0
    %5436 = vmatpush1.msra.mxu0 0.0
    %5437 = vmatprep.subr.mxu0 0.0
    %5438 = vmatpush1.msra.mxu0 0.0
    %5439 = vmatprep.subr.mxu0 0.0
    %5440 = vmatpush1.msra.mxu0 0.0
    %5441 = vmatprep.subr.mxu0 0.0
    %5442 = vmatpush1.msra.mxu0 0.0
    %5443 = vmatprep.subr.mxu0 0.0
    %5444 = vmatpush1.msra.mxu0 0.0
    %5445 = vmatprep.subr.mxu0 0.0
    %5446 = vmatpush1.msra.mxu0 0.0
    %5447 = vmatprep.subr.mxu0 0.0
    %5448 = vmatpush1.msra.mxu0 0.0
    %5449 = vmatprep.subr.mxu0 0.0
    %5450 = vmatpush1.msra.mxu0 0.0
    %5451 = vmatprep.subr.mxu0 0.0
    %5452 = vmatpush1.msra.mxu0 0.0
    %5453 = vmatprep.subr.mxu0 0.0
    %5454 = vmatpush1.msra.mxu0 0.0
    %5455 = vmatprep.subr.mxu0 0.0
    %5456 = vmatpush1.msra.mxu0 0.0
    %5457 = vmatprep.subr.mxu0 0.0
    %5458 = vmatpush1.msra.mxu0 0.0
    %5459 = vmatprep.subr.mxu0 0.0
    %5460 = vmatpush1.msra.mxu0 0.0
    %5461 = vmatprep.subr.mxu0 0.0
    %5462 = vmatpush1.msra.mxu0 0.0
    %5463 = vmatprep.subr.mxu0 0.0
    %5464 = vmatpush1.msra.mxu0 0.0
    %5465 = vmatprep.subr.mxu0 0.0
    %5466 = vmatpush1.msra.mxu0 0.0
    %5467 = vmatprep.subr.mxu0 0.0
    %5468 = vmatpush1.msra.mxu0 0.0
    %5469 = vmatprep.subr.mxu0 0.0
    %5470 = vmatpush1.msra.mxu0 0.0
    %5471 = vmatprep.subr.mxu0 0.0
    %5472 = vmatpush1.msra.mxu0 0.0
    %5473 = vmatprep.subr.mxu0 0.0
    %5474 = vmatpush1.msra.mxu0 0.0
    %5475 = vmatprep.subr.mxu0 0.0
    %5476 = vmatpush1.msra.mxu0 0.0
    %5477 = vmatprep.subr.mxu0 0.0
    %5478 = vmatpush1.msra.mxu0 0.0
    %5479 = vmatprep.subr.mxu0 0.0
    %5480 = vmatpush1.msra.mxu0 0.0
    %5481 = vmatprep.subr.mxu0 0.0
    %5482 = vmatpush1.msra.mxu0 0.0
    %5483 = vmatprep.subr.mxu0 0.0
    %5484 = vmatpush1.msra.mxu0 0.0
    %5485 = vmatprep.subr.mxu0 0.0
    %5486 = vmatpush1.msra.mxu0 0.0
    %5487 = vmatprep.subr.mxu0 0.0
    %5488 = vmatpush1.msra.mxu0 0.0
    %5489 = vmatprep.subr.mxu0 0.0
    %5490 = vmatpush1.msra.mxu0 0.0
    %5491 = vmatprep.subr.mxu0 0.0
    %5492 = vmatpush1.msra.mxu0 0.0
    %5493 = vmatprep.subr.mxu0 0.0
    %5494 = vmatpush1.msra.mxu0 0.0
    %5495 = vmatprep.subr.mxu0 0.0
    %5496 = vmatpush1.msra.mxu0 0.0
    %5497 = vmatprep.mubr.f32.mxu0 0.0
    %5498 = vmatmul.mubr.f32.gmra.mrb[0].mxu0 %v5428
    %v5499 = vpop.f32.mrb[0].mxu0
    %v5500 = vadd.f32 0.0, %v5499
    %v5501 = vpop.f32.mrb[0].mxu0
    %5502 = vmatprep.mubr.f32.mxu0 0.0
    %5503 = vmatmul.mubr.f32.gmra.mrb[0].mxu0 %v5431
    %v5504 = vpop.f32.mrb[0].mxu0
    %v5505 = vadd.f32 0.0, %v5504
    %v5506 = vpop.f32.mrb[0].mxu0
    %5507 = vdwg.mxu0
    %v5509 = vsel %vm1050, %v5184, 0
    %v5512 = vsel %vm1050, %v5257, 0
    %5514 = vmatprep.subr.mxu0 0.0
    %5515 = vmatpush1.msra.mxu0 %v5264
    %5516 = vmatprep.subr.mxu0 0.0
    %5517 = vmatpush1.msra.mxu0 0.0
    %5518 = vmatprep.subr.mxu0 0.0
    %5519 = vmatpush1.msra.mxu0 0.0
    %5520 = vmatprep.subr.mxu0 0.0
    %5521 = vmatpush1.msra.mxu0 0.0
    %5522 = vmatprep.subr.mxu0 0.0
    %5523 = vmatpush1.msra.mxu0 0.0
    %5524 = vmatprep.subr.mxu0 0.0
    %5525 = vmatpush1.msra.mxu0 0.0
    %5526 = vmatprep.subr.mxu0 0.0
    %5527 = vmatpush1.msra.mxu0 0.0
    %5528 = vmatprep.subr.mxu0 0.0
    %5529 = vmatpush1.msra.mxu0 0.0
    %5530 = vmatprep.subr.mxu0 0.0
    %5531 = vmatpush1.msra.mxu0 0.0
    %5532 = vmatprep.subr.mxu0 0.0
    %5533 = vmatpush1.msra.mxu0 0.0
    %5534 = vmatprep.subr.mxu0 0.0
    %5535 = vmatpush1.msra.mxu0 0.0
    %5536 = vmatprep.subr.mxu0 0.0
    %5537 = vmatpush1.msra.mxu0 0.0
    %5538 = vmatprep.subr.mxu0 0.0
    %5539 = vmatpush1.msra.mxu0 0.0
    %5540 = vmatprep.subr.mxu0 0.0
    %5541 = vmatpush1.msra.mxu0 0.0
    %5542 = vmatprep.subr.mxu0 0.0
    %5543 = vmatpush1.msra.mxu0 0.0
    %5544 = vmatprep.subr.mxu0 0.0
    %5545 = vmatpush1.msra.mxu0 0.0
    %5546 = vmatprep.subr.mxu0 0.0
    %5547 = vmatpush1.msra.mxu0 0.0
    %5548 = vmatprep.subr.mxu0 0.0
    %5549 = vmatpush1.msra.mxu0 0.0
    %5550 = vmatprep.subr.mxu0 0.0
    %5551 = vmatpush1.msra.mxu0 0.0
    %5552 = vmatprep.subr.mxu0 0.0
    %5553 = vmatpush1.msra.mxu0 0.0
    %5554 = vmatprep.subr.mxu0 0.0
    %5555 = vmatpush1.msra.mxu0 0.0
    %5556 = vmatprep.subr.mxu0 0.0
    %5557 = vmatpush1.msra.mxu0 0.0
    %5558 = vmatprep.subr.mxu0 0.0
    %5559 = vmatpush1.msra.mxu0 0.0
    %5560 = vmatprep.subr.mxu0 0.0
    %5561 = vmatpush1.msra.mxu0 0.0
    %5562 = vmatprep.subr.mxu0 0.0
    %5563 = vmatpush1.msra.mxu0 0.0
    %5564 = vmatprep.subr.mxu0 0.0
    %5565 = vmatpush1.msra.mxu0 0.0
    %5566 = vmatprep.subr.mxu0 0.0
    %5567 = vmatpush1.msra.mxu0 0.0
    %5568 = vmatprep.subr.mxu0 0.0
    %5569 = vmatpush1.msra.mxu0 0.0
    %5570 = vmatprep.subr.mxu0 0.0
    %5571 = vmatpush1.msra.mxu0 0.0
    %5572 = vmatprep.subr.mxu0 0.0
    %5573 = vmatpush1.msra.mxu0 0.0
    %5574 = vmatprep.subr.mxu0 0.0
    %5575 = vmatpush1.msra.mxu0 0.0
    %5576 = vmatprep.subr.mxu0 0.0
    %5577 = vmatpush1.msra.mxu0 0.0
    %5578 = vmatprep.mubr.f32.mxu0 0.0
    %5579 = vmatmul.mubr.f32.gmra.mrb[0].mxu0 %v5509
    %v5580 = vpop.f32.mrb[0].mxu0
    %v5581 = vadd.f32 0.0, %v5580
    %v5582 = vpop.f32.mrb[0].mxu0
    %5583 = vmatprep.mubr.f32.mxu0 0.0
    %5584 = vmatmul.mubr.f32.gmra.mrb[0].mxu0 %v5512
    %v5585 = vpop.f32.mrb[0].mxu0
    %v5586 = vadd.f32 0.0, %v5585
    %v5587 = vpop.f32.mrb[0].mxu0
    %5588 = vdwg.mxu0
    %v5589 = vsel %vm52, %v5338, 0.0
    %v5590 = vsel %vm52, %v5419, 0.0
    %v5591 = vadd.f32 %v5589, %v5590
    %v5592 = vsel %vm52, %v5500, 0.0
    %v5593 = vadd.f32 %v5591, %v5592
    %v5594 = vsel %vm52, %v5581, 0.0
    %v5595 = vadd.f32 %v5593, %v5594
    %v5596 = vsel %vm52, %v5343, 0.0
    %v5597 = vsel %vm52, %v5424, 0.0
    %v5598 = vadd.f32 %v5596, %v5597
    %v5599 = vsel %vm52, %v5505, 0.0
    %v5600 = vadd.f32 %v5598, %v5599
    %v5601 = vsel %vm52, %v5586, 0.0
    %v5602 = vadd.f32 %v5600, %v5601
    %v5603 = vadd.f32 %v2953, %v5595
    %v5604 = vadd.f32 %v2954, %v5602
    %s5605 = scalar_lea.vmem %s5, 1
    %v5606 = vld [vmem:[%s5605] sm:$0x1]
    %v5608 = vlaneseq
    %v5609 = vshrl.u32 %v5608, 7
    %v5610 = vsub.s32 0, %v5609
    %v5611 = vrot.slane %v5606, %v5610
    %v5613 = vadd.f32 %v5603, %v5611
    %v5614 = vadd.f32 %v5604, %v5611
    %s5615 = scalar_lea.vmem %s6, 1
    %v5616 = vld [vmem:[%s5615] sm:$0x1]
    %s5617 = scalar_lea.vmem %s7, 1
    %v5618 = vld [vmem:[%s5617] sm:$0x1]
    %v5619 = vsel %vm52, %v5613, 0.0
    %5620 = vadd.xlane.f32.xlu0 %v5619
    %v5621 = vpop.xlane.xlu0 %5620
    %v5622 = vsel %vm52, %v5614, 0.0
    %5623 = vadd.xlane.f32.xlu0 %v5622
    %v5624 = vpop.xlane.xlu0 %5623
    %v5625 = vmul.f32 %v5621, %v59
    %v5626 = vmul.f32 %v5624, %v59
    %v5627 = vsub.f32 %v5613, %v5625
    %v5628 = vsub.f32 %v5614, %v5626
    %v5629 = vmul.f32 %v5627, %v5627
    %v5630 = vmul.f32 %v5628, %v5628
    %v5631 = vsel %vm52, %v5629, 0.0
    %5632 = vadd.xlane.f32.xlu0 %v5631
    %v5633 = vpop.xlane.xlu0 %5632
    %v5634 = vsel %vm52, %v5630, 0.0
    %5635 = vadd.xlane.f32.xlu0 %v5634
    %v5636 = vpop.xlane.xlu0 %5635
    %v5637 = vmul.f32 %v5633, %v59
    %v5638 = vmul.f32 %v5636, %v59
    %v5639 = vadd.f32 %v5637, 1e-05
    %v5640 = vadd.f32 %v5638, 1e-05
    %v5641 = vrsqrt.pop %v5639
    %v5642 = vrsqrt.pop %v5640
    %v5643 = vmul.f32 %v5627, %v5641
    %v5644 = vmul.f32 %v5628, %v5642
    %v5646 = vlaneseq
    %v5647 = vshrl.u32 %v5646, 7
    %v5648 = vsub.s32 0, %v5647
    %v5649 = vrot.slane %v5616, %v5648
    %v5651 = vmul.f32 %v5643, %v5649
    %v5652 = vmul.f32 %v5644, %v5649
    %v5654 = vlaneseq
    %v5655 = vshrl.u32 %v5654, 7
    %v5656 = vsub.s32 0, %v5655
    %v5657 = vrot.slane %v5618, %v5656
    %v5659 = vadd.f32 %v5651, %v5657
    %v5660 = vadd.f32 %v5652, %v5657
    %s5661 = scalar_lea.vmem %s8, 32
    %v5662 = vld [vmem:[%s5661] sm:$0xff]
    %v5663 = vld [vmem:[%s5661 + $0x8] sm:$0xff]
    %v5664 = vld [vmem:[%s5661 + $0x10] sm:$0xff]
    %v5665 = vld [vmem:[%s5661 + $0x18] sm:$0xff]
    %s5666 = scalar_lea.vmem %s9, 1
    %v5667 = vld [vmem:[%s5666] sm:$0x1]
    %v5669 = vlaneseq
    %v5670 = vshrl.u32 %v5669, 7
    %v5671 = vsub.s32 0, %v5670
    %v5672 = vrot.slane %v5667, %v5671
    %v5675 = vsel %vm52, %v5659, 0
    %v5678 = vsel %vm52, %v5660, 0
    %5680 = vmatprep.subr.mxu0 0.0
    %5681 = vmatpush1.msra.mxu0 %v5662
    %5682 = vmatprep.subr.mxu0 0.0
    %5683 = vmatpush1.msra.mxu0 %v5663
    %5684 = vmatprep.subr.mxu0 0.0
    %5685 = vmatpush1.msra.mxu0 %v5664
    %5686 = vmatprep.subr.mxu0 0.0
    %5687 = vmatpush1.msra.mxu0 %v5665
    %5688 = vmatprep.subr.mxu0 0.0
    %5689 = vmatpush1.msra.mxu0 0.0
    %5690 = vmatprep.subr.mxu0 0.0
    %5691 = vmatpush1.msra.mxu0 0.0
    %5692 = vmatprep.subr.mxu0 0.0
    %5693 = vmatpush1.msra.mxu0 0.0
    %5694 = vmatprep.subr.mxu0 0.0
    %5695 = vmatpush1.msra.mxu0 0.0
    %5696 = vmatprep.subr.mxu0 0.0
    %5697 = vmatpush1.msra.mxu0 0.0
    %5698 = vmatprep.subr.mxu0 0.0
    %5699 = vmatpush1.msra.mxu0 0.0
    %5700 = vmatprep.subr.mxu0 0.0
    %5701 = vmatpush1.msra.mxu0 0.0
    %5702 = vmatprep.subr.mxu0 0.0
    %5703 = vmatpush1.msra.mxu0 0.0
    %5704 = vmatprep.subr.mxu0 0.0
    %5705 = vmatpush1.msra.mxu0 0.0
    %5706 = vmatprep.subr.mxu0 0.0
    %5707 = vmatpush1.msra.mxu0 0.0
    %5708 = vmatprep.subr.mxu0 0.0
    %5709 = vmatpush1.msra.mxu0 0.0
    %5710 = vmatprep.subr.mxu0 0.0
    %5711 = vmatpush1.msra.mxu0 0.0
    %5712 = vmatprep.subr.mxu0 0.0
    %5713 = vmatpush1.msra.mxu0 0.0
    %5714 = vmatprep.subr.mxu0 0.0
    %5715 = vmatpush1.msra.mxu0 0.0
    %5716 = vmatprep.subr.mxu0 0.0
    %5717 = vmatpush1.msra.mxu0 0.0
    %5718 = vmatprep.subr.mxu0 0.0
    %5719 = vmatpush1.msra.mxu0 0.0
    %5720 = vmatprep.subr.mxu0 0.0
    %5721 = vmatpush1.msra.mxu0 0.0
    %5722 = vmatprep.subr.mxu0 0.0
    %5723 = vmatpush1.msra.mxu0 0.0
    %5724 = vmatprep.subr.mxu0 0.0
    %5725 = vmatpush1.msra.mxu0 0.0
    %5726 = vmatprep.subr.mxu0 0.0
    %5727 = vmatpush1.msra.mxu0 0.0
    %5728 = vmatprep.subr.mxu0 0.0
    %5729 = vmatpush1.msra.mxu0 0.0
    %5730 = vmatprep.subr.mxu0 0.0
    %5731 = vmatpush1.msra.mxu0 0.0
    %5732 = vmatprep.subr.mxu0 0.0
    %5733 = vmatpush1.msra.mxu0 0.0
    %5734 = vmatprep.subr.mxu0 0.0
    %5735 = vmatpush1.msra.mxu0 0.0
    %5736 = vmatprep.subr.mxu0 0.0
    %5737 = vmatpush1.msra.mxu0 0.0
    %5738 = vmatprep.subr.mxu0 0.0
    %5739 = vmatpush1.msra.mxu0 0.0
    %5740 = vmatprep.subr.mxu0 0.0
    %5741 = vmatpush1.msra.mxu0 0.0
    %5742 = vmatprep.subr.mxu0 0.0
    %5743 = vmatpush1.msra.mxu0 0.0
    %5744 = vmatprep.mubr.f32.mxu0 0.0
    %5745 = vmatmul.mubr.f32.gmra.mrb[0].mxu0 %v5675
    %v5746 = vpop.f32.mrb[0].mxu0
    %v5747 = vadd.f32 %v5672, %v5746
    %v5748 = vpop.f32.mrb[0].mxu0
    %5749 = vmatprep.mubr.f32.mxu0 0.0
    %5750 = vmatmul.mubr.f32.gmra.mrb[0].mxu0 %v5678
    %v5751 = vpop.f32.mrb[0].mxu0
    %v5752 = vadd.f32 %v5672, %v5751
    %v5753 = vpop.f32.mrb[0].mxu0
    %5754 = vdwg.mxu0
    %v5755 = vmul.f32 %v5747, 0.5
    %v5756 = vmul.f32 %v5752, 0.5
    %v5757 = vmul.f32 %v5747, 0.70710677
    %v5758 = vmul.f32 %v5752, 0.70710677
    %v5759 = verf.f32.pop %v5757
    %v5760 = verf.f32.pop %v5758
    %v5761 = vadd.f32 %v5759, 1.0
    %v5762 = vadd.f32 %v5760, 1.0
    %v5763 = vmul.f32 %v5755, %v5761
    %v5764 = vmul.f32 %v5756, %v5762
    %s5765 = scalar_lea.vmem %s10, 64
    %v5766 = vld [vmem:[%s5765] sm:$0xff]
    %v5767 = vld [vmem:[%s5765 + $0x8] sm:$0xff]
    %v5768 = vld [vmem:[%s5765 + $0x10] sm:$0xff]
    %v5769 = vld [vmem:[%s5765 + $0x18] sm:$0xff]
    %v5770 = vld [vmem:[%s5765 + $0x20] sm:$0xff]
    %v5771 = vld [vmem:[%s5765 + $0x28] sm:$0xff]
    %v5772 = vld [vmem:[%s5765 + $0x30] sm:$0xff]
    %v5773 = vld [vmem:[%s5765 + $0x38] sm:$0xff]
    %v5775 = vsel %vm2862, %v5763, 0
    %v5778 = vsel %vm2862, %v5764, 0
    %5780 = vmatprep.subr.mxu0 0.0
    %5781 = vmatpush1.msra.mxu0 %v5766
    %5782 = vmatprep.subr.mxu0 0.0
    %5783 = vmatpush1.msra.mxu0 %v5767
    %5784 = vmatprep.subr.mxu0 0.0
    %5785 = vmatpush1.msra.mxu0 %v5768
    %5786 = vmatprep.subr.mxu0 0.0
    %5787 = vmatpush1.msra.mxu0 %v5769
    %5788 = vmatprep.subr.mxu0 0.0
    %5789 = vmatpush1.msra.mxu0 %v5770
    %5790 = vmatprep.subr.mxu0 0.0
    %5791 = vmatpush1.msra.mxu0 %v5771
    %5792 = vmatprep.subr.mxu0 0.0
    %5793 = vmatpush1.msra.mxu0 %v5772
    %5794 = vmatprep.subr.mxu0 0.0
    %5795 = vmatpush1.msra.mxu0 %v5773
    %5796 = vmatprep.subr.mxu0 0.0
    %5797 = vmatpush1.msra.mxu0 0.0
    %5798 = vmatprep.subr.mxu0 0.0
    %5799 = vmatpush1.msra.mxu0 0.0
    %5800 = vmatprep.subr.mxu0 0.0
    %5801 = vmatpush1.msra.mxu0 0.0
    %5802 = vmatprep.subr.mxu0 0.0
    %5803 = vmatpush1.msra.mxu0 0.0
    %5804 = vmatprep.subr.mxu0 0.0
    %5805 = vmatpush1.msra.mxu0 0.0
    %5806 = vmatprep.subr.mxu0 0.0
    %5807 = vmatpush1.msra.mxu0 0.0
    %5808 = vmatprep.subr.mxu0 0.0
    %5809 = vmatpush1.msra.mxu0 0.0
    %5810 = vmatprep.subr.mxu0 0.0
    %5811 = vmatpush1.msra.mxu0 0.0
    %5812 = vmatprep.subr.mxu0 0.0
    %5813 = vmatpush1.msra.mxu0 0.0
    %5814 = vmatprep.subr.mxu0 0.0
    %5815 = vmatpush1.msra.mxu0 0.0
    %5816 = vmatprep.subr.mxu0 0.0
    %5817 = vmatpush1.msra.mxu0 0.0
    %5818 = vmatprep.subr.mxu0 0.0
    %5819 = vmatpush1.msra.mxu0 0.0
    %5820 = vmatprep.subr.mxu0 0.0
    %5821 = vmatpush1.msra.mxu0 0.0
    %5822 = vmatprep.subr.mxu0 0.0
    %5823 = vmatpush1.msra.mxu0 0.0
    %5824 = vmatprep.subr.mxu0 0.0
    %5825 = vmatpush1.msra.mxu0 0.0
    %5826 = vmatprep.subr.mxu0 0.0
    %5827 = vmatpush1.msra.mxu0 0.0
    %5828 = vmatprep.subr.mxu0 0.0
    %5829 = vmatpush1.msra.mxu0 0.0
    %5830 = vmatprep.subr.mxu0 0.0
    %5831 = vmatpush1.msra.mxu0 0.0
    %5832 = vmatprep.subr.mxu0 0.0
    %5833 = vmatpush1.msra.mxu0 0.0
    %5834 = vmatprep.subr.mxu0 0.0
    %5835 = vmatpush1.msra.mxu0 0.0
    %5836 = vmatprep.subr.mxu0 0.0
    %5837 = vmatpush1.msra.mxu0 0.0
    %5838 = vmatprep.subr.mxu0 0.0
    %5839 = vmatpush1.msra.mxu0 0.0
    %5840 = vmatprep.subr.mxu0 0.0
    %5841 = vmatpush1.msra.mxu0 0.0
    %5842 = vmatprep.subr.mxu0 0.0
    %5843 = vmatpush1.msra.mxu0 0.0
    %5844 = vmatprep.mubr.f32.mxu0 0.0
    %5845 = vmatmul.mubr.f32.gmra.mrb[0].mxu0 %v5775
    %v5846 = vpop.f32.mrb[0].mxu0
    %v5847 = vadd.f32 0.0, %v5846
    %v5848 = vpop.f32.mrb[0].mxu0
    %5849 = vmatprep.mubr.f32.mxu0 0.0
    %5850 = vmatmul.mubr.f32.gmra.mrb[0].mxu0 %v5778
    %v5851 = vpop.f32.mrb[0].mxu0
    %v5852 = vadd.f32 0.0, %v5851
    %v5853 = vpop.f32.mrb[0].mxu0
    %5854 = vdwg.mxu0
    %v5855 = vadd.f32 %v5613, %v5847
    %v5856 = vadd.f32 %v5614, %v5852
    %s5857 = scalar_lea.vmem %s11, 1
    %v5858 = vld [vmem:[%s5857] sm:$0x1]
    %v5860 = vlaneseq
    %v5861 = vshrl.u32 %v5860, 7
    %v5862 = vsub.s32 0, %v5861
    %v5863 = vrot.slane %v5858, %v5862
    %v5865 = vadd.f32 %v5855, %v5863
    %v5866 = vadd.f32 %v5856, %v5863
    %v5867 = vld [vmem:[%s12] sm:$0x1]
    %v5868 = vld [vmem:[%s13] sm:$0x1]
    %v5869 = vsel %vm52, %v5865, 0.0
    %5870 = vadd.xlane.f32.xlu0 %v5869
    %v5871 = vpop.xlane.xlu0 %5870
    %v5872 = vsel %vm52, %v5866, 0.0
    %5873 = vadd.xlane.f32.xlu0 %v5872
    %v5874 = vpop.xlane.xlu0 %5873
    %v5875 = vmul.f32 %v5871, %v59
    %v5876 = vmul.f32 %v5874, %v59
    %v5877 = vsub.f32 %v5865, %v5875
    %v5878 = vsub.f32 %v5866, %v5876
    %v5879 = vmul.f32 %v5877, %v5877
    %v5880 = vmul.f32 %v5878, %v5878
    %v5881 = vsel %vm52, %v5879, 0.0
    %5882 = vadd.xlane.f32.xlu0 %v5881
    %v5883 = vpop.xlane.xlu0 %5882
    %v5884 = vsel %vm52, %v5880, 0.0
    %5885 = vadd.xlane.f32.xlu0 %v5884
    %v5886 = vpop.xlane.xlu0 %5885
    %v5887 = vmul.f32 %v5883, %v59
    %v5888 = vmul.f32 %v5886, %v59
    %v5889 = vadd.f32 %v5887, 1e-05
    %v5890 = vadd.f32 %v5888, 1e-05
    %v5891 = vrsqrt.pop %v5889
    %v5892 = vrsqrt.pop %v5890
    %v5893 = vmul.f32 %v5877, %v5891
    %v5894 = vmul.f32 %v5878, %v5892
    %v5896 = vlaneseq
    %v5897 = vshrl.u32 %v5896, 7
    %v5898 = vsub.s32 0, %v5897
    %v5899 = vrot.slane %v5867, %v5898
    %v5901 = vmul.f32 %v5893, %v5899
    %v5902 = vmul.f32 %v5894, %v5899
    %v5904 = vlaneseq
    %v5905 = vshrl.u32 %v5904, 7
    %v5906 = vsub.s32 0, %v5905
    %v5907 = vrot.slane %v5868, %v5906
    %v5909 = vadd.f32 %v5901, %v5907
    %v5910 = vadd.f32 %v5902, %v5907
    %5911 = vst.msk [vmem:[#allocation2] sm:$0xff] %vm52, %v5909
    %5912 = vst.msk [vmem:[#allocation2 + $0x8] sm:$0xff] %vm52, %v5910
    // Predicated region
    $region58: #{transformer_forward.1} parent=1 // pred_check
      _
    $region59: #{transformer_forward.1} parent=1 // pred_check_branch
      %5914 = sbr.rel (0) target = $region61
    $region60: #{transformer_forward.1} parent=1 // pred_region
      %s5916 = ssub.s32 256, 256
      %5917 = vsyncadd [#allocation3], %s5916
      %s5918 = sshll.u32 [#allocation2], 4
      %s5919 = int_to_ptr.vmem [resolvable:$true] %s5918
      %5924 = dma.vmem_to_hbm [thread:$0]  %s5919, 256, %s14, [#allocation3], 128, 128, 8
    $region61: #{transformer_forward.1} parent=1 // pred_fallthru
      _
    // Predicated region
    $region62: #{transformer_forward.1} parent=1 // pred_check
      _
    $region63: #{transformer_forward.1} parent=1 // pred_check_branch
      %5926 = sbr.rel (0) target = $region65
    $region64: #{transformer_forward.1} parent=1 // pred_region
      %5927 = dma.done [#allocation3], 256
    $region65: #{transformer_forward.1} parent=1 // pred_fallthru
      _
    %5928 = vsyncpa [#allocation3], 1

</llo_original>
